<compile_context>
chip_gen: v7x
topology: tpu7x:2x2x1
jax: 0.10.0
libtpu: 0.0.40
codegen_flags: <defaults>
</compile_context>

<pallas_src>
from functools import partial

import jax
import jax.numpy as jnp
from jax.experimental import pallas as pl
from jax.experimental.pallas import tpu as pltpu

NPAD = 128                    # lane-dense padding for conv Cout / head nclass
GP = 128                      # per-direction padded GRU gate block (needs 3H <= 128)
VMEM_LIMIT = 32 * 1024 * 1024


# ---------------------------------------------------------------------------
# Kernel 1: conv 3x3 (in-kernel im2col, single K=9*Cin matmul, batch in M)
#           + folded BN + ReLU + fused AvgPool2d((1, pf))
# ---------------------------------------------------------------------------
def _conv_kernel(xp_ref, w_ref, scale_ref, shift_ref, o_ref, patch_scr,
                 *, B, H, W, Cin, pf):
    HW = H * W
    # im2col into VMEM scratch: row = (b, h, w), col = (tap, cin); 9 static taps
    for b in range(B):
        for k in range(9):
            ki, kj = divmod(k, 3)
            patch_scr[b * HW:(b + 1) * HW, k * Cin:(k + 1) * Cin] = (
                xp_ref[b, ki:ki + H, kj:kj + W, :].reshape(HW, Cin))
    # single MXU pass over the whole batch: (B*H*W, 9*Cin) x (9*Cin, 128)
    y = jnp.dot(patch_scr[...], w_ref[...], preferred_element_type=jnp.float32)
    y = jnp.maximum(y * scale_ref[...] + shift_ref[...], 0.0)   # BN(eval) + ReLU
    # fused AvgPool2d((1, pf)): rows are ordered (b, h, w) with w fastest, so
    # pooling averages pf consecutive rows; output stays lane-dense (…, 128).
    o_ref[...] = jnp.mean(y.reshape(B * H * (W // pf), pf, NPAD), axis=1)


def conv_bn_relu_pool(x_nhwc, blk, eps=1e-5):
    B, Hh, Ww, Cin = x_nhwc.shape
    w_oihw = blk["w"]                                   # (Cout, Cin, 3, 3)
    Cout = w_oihw.shape[0]
    pf = blk["pool_f"]
    Wq = Ww // pf
    # weight as (9*Cin, NPAD): row index = (ki*3 + kj)*Cin + ci; Cout zero-padded
    w_mat = jnp.transpose(w_oihw, (2, 3, 1, 0)).reshape(9 * Cin, Cout)
    w_mat = jnp.pad(w_mat, ((0, 0), (0, NPAD - Cout)))
    # folded BatchNorm (eval); conv bias folded into the shift
    scale = blk["gamma"] / jnp.sqrt(blk["var"] + eps)
    shift = (blk["b"] - blk["mean"]) * scale + blk["beta"]
    scale_p = jnp.pad(scale, (0, NPAD - Cout)).reshape(1, NPAD)
    shift_p = jnp.pad(shift, (0, NPAD - Cout)).reshape(1, NPAD)
    xp = jnp.pad(x_nhwc, ((0, 0), (1, 1), (1, 1), (0, 0)))      # 3x3, pad=1

    M = B * Hh * Ww
    flops = 2 * M * 9 * Cin * NPAD
    bytes_acc = 4 * (xp.size + w_mat.size + 2 * NPAD + B * Hh * Wq * NPAD)

    y = pl.pallas_call(
        partial(_conv_kernel, B=B, H=Hh, W=Ww, Cin=Cin, pf=pf),
        out_shape=jax.ShapeDtypeStruct((B * Hh * Wq, NPAD), jnp.float32),
        scratch_shapes=[pltpu.VMEM((M, 9 * Cin), jnp.float32)],
        compiler_params=pltpu.CompilerParams(vmem_limit_bytes=VMEM_LIMIT),
        cost_estimate=pl.CostEstimate(flops=int(flops), transcendentals=0,
                                      bytes_accessed=int(bytes_acc)),
    )(xp, w_mat, scale_p, shift_p)
    # wrapper-side: restore NHWC and drop the zero-padded output channels
    return y.reshape(B, Hh, Wq, NPAD)[:, :, :, :Cout]


# ---------------------------------------------------------------------------
# Kernel 2: fused bidirectional GRU (PyTorch gate order r, z, n, time-major)
#           + dense head + sigmoid + time-mean + masked class softmax.
# ---------------------------------------------------------------------------
def _bgru_head_kernel(x_ref, wih_ref, bih_ref, whh_ref, bhh_ref,
                      wd_ref, bd_ref, o_ref,
                      gi_scr, h_scr, hf_scr, hb_scr, *, nclass):
    T, B, F = x_ref.shape
    H = whh_ref.shape[0]

    # ---- hoisted input projections, BOTH directions in one matmul:
    #      (T*B, F) x (F, 2*GP); fwd gates in cols [0,3H), bwd in [GP,GP+3H).
    x2 = x_ref[...].reshape(T * B, F)
    gi_scr[...] = (jnp.dot(x2, wih_ref[...], preferred_element_type=jnp.float32)
                   + bih_ref[...]).reshape(T, B, 2 * GP)

    # hoisted weight / bias loads (JAX does not CSE broadcasts inside loops)
    whh = whh_ref[...]
    bhh = bhh_ref[...]

    def gru_gates(gi, gh, h):                 # PyTorch gate order: r, z, n
        r = jax.nn.sigmoid(gi[:, 0:H] + gh[:, 0:H])
        z = jax.nn.sigmoid(gi[:, H:2 * H] + gh[:, H:2 * H])
        n = jnp.tanh(gi[:, 2 * H:3 * H] + r * gh[:, 2 * H:3 * H])
        return (1.0 - z) * n + z * h

    # stacked hidden state: rows [0,B) = forward, rows [B,2B) = backward
    h_scr[...] = jnp.zeros((2 * B, H), jnp.float32)

    def body(t, carry):
        tb = T - 1 - t
        h_all = h_scr[...]                                     # (2B, H)
        # ONE fused hidden matmul per step for both directions
        gh = jnp.dot(h_all, whh, preferred_element_type=jnp.float32) + bhh
        h_f = gru_gates(gi_scr[t][:, 0:3 * H],
                        gh[0:B, 0:3 * H], h_all[0:B])
        h_b = gru_gates(gi_scr[tb][:, GP:GP + 3 * H],
                        gh[B:2 * B, GP:GP + 3 * H], h_all[B:2 * B])
        h_scr[0:B] = h_f
        h_scr[B:2 * B] = h_b
        hf_scr[t] = h_f                                        # output time t
        hb_scr[tb] = h_b                                       # output time T-1-t
        return carry

    # fully unrolled sequential recurrence (short fixed T)
    jax.lax.fori_loop(0, T, body, 0, unroll=True)

    # ---- fused head: dense (2H -> 128 padded) -> sigmoid -> mean over time
    #      -> softmax over the real classes (padded cols masked to -inf).
    hf2 = hf_scr[...].reshape(T * B, H)
    hb2 = hb_scr[...].reshape(T * B, H)
    strong = jax.nn.sigmoid(
        jnp.dot(hf2, wd_ref[0:H, :], preferred_element_type=jnp.float32)
        + jnp.dot(hb2, wd_ref[H:2 * H, :], preferred_element_type=jnp.float32)
        + bd_ref[...])                                          # (T*B, NPAD)
    weak = jnp.mean(strong.reshape(T, B, NPAD), axis=0)         # strong.mean(dim=1)
    col = jax.lax.broadcasted_iota(jnp.int32, (1, NPAD), 1)
    weak = jnp.where(col < nclass, weak, -jnp.inf)              # exact padded softmax
    o_ref[...] = jax.nn.softmax(weak, axis=-1)                  # nn.Softmax(dim=1)


def bgru_head(x_tbf, rnn_params, H, dense_w, dense_b):
    # TODO(synk): for real workloads pack >=8 sequences per call (fill sublanes)
    # and split directions across the two v7x TensorCores.
    T, B, F = x_tbf.shape
    nclass = dense_w.shape[0]
    assert 3 * H <= GP and 2 * H <= NPAD and nclass <= NPAD

    # gate weights, both directions, lane-aligned 128-lane blocks:
    #   cols [0, 3H)       = forward (r, z, n)
    #   cols [GP, GP + 3H) = backward (r, z, n)
    wih = jnp.zeros((F, 2 * GP), jnp.float32)
    whh = jnp.zeros((H, 2 * GP), jnp.float32)
    bih = jnp.zeros((1, 2 * GP), jnp.float32)
    bhh = jnp.zeros((1, 2 * GP), jnp.float32)
    for i, d in enumerate(("fwd", "bwd")):
        w_ih, w_hh, b_ih, b_hh = rnn_params[d]
        off = i * GP
        wih = wih.at[:, off:off + 3 * H].set(w_ih.T)
        whh = whh.at[:, off:off + 3 * H].set(w_hh.T)
        bih = bih.at[0, off:off + 3 * H].set(b_ih)
        bhh = bhh.at[0, off:off + 3 * H].set(b_hh)

    # dense head: rows [0, H) act on h_fwd, rows [H, 2H) on h_bwd; cols zero-padded
    wd = jnp.pad(dense_w.T, ((0, 0), (0, NPAD - nclass)))       # (2H, 128)
    bd = jnp.pad(dense_b, (0, NPAD - nclass)).reshape(1, NPAD)

    flops = (2 * T * B * F * 2 * GP                 # hoisted input projections
             + T * 2 * (2 * B) * H * 2 * GP         # fused hidden matmuls
             + 2 * 2 * T * B * H * NPAD)            # head dense
    transc = T * 2 * B * 3 * H + T * B * NPAD + B * NPAD
    bytes_acc = 4 * (T * B * F + (F + H + 2) * 2 * GP
                     + (2 * H + 1) * NPAD + B * NPAD)

    out = pl.pallas_call(
        partial(_bgru_head_kernel, nclass=nclass),
        out_shape=jax.ShapeDtypeStruct((B, NPAD), jnp.float32),
        scratch_shapes=[pltpu.VMEM((T, B, 2 * GP), jnp.float32),   # gi, both dirs
                        pltpu.VMEM((2 * B, H), jnp.float32),       # stacked h state
                        pltpu.VMEM((T, B, H), jnp.float32),        # fwd hidden outs
                        pltpu.VMEM((T, B, H), jnp.float32)],       # bwd hidden outs
        compiler_params=pltpu.CompilerParams(vmem_limit_bytes=VMEM_LIMIT),
        cost_estimate=pl.CostEstimate(flops=int(flops),
                                      transcendentals=int(transc),
                                      bytes_accessed=int(bytes_acc)),
    )(x_tbf, wih, bih, whh, bhh, wd, bd)
    return out[:, :nclass]


# ---------------------------------------------------------------------------
# Full CRNN forward
# ---------------------------------------------------------------------------
def crnn_forward(x_nchw, params):
    x = jnp.transpose(x_nchw, (0, 2, 3, 1))            # NCHW -> NHWC
    for blk in params["cnn"]:
        x = conv_bn_relu_pool(x, blk)
    B, frames, freq, chan = x.shape
    if freq != 1:
        # mirrors torch: permute(0,2,1,3).view(bs, frames, chan*freq)
        x_btf = jnp.transpose(x, (0, 1, 3, 2)).reshape(B, frames, chan * freq)
    else:
        x_btf = x[:, :, 0, :]                          # squeeze(-1).permute(0,2,1)
    x_tbf = jnp.transpose(x_btf, (1, 0, 2))            # time-major for the GRU
    # TODO(synk): nn.Dropout is identity in eval / p=0 -> no kernel needed.
    return bgru_head(x_tbf, params["rnn"], params["H"],
                     params["dense_w"], params["dense_b"])      # (B, nclass)


# ---------------------------------------------------------------------------
# Deterministic parameter init (shapes follow the PyTorch module's __init__)
# ---------------------------------------------------------------------------
def init_params(key, n_in_channel=1, nclass=10, H=32,
                nb_filters=(16, 32), pools=(4, 4)):
    keys = iter(jax.random.split(key, 32))
    cnn = []
    cin = n_in_channel
    for cout, pf in zip(nb_filters, pools):
        cnn.append(dict(
            w=0.2 * jax.random.normal(next(keys), (cout, cin, 3, 3), jnp.float32),
            b=0.1 * jax.random.normal(next(keys), (cout,), jnp.float32),
            gamma=1.0 + 0.1 * jax.random.normal(next(keys), (cout,), jnp.float32),
            beta=0.1 * jax.random.normal(next(keys), (cout,), jnp.float32),
            mean=0.1 * jax.random.normal(next(keys), (cout,), jnp.float32),
            var=1.0 + 0.1 * jnp.abs(jax.random.normal(next(keys), (cout,), jnp.float32)),
            pool_f=pf))
        cin = cout
    F = nb_filters[-1]                                 # self.cnn.nb_filters[-1]

    def gru_dir(k):
        k1, k2, k3, k4 = jax.random.split(k, 4)
        return (0.2 * jax.random.normal(k1, (3 * H, F), jnp.float32),   # W_ih
                0.2 * jax.random.normal(k2, (3 * H, H), jnp.float32),   # W_hh
                0.1 * jax.random.normal(k3, (3 * H,), jnp.float32),     # b_ih
                0.1 * jax.random.normal(k4, (3 * H,), jnp.float32))     # b_hh

    rnn = dict(fwd=gru_dir(next(keys)), bwd=gru_dir(next(keys)))
    dense_w = 0.2 * jax.random.normal(next(keys), (nclass, 2 * H), jnp.float32)
    dense_b = 0.1 * jax.random.normal(next(keys), (nclass,), jnp.float32)
    return dict(cnn=cnn, rnn=rnn, dense_w=dense_w, dense_b=dense_b, H=H)


if __name__ == "__main__":
    key = jax.random.PRNGKey(0)
    pkey, xkey = jax.random.split(key)
    params = init_params(pkey, n_in_channel=1, nclass=10, H=32)

    # x: (batch=2, n_in_channel=1, frames=16, freq=16)  -- NCHW like PyTorch
    x = jax.random.normal(xkey, (2, 1, 16, 16), jnp.float32)

    pred = crnn_forward(x, params)
    pred = jax.block_until_ready(pred)

    assert pred.shape == (2, 10)
    assert bool(jnp.all(jnp.isfinite(pred)))
    # output of nn.Softmax(dim=1): rows sum to 1
    assert bool(jnp.all(jnp.abs(jnp.sum(pred, axis=1) - 1.0) < 1e-3))
    print("KERNEL_OK")
</pallas_src>

<mosaic_0001>
module attributes {stable_mosaic.version = 11 : i64} {
  func.func @_conv_kernel(%arg0: memref<2x18x18x1xf32, #tpu.memory_space<vmem>>, %arg1: memref<9x128xf32, #tpu.memory_space<vmem>>, %arg2: memref<1x128xf32, #tpu.memory_space<vmem>>, %arg3: memref<1x128xf32, #tpu.memory_space<vmem>>, %arg4: memref<128x128xf32, #tpu.memory_space<vmem>>, %arg5: memref<512x9xf32, #tpu.memory_space<vmem>>) attributes {dimension_semantics = [], scalar_prefetch = 0 : i64, scratch_operands = 1 : i64, tpu.core_type = #tpu.core_type<tc>} {
    %c0 = arith.constant 0 : index
    %c0_0 = arith.constant 0 : index
    %c0_1 = arith.constant 0 : index
    %c0_2 = arith.constant 0 : index
    %0 = vector.load %arg0[%c0, %c0_0, %c0_1, %c0_2] : memref<2x18x18x1xf32, #tpu.memory_space<vmem>>, vector<1x16x16x1xf32>
    %1 = vector.shape_cast %0 : vector<1x16x16x1xf32> to vector<16x16x1xf32>
    %2 = vector.shape_cast %1 : vector<16x16x1xf32> to vector<256x1xf32>
    %c0_3 = arith.constant 0 : index
    %c0_4 = arith.constant 0 : index
    %3 = vector.load %arg5[%c0_3, %c0_4] : memref<512x9xf32, #tpu.memory_space<vmem>>, vector<256x1xf32>
    tpu.vector_store %arg5[%c0_3, %c0_4], %2 {strides = array<i32>} : memref<512x9xf32, #tpu.memory_space<vmem>>, vector<256x1xf32>,
    %c0_5 = arith.constant 0 : index
    %c0_6 = arith.constant 0 : index
    %c1 = arith.constant 1 : index
    %c0_7 = arith.constant 0 : index
    %4 = vector.load %arg0[%c0_5, %c0_6, %c1, %c0_7] : memref<2x18x18x1xf32, #tpu.memory_space<vmem>>, vector<1x16x16x1xf32>
    %5 = vector.shape_cast %4 : vector<1x16x16x1xf32> to vector<16x16x1xf32>
    %6 = vector.shape_cast %5 : vector<16x16x1xf32> to vector<256x1xf32>
    %c0_8 = arith.constant 0 : index
    %c1_9 = arith.constant 1 : index
    %7 = vector.load %arg5[%c0_8, %c1_9] : memref<512x9xf32, #tpu.memory_space<vmem>>, vector<256x1xf32>
    tpu.vector_store %arg5[%c0_8, %c1_9], %6 {strides = array<i32>} : memref<512x9xf32, #tpu.memory_space<vmem>>, vector<256x1xf32>,
    %c0_10 = arith.constant 0 : index
    %c0_11 = arith.constant 0 : index
    %c2 = arith.constant 2 : index
    %c0_12 = arith.constant 0 : index
    %8 = vector.load %arg0[%c0_10, %c0_11, %c2, %c0_12] : memref<2x18x18x1xf32, #tpu.memory_space<vmem>>, vector<1x16x16x1xf32>
    %9 = vector.shape_cast %8 : vector<1x16x16x1xf32> to vector<16x16x1xf32>
    %10 = vector.shape_cast %9 : vector<16x16x1xf32> to vector<256x1xf32>
    %c0_13 = arith.constant 0 : index
    %c2_14 = arith.constant 2 : index
    %11 = vector.load %arg5[%c0_13, %c2_14] : memref<512x9xf32, #tpu.memory_space<vmem>>, vector<256x1xf32>
    tpu.vector_store %arg5[%c0_13, %c2_14], %10 {strides = array<i32>} : memref<512x9xf32, #tpu.memory_space<vmem>>, vector<256x1xf32>,
    %c0_15 = arith.constant 0 : index
    %c1_16 = arith.constant 1 : index
    %c0_17 = arith.constant 0 : index
    %c0_18 = arith.constant 0 : index
    %12 = vector.load %arg0[%c0_15, %c1_16, %c0_17, %c0_18] : memref<2x18x18x1xf32, #tpu.memory_space<vmem>>, vector<1x16x16x1xf32>
    %13 = vector.shape_cast %12 : vector<1x16x16x1xf32> to vector<16x16x1xf32>
    %14 = vector.shape_cast %13 : vector<16x16x1xf32> to vector<256x1xf32>
    %c0_19 = arith.constant 0 : index
    %c3 = arith.constant 3 : index
    %15 = vector.load %arg5[%c0_19, %c3] : memref<512x9xf32, #tpu.memory_space<vmem>>, vector<256x1xf32>
    tpu.vector_store %arg5[%c0_19, %c3], %14 {strides = array<i32>} : memref<512x9xf32, #tpu.memory_space<vmem>>, vector<256x1xf32>,
    %c0_20 = arith.constant 0 : index
    %c1_21 = arith.constant 1 : index
    %c1_22 = arith.constant 1 : index
    %c0_23 = arith.constant 0 : index
    %16 = vector.load %arg0[%c0_20, %c1_21, %c1_22, %c0_23] : memref<2x18x18x1xf32, #tpu.memory_space<vmem>>, vector<1x16x16x1xf32>
    %17 = vector.shape_cast %16 : vector<1x16x16x1xf32> to vector<16x16x1xf32>
    %18 = vector.shape_cast %17 : vector<16x16x1xf32> to vector<256x1xf32>
    %c0_24 = arith.constant 0 : index
    %c4 = arith.constant 4 : index
    %19 = vector.load %arg5[%c0_24, %c4] : memref<512x9xf32, #tpu.memory_space<vmem>>, vector<256x1xf32>
    tpu.vector_store %arg5[%c0_24, %c4], %18 {strides = array<i32>} : memref<512x9xf32, #tpu.memory_space<vmem>>, vector<256x1xf32>,
    %c0_25 = arith.constant 0 : index
    %c1_26 = arith.constant 1 : index
    %c2_27 = arith.constant 2 : index
    %c0_28 = arith.constant 0 : index
    %20 = vector.load %arg0[%c0_25, %c1_26, %c2_27, %c0_28] : memref<2x18x18x1xf32, #tpu.memory_space<vmem>>, vector<1x16x16x1xf32>
    %21 = vector.shape_cast %20 : vector<1x16x16x1xf32> to vector<16x16x1xf32>
    %22 = vector.shape_cast %21 : vector<16x16x1xf32> to vector<256x1xf32>
    %c0_29 = arith.constant 0 : index
    %c5 = arith.constant 5 : index
    %23 = vector.load %arg5[%c0_29, %c5] : memref<512x9xf32, #tpu.memory_space<vmem>>, vector<256x1xf32>
    tpu.vector_store %arg5[%c0_29, %c5], %22 {strides = array<i32>} : memref<512x9xf32, #tpu.memory_space<vmem>>, vector<256x1xf32>,
    %c0_30 = arith.constant 0 : index
    %c2_31 = arith.constant 2 : index
    %c0_32 = arith.constant 0 : index
    %c0_33 = arith.constant 0 : index
    %24 = vector.load %arg0[%c0_30, %c2_31, %c0_32, %c0_33] : memref<2x18x18x1xf32, #tpu.memory_space<vmem>>, vector<1x16x16x1xf32>
    %25 = vector.shape_cast %24 : vector<1x16x16x1xf32> to vector<16x16x1xf32>
    %26 = vector.shape_cast %25 : vector<16x16x1xf32> to vector<256x1xf32>
    %c0_34 = arith.constant 0 : index
    %c6 = arith.constant 6 : index
    %27 = vector.load %arg5[%c0_34, %c6] : memref<512x9xf32, #tpu.memory_space<vmem>>, vector<256x1xf32>
    tpu.vector_store %arg5[%c0_34, %c6], %26 {strides = array<i32>} : memref<512x9xf32, #tpu.memory_space<vmem>>, vector<256x1xf32>,
    %c0_35 = arith.constant 0 : index
    %c2_36 = arith.constant 2 : index
    %c1_37 = arith.constant 1 : index
    %c0_38 = arith.constant 0 : index
    %28 = vector.load %arg0[%c0_35, %c2_36, %c1_37, %c0_38] : memref<2x18x18x1xf32, #tpu.memory_space<vmem>>, vector<1x16x16x1xf32>
    %29 = vector.shape_cast %28 : vector<1x16x16x1xf32> to vector<16x16x1xf32>
    %30 = vector.shape_cast %29 : vector<16x16x1xf32> to vector<256x1xf32>
    %c0_39 = arith.constant 0 : index
    %c7 = arith.constant 7 : index
    %31 = vector.load %arg5[%c0_39, %c7] : memref<512x9xf32, #tpu.memory_space<vmem>>, vector<256x1xf32>
    tpu.vector_store %arg5[%c0_39, %c7], %30 {strides = array<i32>} : memref<512x9xf32, #tpu.memory_space<vmem>>, vector<256x1xf32>,
    %c0_40 = arith.constant 0 : index
    %c2_41 = arith.constant 2 : index
    %c2_42 = arith.constant 2 : index
    %c0_43 = arith.constant 0 : index
    %32 = vector.load %arg0[%c0_40, %c2_41, %c2_42, %c0_43] : memref<2x18x18x1xf32, #tpu.memory_space<vmem>>, vector<1x16x16x1xf32>
    %33 = vector.shape_cast %32 : vector<1x16x16x1xf32> to vector<16x16x1xf32>
    %34 = vector.shape_cast %33 : vector<16x16x1xf32> to vector<256x1xf32>
    %c0_44 = arith.constant 0 : index
    %c8 = arith.constant 8 : index
    %35 = vector.load %arg5[%c0_44, %c8] : memref<512x9xf32, #tpu.memory_space<vmem>>, vector<256x1xf32>
    tpu.vector_store %arg5[%c0_44, %c8], %34 {strides = array<i32>} : memref<512x9xf32, #tpu.memory_space<vmem>>, vector<256x1xf32>,
    %c1_45 = arith.constant 1 : index
    %c0_46 = arith.constant 0 : index
    %c0_47 = arith.constant 0 : index
    %c0_48 = arith.constant 0 : index
    %36 = vector.load %arg0[%c1_45, %c0_46, %c0_47, %c0_48] : memref<2x18x18x1xf32, #tpu.memory_space<vmem>>, vector<1x16x16x1xf32>
    %37 = vector.shape_cast %36 : vector<1x16x16x1xf32> to vector<16x16x1xf32>
    %38 = vector.shape_cast %37 : vector<16x16x1xf32> to vector<256x1xf32>
    %c256 = arith.constant 256 : index
    %c0_49 = arith.constant 0 : index
    %39 = vector.load %arg5[%c256, %c0_49] : memref<512x9xf32, #tpu.memory_space<vmem>>, vector<256x1xf32>
    tpu.vector_store %arg5[%c256, %c0_49], %38 {strides = array<i32>} : memref<512x9xf32, #tpu.memory_space<vmem>>, vector<256x1xf32>,
    %c1_50 = arith.constant 1 : index
    %c0_51 = arith.constant 0 : index
    %c1_52 = arith.constant 1 : index
    %c0_53 = arith.constant 0 : index
    %40 = vector.load %arg0[%c1_50, %c0_51, %c1_52, %c0_53] : memref<2x18x18x1xf32, #tpu.memory_space<vmem>>, vector<1x16x16x1xf32>
    %41 = vector.shape_cast %40 : vector<1x16x16x1xf32> to vector<16x16x1xf32>
    %42 = vector.shape_cast %41 : vector<16x16x1xf32> to vector<256x1xf32>
    %c256_54 = arith.constant 256 : index
    %c1_55 = arith.constant 1 : index
    %43 = vector.load %arg5[%c256_54, %c1_55] : memref<512x9xf32, #tpu.memory_space<vmem>>, vector<256x1xf32>
    tpu.vector_store %arg5[%c256_54, %c1_55], %42 {strides = array<i32>} : memref<512x9xf32, #tpu.memory_space<vmem>>, vector<256x1xf32>,
    %c1_56 = arith.constant 1 : index
    %c0_57 = arith.constant 0 : index
    %c2_58 = arith.constant 2 : index
    %c0_59 = arith.constant 0 : index
    %44 = vector.load %arg0[%c1_56, %c0_57, %c2_58, %c0_59] : memref<2x18x18x1xf32, #tpu.memory_space<vmem>>, vector<1x16x16x1xf32>
    %45 = vector.shape_cast %44 : vector<1x16x16x1xf32> to vector<16x16x1xf32>
    %46 = vector.shape_cast %45 : vector<16x16x1xf32> to vector<256x1xf32>
    %c256_60 = arith.constant 256 : index
    %c2_61 = arith.constant 2 : index
    %47 = vector.load %arg5[%c256_60, %c2_61] : memref<512x9xf32, #tpu.memory_space<vmem>>, vector<256x1xf32>
    tpu.vector_store %arg5[%c256_60, %c2_61], %46 {strides = array<i32>} : memref<512x9xf32, #tpu.memory_space<vmem>>, vector<256x1xf32>,
    %c1_62 = arith.constant 1 : index
    %c1_63 = arith.constant 1 : index
    %c0_64 = arith.constant 0 : index
    %c0_65 = arith.constant 0 : index
    %48 = vector.load %arg0[%c1_62, %c1_63, %c0_64, %c0_65] : memref<2x18x18x1xf32, #tpu.memory_space<vmem>>, vector<1x16x16x1xf32>
    %49 = vector.shape_cast %48 : vector<1x16x16x1xf32> to vector<16x16x1xf32>
    %50 = vector.shape_cast %49 : vector<16x16x1xf32> to vector<256x1xf32>
    %c256_66 = arith.constant 256 : index
    %c3_67 = arith.constant 3 : index
    %51 = vector.load %arg5[%c256_66, %c3_67] : memref<512x9xf32, #tpu.memory_space<vmem>>, vector<256x1xf32>
    tpu.vector_store %arg5[%c256_66, %c3_67], %50 {strides = array<i32>} : memref<512x9xf32, #tpu.memory_space<vmem>>, vector<256x1xf32>,
    %c1_68 = arith.constant 1 : index
    %c1_69 = arith.constant 1 : index
    %c1_70 = arith.constant 1 : index
    %c0_71 = arith.constant 0 : index
    %52 = vector.load %arg0[%c1_68, %c1_69, %c1_70, %c0_71] : memref<2x18x18x1xf32, #tpu.memory_space<vmem>>, vector<1x16x16x1xf32>
    %53 = vector.shape_cast %52 : vector<1x16x16x1xf32> to vector<16x16x1xf32>
    %54 = vector.shape_cast %53 : vector<16x16x1xf32> to vector<256x1xf32>
    %c256_72 = arith.constant 256 : index
    %c4_73 = arith.constant 4 : index
    %55 = vector.load %arg5[%c256_72, %c4_73] : memref<512x9xf32, #tpu.memory_space<vmem>>, vector<256x1xf32>
    tpu.vector_store %arg5[%c256_72, %c4_73], %54 {strides = array<i32>} : memref<512x9xf32, #tpu.memory_space<vmem>>, vector<256x1xf32>,
    %c1_74 = arith.constant 1 : index
    %c1_75 = arith.constant 1 : index
    %c2_76 = arith.constant 2 : index
    %c0_77 = arith.constant 0 : index
    %56 = vector.load %arg0[%c1_74, %c1_75, %c2_76, %c0_77] : memref<2x18x18x1xf32, #tpu.memory_space<vmem>>, vector<1x16x16x1xf32>
    %57 = vector.shape_cast %56 : vector<1x16x16x1xf32> to vector<16x16x1xf32>
    %58 = vector.shape_cast %57 : vector<16x16x1xf32> to vector<256x1xf32>
    %c256_78 = arith.constant 256 : index
    %c5_79 = arith.constant 5 : index
    %59 = vector.load %arg5[%c256_78, %c5_79] : memref<512x9xf32, #tpu.memory_space<vmem>>, vector<256x1xf32>
    tpu.vector_store %arg5[%c256_78, %c5_79], %58 {strides = array<i32>} : memref<512x9xf32, #tpu.memory_space<vmem>>, vector<256x1xf32>,
    %c1_80 = arith.constant 1 : index
    %c2_81 = arith.constant 2 : index
    %c0_82 = arith.constant 0 : index
    %c0_83 = arith.constant 0 : index
    %60 = vector.load %arg0[%c1_80, %c2_81, %c0_82, %c0_83] : memref<2x18x18x1xf32, #tpu.memory_space<vmem>>, vector<1x16x16x1xf32>
    %61 = vector.shape_cast %60 : vector<1x16x16x1xf32> to vector<16x16x1xf32>
    %62 = vector.shape_cast %61 : vector<16x16x1xf32> to vector<256x1xf32>
    %c256_84 = arith.constant 256 : index
    %c6_85 = arith.constant 6 : index
    %63 = vector.load %arg5[%c256_84, %c6_85] : memref<512x9xf32, #tpu.memory_space<vmem>>, vector<256x1xf32>
    tpu.vector_store %arg5[%c256_84, %c6_85], %62 {strides = array<i32>} : memref<512x9xf32, #tpu.memory_space<vmem>>, vector<256x1xf32>,
    %c1_86 = arith.constant 1 : index
    %c2_87 = arith.constant 2 : index
    %c1_88 = arith.constant 1 : index
    %c0_89 = arith.constant 0 : index
    %64 = vector.load %arg0[%c1_86, %c2_87, %c1_88, %c0_89] : memref<2x18x18x1xf32, #tpu.memory_space<vmem>>, vector<1x16x16x1xf32>
    %65 = vector.shape_cast %64 : vector<1x16x16x1xf32> to vector<16x16x1xf32>
    %66 = vector.shape_cast %65 : vector<16x16x1xf32> to vector<256x1xf32>
    %c256_90 = arith.constant 256 : index
    %c7_91 = arith.constant 7 : index
    %67 = vector.load %arg5[%c256_90, %c7_91] : memref<512x9xf32, #tpu.memory_space<vmem>>, vector<256x1xf32>
    tpu.vector_store %arg5[%c256_90, %c7_91], %66 {strides = array<i32>} : memref<512x9xf32, #tpu.memory_space<vmem>>, vector<256x1xf32>,
    %c1_92 = arith.constant 1 : index
    %c2_93 = arith.constant 2 : index
    %c2_94 = arith.constant 2 : index
    %c0_95 = arith.constant 0 : index
    %68 = vector.load %arg0[%c1_92, %c2_93, %c2_94, %c0_95] : memref<2x18x18x1xf32, #tpu.memory_space<vmem>>, vector<1x16x16x1xf32>
    %69 = vector.shape_cast %68 : vector<1x16x16x1xf32> to vector<16x16x1xf32>
    %70 = vector.shape_cast %69 : vector<16x16x1xf32> to vector<256x1xf32>
    %c256_96 = arith.constant 256 : index
    %c8_97 = arith.constant 8 : index
    %71 = vector.load %arg5[%c256_96, %c8_97] : memref<512x9xf32, #tpu.memory_space<vmem>>, vector<256x1xf32>
    tpu.vector_store %arg5[%c256_96, %c8_97], %70 {strides = array<i32>} : memref<512x9xf32, #tpu.memory_space<vmem>>, vector<256x1xf32>,
    %c0_98 = arith.constant 0 : index
    %c0_99 = arith.constant 0 : index
    %72 = vector.load %arg5[%c0_98, %c0_99] : memref<512x9xf32, #tpu.memory_space<vmem>>, vector<512x9xf32>
    %c0_100 = arith.constant 0 : index
    %c0_101 = arith.constant 0 : index
    %73 = vector.load %arg1[%c0_100, %c0_101] : memref<9x128xf32, #tpu.memory_space<vmem>>, vector<9x128xf32>
    %cst = arith.constant dense<0.000000e+00> : vector<512x128xf32>
    %74 = tpu.matmul %72, %73, %cst {dimension_numbers = #tpu.dot_dimension_numbers<[1], [0], [0], [1], [0, 0, 1, 1], [], []>} : vector<512x9xf32>, vector<9x128xf32>, vector<512x128xf32> -> vector<512x128xf32>
    %c0_102 = arith.constant 0 : index
    %c0_103 = arith.constant 0 : index
    %75 = vector.load %arg2[%c0_102, %c0_103] : memref<1x128xf32, #tpu.memory_space<vmem>>, vector<1x128xf32>
    %76 = vector.broadcast %75 : vector<1x128xf32> to vector<512x128xf32>
    %77 = arith.mulf %74, %76 : vector<512x128xf32>
    %c0_104 = arith.constant 0 : index
    %c0_105 = arith.constant 0 : index
    %78 = vector.load %arg3[%c0_104, %c0_105] : memref<1x128xf32, #tpu.memory_space<vmem>>, vector<1x128xf32>
    %79 = vector.broadcast %78 : vector<1x128xf32> to vector<512x128xf32>
    %80 = arith.addf %77, %79 : vector<512x128xf32>
    %cst_106 = arith.constant 0.000000e+00 : f32
    %81 = vector.broadcast %cst_106 : f32 to vector<512x128xf32>
    %82 = arith.maximumf %80, %81 : vector<512x128xf32>
    %83 = vector.shape_cast %82 : vector<512x128xf32> to vector<128x4x128xf32>
    %cst_107 = arith.constant dense<0.000000e+00> : vector<128x128xf32>
    %84 = vector.multi_reduction <add>, %83, %cst_107 [1] : vector<128x4x128xf32> to vector<128x128xf32>
    %cst_108 = arith.constant 4.000000e+00 : f32
    %85 = vector.broadcast %cst_108 : f32 to vector<128x128xf32>
    %86 = arith.divf %84, %85 : vector<128x128xf32>
    %c0_109 = arith.constant 0 : index
    %c0_110 = arith.constant 0 : index
    %87 = vector.load %arg4[%c0_109, %c0_110] : memref<128x128xf32, #tpu.memory_space<vmem>>, vector<128x128xf32>
    tpu.vector_store %arg4[%c0_109, %c0_110], %86 {strides = array<i32>} : memref<128x128xf32, #tpu.memory_space<vmem>>, vector<128x128xf32>,
    return
  }
}

</mosaic_0001>

<llo_original>
// kernel: tpu_custom_call.1
$region0: #{tpu_custom_call.1}
  #allocation0 [shape = 'u32[]', space=smem, size = 0x4, offset = 0x4, fixed_abs, tag = 'smem constant byte address 0x4 - core index']
  #allocation1 [shape = 'u32[144,128]{1,0:T(1,128)}', space=vmem, size = 0x12000, scoped, tag = 'internal scratch']
  #allocation2 [shape = 'f32[512,9]{1,0:T(8,128)}', space=vmem, size = 0x40000, scoped, tag = 'scratch operand']
  %s0 = inlined_call_operand.vmem [shape: f32[2,18,18,1], index: 0, kind: input, shape index: {}]
  %s1 = inlined_call_operand.vmem [shape: f32[9,128], index: 1, kind: input, shape index: {}]
  %s2 = inlined_call_operand.vmem [shape: f32[1,128], index: 2, kind: input, shape index: {}]
  %s3 = inlined_call_operand.vmem [shape: f32[1,128], index: 3, kind: input, shape index: {}]
  %s4 = inlined_call_operand.hbm [shape: f32[128,128], index: 4, kind: output, shape index: {}]
  %s5 = sld [smem:[#allocation0]]
  $region26: #{tpu_custom_call.1} parent=0
    _
  %s7 = ssub.s32 1, %s5
  %s8 = scalar_select 0, %s7, %s5
  $region1: #{tpu_custom_call.1} parent=0
    #allocation3 [shape = 'u8[65536]{0}', space=vmem, size = 0x10000, scoped, tag = 'output window, operand 0, single buffered']
    #allocation4 [shape = 's32[1]{0}', space=sflag, size = 0x4, scoped, tag = 'scoped memory for tpu_custom_call.1']
    %9 = vsyncpa [#allocation4], 0
    // Predicated region
    $region2: #{tpu_custom_call.1} parent=1 // pred_check
      _
    $region3: #{tpu_custom_call.1} parent=1 // pred_check_branch
      %11 = sbr.rel (0) target = $region5
    $region4: #{tpu_custom_call.1} parent=1 // pred_region
      _
    $region5: #{tpu_custom_call.1} parent=1 // pred_fallthru
      _
    // Predicated region
    $region6: #{tpu_custom_call.1} parent=1 // pred_check
      _
    $region7: #{tpu_custom_call.1} parent=1 // pred_check_branch
      %13 = sbr.rel (0) target = $region9
    $region8: #{tpu_custom_call.1} parent=1 // pred_region
      _
    $region9: #{tpu_custom_call.1} parent=1 // pred_fallthru
      _
    // Predicated region
    $region10: #{tpu_custom_call.1} parent=1 // pred_check
      _
    $region11: #{tpu_custom_call.1} parent=1 // pred_check_branch
      %15 = sbr.rel (0) target = $region13
    $region12: #{tpu_custom_call.1} parent=1 // pred_region
      _
    $region13: #{tpu_custom_call.1} parent=1 // pred_fallthru
      _
    // Predicated region
    $region14: #{tpu_custom_call.1} parent=1 // pred_check
      _
    $region15: #{tpu_custom_call.1} parent=1 // pred_check_branch
      %17 = sbr.rel (0) target = $region17
    $region16: #{tpu_custom_call.1} parent=1 // pred_region
      _
    $region17: #{tpu_custom_call.1} parent=1 // pred_fallthru
      _
    %v18 = vld [vmem:[%s0] sm:$0xff]
    %v19 = vld [vmem:[%s0 + $0x8] sm:$0xff]
    %v20 = vld [vmem:[%s0 + $0x18] sm:$0xff]
    %v21 = vld [vmem:[%s0 + $0x20] sm:$0xff]
    %v22 = vld [vmem:[%s0 + $0x30] sm:$0xff]
    %v23 = vld [vmem:[%s0 + $0x38] sm:$0xff]
    %v24 = vld [vmem:[%s0 + $0x48] sm:$0xff]
    %v25 = vld [vmem:[%s0 + $0x50] sm:$0xff]
    %v26 = vld [vmem:[%s0 + $0x60] sm:$0xff]
    %v27 = vld [vmem:[%s0 + $0x68] sm:$0xff]
    %v28 = vld [vmem:[%s0 + $0x78] sm:$0xff]
    %v29 = vld [vmem:[%s0 + $0x80] sm:$0xff]
    %v30 = vld [vmem:[%s0 + $0x90] sm:$0xff]
    %v31 = vld [vmem:[%s0 + $0x98] sm:$0xff]
    %v32 = vld [vmem:[%s0 + $0xa8] sm:$0xff]
    %v33 = vld [vmem:[%s0 + $0xb0] sm:$0xff]
    %v34 = vld [vmem:[%s0 + $0xc0] sm:$0xff]
    %v35 = vld [vmem:[%s0 + $0xc8] sm:$0xff]
    %v36 = vld [vmem:[%s0 + $0xd8] sm:$0xff]
    %v37 = vld [vmem:[%s0 + $0xe0] sm:$0xff]
    %v38 = vld [vmem:[%s0 + $0xf0] sm:$0xff]
    %v39 = vld [vmem:[%s0 + $0xf8] sm:$0xff]
    %v40 = vld [vmem:[%s0 + $0x108] sm:$0xff]
    %v41 = vld [vmem:[%s0 + $0x110] sm:$0xff]
    %v42 = vld [vmem:[%s0 + $0x120] sm:$0xff]
    %v43 = vld [vmem:[%s0 + $0x128] sm:$0xff]
    %v44 = vld [vmem:[%s0 + $0x138] sm:$0xff]
    %v45 = vld [vmem:[%s0 + $0x140] sm:$0xff]
    %v46 = vld [vmem:[%s0 + $0x150] sm:$0xff]
    %v47 = vld [vmem:[%s0 + $0x158] sm:$0xff]
    %v48 = vld [vmem:[%s0 + $0x168] sm:$0xff]
    %v49 = vld [vmem:[%s0 + $0x170] sm:$0xff]
    %vm50 = vcmask 7168
    %51 = vst.msk [vmem:[#allocation2] sm:$0xff] %vm50, %v18
    %52 = vst.msk [vmem:[#allocation2 + $0x8] sm:$0xff] %vm50, %v19
    %53 = vst.msk [vmem:[#allocation2 + $0x10] sm:$0xff] %vm50, %v20
    %54 = vst.msk [vmem:[#allocation2 + $0x18] sm:$0xff] %vm50, %v21
    %55 = vst.msk [vmem:[#allocation2 + $0x20] sm:$0xff] %vm50, %v22
    %56 = vst.msk [vmem:[#allocation2 + $0x28] sm:$0xff] %vm50, %v23
    %57 = vst.msk [vmem:[#allocation2 + $0x30] sm:$0xff] %vm50, %v24
    %58 = vst.msk [vmem:[#allocation2 + $0x38] sm:$0xff] %vm50, %v25
    %59 = vst.msk [vmem:[#allocation2 + $0x40] sm:$0xff] %vm50, %v26
    %60 = vst.msk [vmem:[#allocation2 + $0x48] sm:$0xff] %vm50, %v27
    %61 = vst.msk [vmem:[#allocation2 + $0x50] sm:$0xff] %vm50, %v28
    %62 = vst.msk [vmem:[#allocation2 + $0x58] sm:$0xff] %vm50, %v29
    %63 = vst.msk [vmem:[#allocation2 + $0x60] sm:$0xff] %vm50, %v30
    %64 = vst.msk [vmem:[#allocation2 + $0x68] sm:$0xff] %vm50, %v31
    %65 = vst.msk [vmem:[#allocation2 + $0x70] sm:$0xff] %vm50, %v32
    %66 = vst.msk [vmem:[#allocation2 + $0x78] sm:$0xff] %vm50, %v33
    %67 = vst.msk [vmem:[#allocation2 + $0x80] sm:$0xff] %vm50, %v34
    %68 = vst.msk [vmem:[#allocation2 + $0x88] sm:$0xff] %vm50, %v35
    %69 = vst.msk [vmem:[#allocation2 + $0x90] sm:$0xff] %vm50, %v36
    %70 = vst.msk [vmem:[#allocation2 + $0x98] sm:$0xff] %vm50, %v37
    %71 = vst.msk [vmem:[#allocation2 + $0xa0] sm:$0xff] %vm50, %v38
    %72 = vst.msk [vmem:[#allocation2 + $0xa8] sm:$0xff] %vm50, %v39
    %73 = vst.msk [vmem:[#allocation2 + $0xb0] sm:$0xff] %vm50, %v40
    %74 = vst.msk [vmem:[#allocation2 + $0xb8] sm:$0xff] %vm50, %v41
    %75 = vst.msk [vmem:[#allocation2 + $0xc0] sm:$0xff] %vm50, %v42
    %76 = vst.msk [vmem:[#allocation2 + $0xc8] sm:$0xff] %vm50, %v43
    %77 = vst.msk [vmem:[#allocation2 + $0xd0] sm:$0xff] %vm50, %v44
    %78 = vst.msk [vmem:[#allocation2 + $0xd8] sm:$0xff] %vm50, %v45
    %79 = vst.msk [vmem:[#allocation2 + $0xe0] sm:$0xff] %vm50, %v46
    %80 = vst.msk [vmem:[#allocation2 + $0xe8] sm:$0xff] %vm50, %v47
    %81 = vst.msk [vmem:[#allocation2 + $0xf0] sm:$0xff] %vm50, %v48
    %82 = vst.msk [vmem:[#allocation2 + $0xf8] sm:$0xff] %vm50, %v49
    %v83 = vld [vmem:[%s0 + $0x1] sm:$0xff]
    %v84 = vld [vmem:[%s0 + $0x9] sm:$0xff]
    %v85 = vld [vmem:[%s0 + $0x19] sm:$0xff]
    %v86 = vld [vmem:[%s0 + $0x21] sm:$0xff]
    %v87 = vld [vmem:[%s0 + $0x31] sm:$0xff]
    %v88 = vld [vmem:[%s0 + $0x39] sm:$0xff]
    %v89 = vld [vmem:[%s0 + $0x49] sm:$0xff]
    %v90 = vld [vmem:[%s0 + $0x51] sm:$0xff]
    %v91 = vld [vmem:[%s0 + $0x61] sm:$0xff]
    %v92 = vld [vmem:[%s0 + $0x69] sm:$0xff]
    %v93 = vld [vmem:[%s0 + $0x79] sm:$0xff]
    %v94 = vld [vmem:[%s0 + $0x81] sm:$0xff]
    %v95 = vld [vmem:[%s0 + $0x91] sm:$0xff]
    %v96 = vld [vmem:[%s0 + $0x99] sm:$0xff]
    %v97 = vld [vmem:[%s0 + $0xa9] sm:$0xff]
    %v98 = vld [vmem:[%s0 + $0xb1] sm:$0xff]
    %v99 = vld [vmem:[%s0 + $0xc1] sm:$0xff]
    %v100 = vld [vmem:[%s0 + $0xc9] sm:$0xff]
    %v101 = vld [vmem:[%s0 + $0xd9] sm:$0xff]
    %v102 = vld [vmem:[%s0 + $0xe1] sm:$0xff]
    %v103 = vld [vmem:[%s0 + $0xf1] sm:$0xff]
    %v104 = vld [vmem:[%s0 + $0xf9] sm:$0xff]
    %v105 = vld [vmem:[%s0 + $0x109] sm:$0xff]
    %v106 = vld [vmem:[%s0 + $0x111] sm:$0xff]
    %v107 = vld [vmem:[%s0 + $0x121] sm:$0xff]
    %v108 = vld [vmem:[%s0 + $0x129] sm:$0xff]
    %v109 = vld [vmem:[%s0 + $0x139] sm:$0xff]
    %v110 = vld [vmem:[%s0 + $0x141] sm:$0xff]
    %v111 = vld [vmem:[%s0 + $0x151] sm:$0xff]
    %v112 = vld [vmem:[%s0 + $0x159] sm:$0xff]
    %v113 = vld [vmem:[%s0 + $0x169] sm:$0xff]
    %v114 = vld [vmem:[%s0 + $0x171] sm:$0xff]
    %147 = vrot.lane.b32.xlu0 %v83, 1
    %v148 = vpop.permute.xlu0 %147
    %149 = vrot.lane.b32.xlu0 %v84, 1
    %v150 = vpop.permute.xlu0 %149
    %151 = vrot.lane.b32.xlu0 %v85, 1
    %v152 = vpop.permute.xlu0 %151
    %153 = vrot.lane.b32.xlu0 %v86, 1
    %v154 = vpop.permute.xlu0 %153
    %155 = vrot.lane.b32.xlu0 %v87, 1
    %v156 = vpop.permute.xlu0 %155
    %157 = vrot.lane.b32.xlu0 %v88, 1
    %v158 = vpop.permute.xlu0 %157
    %159 = vrot.lane.b32.xlu0 %v89, 1
    %v160 = vpop.permute.xlu0 %159
    %161 = vrot.lane.b32.xlu0 %v90, 1
    %v162 = vpop.permute.xlu0 %161
    %163 = vrot.lane.b32.xlu0 %v91, 1
    %v164 = vpop.permute.xlu0 %163
    %165 = vrot.lane.b32.xlu0 %v92, 1
    %v166 = vpop.permute.xlu0 %165
    %167 = vrot.lane.b32.xlu0 %v93, 1
    %v168 = vpop.permute.xlu0 %167
    %169 = vrot.lane.b32.xlu0 %v94, 1
    %v170 = vpop.permute.xlu0 %169
    %171 = vrot.lane.b32.xlu0 %v95, 1
    %v172 = vpop.permute.xlu0 %171
    %173 = vrot.lane.b32.xlu0 %v96, 1
    %v174 = vpop.permute.xlu0 %173
    %175 = vrot.lane.b32.xlu0 %v97, 1
    %v176 = vpop.permute.xlu0 %175
    %177 = vrot.lane.b32.xlu0 %v98, 1
    %v178 = vpop.permute.xlu0 %177
    %179 = vrot.lane.b32.xlu0 %v99, 1
    %v180 = vpop.permute.xlu0 %179
    %181 = vrot.lane.b32.xlu0 %v100, 1
    %v182 = vpop.permute.xlu0 %181
    %183 = vrot.lane.b32.xlu0 %v101, 1
    %v184 = vpop.permute.xlu0 %183
    %185 = vrot.lane.b32.xlu0 %v102, 1
    %v186 = vpop.permute.xlu0 %185
    %187 = vrot.lane.b32.xlu0 %v103, 1
    %v188 = vpop.permute.xlu0 %187
    %189 = vrot.lane.b32.xlu0 %v104, 1
    %v190 = vpop.permute.xlu0 %189
    %191 = vrot.lane.b32.xlu0 %v105, 1
    %v192 = vpop.permute.xlu0 %191
    %193 = vrot.lane.b32.xlu0 %v106, 1
    %v194 = vpop.permute.xlu0 %193
    %195 = vrot.lane.b32.xlu0 %v107, 1
    %v196 = vpop.permute.xlu0 %195
    %197 = vrot.lane.b32.xlu0 %v108, 1
    %v198 = vpop.permute.xlu0 %197
    %199 = vrot.lane.b32.xlu0 %v109, 1
    %v200 = vpop.permute.xlu0 %199
    %201 = vrot.lane.b32.xlu0 %v110, 1
    %v202 = vpop.permute.xlu0 %201
    %203 = vrot.lane.b32.xlu0 %v111, 1
    %v204 = vpop.permute.xlu0 %203
    %205 = vrot.lane.b32.xlu0 %v112, 1
    %v206 = vpop.permute.xlu0 %205
    %207 = vrot.lane.b32.xlu0 %v113, 1
    %v208 = vpop.permute.xlu0 %207
    %209 = vrot.lane.b32.xlu0 %v114, 1
    %v210 = vpop.permute.xlu0 %209
    %vm243 = vcmask 15368
    %244 = vst.msk [vmem:[#allocation2] sm:$0xff] %vm243, %v148
    %245 = vst.msk [vmem:[#allocation2 + $0x8] sm:$0xff] %vm243, %v150
    %246 = vst.msk [vmem:[#allocation2 + $0x10] sm:$0xff] %vm243, %v152
    %247 = vst.msk [vmem:[#allocation2 + $0x18] sm:$0xff] %vm243, %v154
    %248 = vst.msk [vmem:[#allocation2 + $0x20] sm:$0xff] %vm243, %v156
    %249 = vst.msk [vmem:[#allocation2 + $0x28] sm:$0xff] %vm243, %v158
    %250 = vst.msk [vmem:[#allocation2 + $0x30] sm:$0xff] %vm243, %v160
    %251 = vst.msk [vmem:[#allocation2 + $0x38] sm:$0xff] %vm243, %v162
    %252 = vst.msk [vmem:[#allocation2 + $0x40] sm:$0xff] %vm243, %v164
    %253 = vst.msk [vmem:[#allocation2 + $0x48] sm:$0xff] %vm243, %v166
    %254 = vst.msk [vmem:[#allocation2 + $0x50] sm:$0xff] %vm243, %v168
    %255 = vst.msk [vmem:[#allocation2 + $0x58] sm:$0xff] %vm243, %v170
    %256 = vst.msk [vmem:[#allocation2 + $0x60] sm:$0xff] %vm243, %v172
    %257 = vst.msk [vmem:[#allocation2 + $0x68] sm:$0xff] %vm243, %v174
    %258 = vst.msk [vmem:[#allocation2 + $0x70] sm:$0xff] %vm243, %v176
    %259 = vst.msk [vmem:[#allocation2 + $0x78] sm:$0xff] %vm243, %v178
    %260 = vst.msk [vmem:[#allocation2 + $0x80] sm:$0xff] %vm243, %v180
    %261 = vst.msk [vmem:[#allocation2 + $0x88] sm:$0xff] %vm243, %v182
    %262 = vst.msk [vmem:[#allocation2 + $0x90] sm:$0xff] %vm243, %v184
    %263 = vst.msk [vmem:[#allocation2 + $0x98] sm:$0xff] %vm243, %v186
    %264 = vst.msk [vmem:[#allocation2 + $0xa0] sm:$0xff] %vm243, %v188
    %265 = vst.msk [vmem:[#allocation2 + $0xa8] sm:$0xff] %vm243, %v190
    %266 = vst.msk [vmem:[#allocation2 + $0xb0] sm:$0xff] %vm243, %v192
    %267 = vst.msk [vmem:[#allocation2 + $0xb8] sm:$0xff] %vm243, %v194
    %268 = vst.msk [vmem:[#allocation2 + $0xc0] sm:$0xff] %vm243, %v196
    %269 = vst.msk [vmem:[#allocation2 + $0xc8] sm:$0xff] %vm243, %v198
    %270 = vst.msk [vmem:[#allocation2 + $0xd0] sm:$0xff] %vm243, %v200
    %271 = vst.msk [vmem:[#allocation2 + $0xd8] sm:$0xff] %vm243, %v202
    %272 = vst.msk [vmem:[#allocation2 + $0xe0] sm:$0xff] %vm243, %v204
    %273 = vst.msk [vmem:[#allocation2 + $0xe8] sm:$0xff] %vm243, %v206
    %274 = vst.msk [vmem:[#allocation2 + $0xf0] sm:$0xff] %vm243, %v208
    %275 = vst.msk [vmem:[#allocation2 + $0xf8] sm:$0xff] %vm243, %v210
    %v276 = vld [vmem:[%s0 + $0x2] sm:$0xff]
    %v277 = vld [vmem:[%s0 + $0xa] sm:$0xff]
    %v278 = vld [vmem:[%s0 + $0x1a] sm:$0xff]
    %v279 = vld [vmem:[%s0 + $0x22] sm:$0xff]
    %v280 = vld [vmem:[%s0 + $0x32] sm:$0xff]
    %v281 = vld [vmem:[%s0 + $0x3a] sm:$0xff]
    %v282 = vld [vmem:[%s0 + $0x4a] sm:$0xff]
    %v283 = vld [vmem:[%s0 + $0x52] sm:$0xff]
    %v284 = vld [vmem:[%s0 + $0x62] sm:$0xff]
    %v285 = vld [vmem:[%s0 + $0x6a] sm:$0xff]
    %v286 = vld [vmem:[%s0 + $0x7a] sm:$0xff]
    %v287 = vld [vmem:[%s0 + $0x82] sm:$0xff]
    %v288 = vld [vmem:[%s0 + $0x92] sm:$0xff]
    %v289 = vld [vmem:[%s0 + $0x9a] sm:$0xff]
    %v290 = vld [vmem:[%s0 + $0xaa] sm:$0xff]
    %v291 = vld [vmem:[%s0 + $0xb2] sm:$0xff]
    %v292 = vld [vmem:[%s0 + $0xc2] sm:$0xff]
    %v293 = vld [vmem:[%s0 + $0xca] sm:$0xff]
    %v294 = vld [vmem:[%s0 + $0xda] sm:$0xff]
    %v295 = vld [vmem:[%s0 + $0xe2] sm:$0xff]
    %v296 = vld [vmem:[%s0 + $0xf2] sm:$0xff]
    %v297 = vld [vmem:[%s0 + $0xfa] sm:$0xff]
    %v298 = vld [vmem:[%s0 + $0x10a] sm:$0xff]
    %v299 = vld [vmem:[%s0 + $0x112] sm:$0xff]
    %v300 = vld [vmem:[%s0 + $0x122] sm:$0xff]
    %v301 = vld [vmem:[%s0 + $0x12a] sm:$0xff]
    %v302 = vld [vmem:[%s0 + $0x13a] sm:$0xff]
    %v303 = vld [vmem:[%s0 + $0x142] sm:$0xff]
    %v304 = vld [vmem:[%s0 + $0x152] sm:$0xff]
    %v305 = vld [vmem:[%s0 + $0x15a] sm:$0xff]
    %v306 = vld [vmem:[%s0 + $0x16a] sm:$0xff]
    %v307 = vld [vmem:[%s0 + $0x172] sm:$0xff]
    %340 = vrot.lane.b32.xlu0 %v276, 2
    %v341 = vpop.permute.xlu0 %340
    %342 = vrot.lane.b32.xlu0 %v277, 2
    %v343 = vpop.permute.xlu0 %342
    %344 = vrot.lane.b32.xlu0 %v278, 2
    %v345 = vpop.permute.xlu0 %344
    %346 = vrot.lane.b32.xlu0 %v279, 2
    %v347 = vpop.permute.xlu0 %346
    %348 = vrot.lane.b32.xlu0 %v280, 2
    %v349 = vpop.permute.xlu0 %348
    %350 = vrot.lane.b32.xlu0 %v281, 2
    %v351 = vpop.permute.xlu0 %350
    %352 = vrot.lane.b32.xlu0 %v282, 2
    %v353 = vpop.permute.xlu0 %352
    %354 = vrot.lane.b32.xlu0 %v283, 2
    %v355 = vpop.permute.xlu0 %354
    %356 = vrot.lane.b32.xlu0 %v284, 2
    %v357 = vpop.permute.xlu0 %356
    %358 = vrot.lane.b32.xlu0 %v285, 2
    %v359 = vpop.permute.xlu0 %358
    %360 = vrot.lane.b32.xlu0 %v286, 2
    %v361 = vpop.permute.xlu0 %360
    %362 = vrot.lane.b32.xlu0 %v287, 2
    %v363 = vpop.permute.xlu0 %362
    %364 = vrot.lane.b32.xlu0 %v288, 2
    %v365 = vpop.permute.xlu0 %364
    %366 = vrot.lane.b32.xlu0 %v289, 2
    %v367 = vpop.permute.xlu0 %366
    %368 = vrot.lane.b32.xlu0 %v290, 2
    %v369 = vpop.permute.xlu0 %368
    %370 = vrot.lane.b32.xlu0 %v291, 2
    %v371 = vpop.permute.xlu0 %370
    %372 = vrot.lane.b32.xlu0 %v292, 2
    %v373 = vpop.permute.xlu0 %372
    %374 = vrot.lane.b32.xlu0 %v293, 2
    %v375 = vpop.permute.xlu0 %374
    %376 = vrot.lane.b32.xlu0 %v294, 2
    %v377 = vpop.permute.xlu0 %376
    %378 = vrot.lane.b32.xlu0 %v295, 2
    %v379 = vpop.permute.xlu0 %378
    %380 = vrot.lane.b32.xlu0 %v296, 2
    %v381 = vpop.permute.xlu0 %380
    %382 = vrot.lane.b32.xlu0 %v297, 2
    %v383 = vpop.permute.xlu0 %382
    %384 = vrot.lane.b32.xlu0 %v298, 2
    %v385 = vpop.permute.xlu0 %384
    %386 = vrot.lane.b32.xlu0 %v299, 2
    %v387 = vpop.permute.xlu0 %386
    %388 = vrot.lane.b32.xlu0 %v300, 2
    %v389 = vpop.permute.xlu0 %388
    %390 = vrot.lane.b32.xlu0 %v301, 2
    %v391 = vpop.permute.xlu0 %390
    %392 = vrot.lane.b32.xlu0 %v302, 2
    %v393 = vpop.permute.xlu0 %392
    %394 = vrot.lane.b32.xlu0 %v303, 2
    %v395 = vpop.permute.xlu0 %394
    %396 = vrot.lane.b32.xlu0 %v304, 2
    %v397 = vpop.permute.xlu0 %396
    %398 = vrot.lane.b32.xlu0 %v305, 2
    %v399 = vpop.permute.xlu0 %398
    %400 = vrot.lane.b32.xlu0 %v306, 2
    %v401 = vpop.permute.xlu0 %400
    %402 = vrot.lane.b32.xlu0 %v307, 2
    %v403 = vpop.permute.xlu0 %402
    %vm436 = vcmask 23568
    %437 = vst.msk [vmem:[#allocation2] sm:$0xff] %vm436, %v341
    %438 = vst.msk [vmem:[#allocation2 + $0x8] sm:$0xff] %vm436, %v343
    %439 = vst.msk [vmem:[#allocation2 + $0x10] sm:$0xff] %vm436, %v345
    %440 = vst.msk [vmem:[#allocation2 + $0x18] sm:$0xff] %vm436, %v347
    %441 = vst.msk [vmem:[#allocation2 + $0x20] sm:$0xff] %vm436, %v349
    %442 = vst.msk [vmem:[#allocation2 + $0x28] sm:$0xff] %vm436, %v351
    %443 = vst.msk [vmem:[#allocation2 + $0x30] sm:$0xff] %vm436, %v353
    %444 = vst.msk [vmem:[#allocation2 + $0x38] sm:$0xff] %vm436, %v355
    %445 = vst.msk [vmem:[#allocation2 + $0x40] sm:$0xff] %vm436, %v357
    %446 = vst.msk [vmem:[#allocation2 + $0x48] sm:$0xff] %vm436, %v359
    %447 = vst.msk [vmem:[#allocation2 + $0x50] sm:$0xff] %vm436, %v361
    %448 = vst.msk [vmem:[#allocation2 + $0x58] sm:$0xff] %vm436, %v363
    %449 = vst.msk [vmem:[#allocation2 + $0x60] sm:$0xff] %vm436, %v365
    %450 = vst.msk [vmem:[#allocation2 + $0x68] sm:$0xff] %vm436, %v367
    %451 = vst.msk [vmem:[#allocation2 + $0x70] sm:$0xff] %vm436, %v369
    %452 = vst.msk [vmem:[#allocation2 + $0x78] sm:$0xff] %vm436, %v371
    %453 = vst.msk [vmem:[#allocation2 + $0x80] sm:$0xff] %vm436, %v373
    %454 = vst.msk [vmem:[#allocation2 + $0x88] sm:$0xff] %vm436, %v375
    %455 = vst.msk [vmem:[#allocation2 + $0x90] sm:$0xff] %vm436, %v377
    %456 = vst.msk [vmem:[#allocation2 + $0x98] sm:$0xff] %vm436, %v379
    %457 = vst.msk [vmem:[#allocation2 + $0xa0] sm:$0xff] %vm436, %v381
    %458 = vst.msk [vmem:[#allocation2 + $0xa8] sm:$0xff] %vm436, %v383
    %459 = vst.msk [vmem:[#allocation2 + $0xb0] sm:$0xff] %vm436, %v385
    %460 = vst.msk [vmem:[#allocation2 + $0xb8] sm:$0xff] %vm436, %v387
    %461 = vst.msk [vmem:[#allocation2 + $0xc0] sm:$0xff] %vm436, %v389
    %462 = vst.msk [vmem:[#allocation2 + $0xc8] sm:$0xff] %vm436, %v391
    %463 = vst.msk [vmem:[#allocation2 + $0xd0] sm:$0xff] %vm436, %v393
    %464 = vst.msk [vmem:[#allocation2 + $0xd8] sm:$0xff] %vm436, %v395
    %465 = vst.msk [vmem:[#allocation2 + $0xe0] sm:$0xff] %vm436, %v397
    %466 = vst.msk [vmem:[#allocation2 + $0xe8] sm:$0xff] %vm436, %v399
    %467 = vst.msk [vmem:[#allocation2 + $0xf0] sm:$0xff] %vm436, %v401
    %468 = vst.msk [vmem:[#allocation2 + $0xf8] sm:$0xff] %vm436, %v403
    %s469 = scalar_lea.vmem %s0, 24
    %v470 = vld [vmem:[%s469] sm:$0xff]
    %v471 = vld [vmem:[%s469 + $0x8] sm:$0xff]
    %v472 = vld [vmem:[%s469 + $0x18] sm:$0xff]
    %v473 = vld [vmem:[%s469 + $0x20] sm:$0xff]
    %v474 = vld [vmem:[%s469 + $0x30] sm:$0xff]
    %v475 = vld [vmem:[%s469 + $0x38] sm:$0xff]
    %v476 = vld [vmem:[%s469 + $0x48] sm:$0xff]
    %v477 = vld [vmem:[%s469 + $0x50] sm:$0xff]
    %v478 = vld [vmem:[%s469 + $0x60] sm:$0xff]
    %v479 = vld [vmem:[%s469 + $0x68] sm:$0xff]
    %v480 = vld [vmem:[%s469 + $0x78] sm:$0xff]
    %v481 = vld [vmem:[%s469 + $0x80] sm:$0xff]
    %v482 = vld [vmem:[%s469 + $0x90] sm:$0xff]
    %v483 = vld [vmem:[%s469 + $0x98] sm:$0xff]
    %v484 = vld [vmem:[%s469 + $0xa8] sm:$0xff]
    %v485 = vld [vmem:[%s469 + $0xb0] sm:$0xff]
    %v486 = vld [vmem:[%s469 + $0xc0] sm:$0xff]
    %v487 = vld [vmem:[%s469 + $0xc8] sm:$0xff]
    %v488 = vld [vmem:[%s469 + $0xd8] sm:$0xff]
    %v489 = vld [vmem:[%s469 + $0xe0] sm:$0xff]
    %v490 = vld [vmem:[%s469 + $0xf0] sm:$0xff]
    %v491 = vld [vmem:[%s469 + $0xf8] sm:$0xff]
    %v492 = vld [vmem:[%s469 + $0x108] sm:$0xff]
    %v493 = vld [vmem:[%s469 + $0x110] sm:$0xff]
    %v494 = vld [vmem:[%s469 + $0x120] sm:$0xff]
    %v495 = vld [vmem:[%s469 + $0x128] sm:$0xff]
    %v496 = vld [vmem:[%s469 + $0x138] sm:$0xff]
    %v497 = vld [vmem:[%s469 + $0x140] sm:$0xff]
    %v498 = vld [vmem:[%s469 + $0x150] sm:$0xff]
    %v499 = vld [vmem:[%s469 + $0x158] sm:$0xff]
    %v500 = vld [vmem:[%s469 + $0x168] sm:$0xff]
    %v501 = vld [vmem:[%s469 + $0x170] sm:$0xff]
    %534 = vrot.lane.b32.xlu0 %v470, 3
    %v535 = vpop.permute.xlu0 %534
    %536 = vrot.lane.b32.xlu0 %v471, 3
    %v537 = vpop.permute.xlu0 %536
    %538 = vrot.lane.b32.xlu0 %v472, 3
    %v539 = vpop.permute.xlu0 %538
    %540 = vrot.lane.b32.xlu0 %v473, 3
    %v541 = vpop.permute.xlu0 %540
    %542 = vrot.lane.b32.xlu0 %v474, 3
    %v543 = vpop.permute.xlu0 %542
    %544 = vrot.lane.b32.xlu0 %v475, 3
    %v545 = vpop.permute.xlu0 %544
    %546 = vrot.lane.b32.xlu0 %v476, 3
    %v547 = vpop.permute.xlu0 %546
    %548 = vrot.lane.b32.xlu0 %v477, 3
    %v549 = vpop.permute.xlu0 %548
    %550 = vrot.lane.b32.xlu0 %v478, 3
    %v551 = vpop.permute.xlu0 %550
    %552 = vrot.lane.b32.xlu0 %v479, 3
    %v553 = vpop.permute.xlu0 %552
    %554 = vrot.lane.b32.xlu0 %v480, 3
    %v555 = vpop.permute.xlu0 %554
    %556 = vrot.lane.b32.xlu0 %v481, 3
    %v557 = vpop.permute.xlu0 %556
    %558 = vrot.lane.b32.xlu0 %v482, 3
    %v559 = vpop.permute.xlu0 %558
    %560 = vrot.lane.b32.xlu0 %v483, 3
    %v561 = vpop.permute.xlu0 %560
    %562 = vrot.lane.b32.xlu0 %v484, 3
    %v563 = vpop.permute.xlu0 %562
    %564 = vrot.lane.b32.xlu0 %v485, 3
    %v565 = vpop.permute.xlu0 %564
    %566 = vrot.lane.b32.xlu0 %v486, 3
    %v567 = vpop.permute.xlu0 %566
    %568 = vrot.lane.b32.xlu0 %v487, 3
    %v569 = vpop.permute.xlu0 %568
    %570 = vrot.lane.b32.xlu0 %v488, 3
    %v571 = vpop.permute.xlu0 %570
    %572 = vrot.lane.b32.xlu0 %v489, 3
    %v573 = vpop.permute.xlu0 %572
    %574 = vrot.lane.b32.xlu0 %v490, 3
    %v575 = vpop.permute.xlu0 %574
    %576 = vrot.lane.b32.xlu0 %v491, 3
    %v577 = vpop.permute.xlu0 %576
    %578 = vrot.lane.b32.xlu0 %v492, 3
    %v579 = vpop.permute.xlu0 %578
    %580 = vrot.lane.b32.xlu0 %v493, 3
    %v581 = vpop.permute.xlu0 %580
    %582 = vrot.lane.b32.xlu0 %v494, 3
    %v583 = vpop.permute.xlu0 %582
    %584 = vrot.lane.b32.xlu0 %v495, 3
    %v585 = vpop.permute.xlu0 %584
    %586 = vrot.lane.b32.xlu0 %v496, 3
    %v587 = vpop.permute.xlu0 %586
    %588 = vrot.lane.b32.xlu0 %v497, 3
    %v589 = vpop.permute.xlu0 %588
    %590 = vrot.lane.b32.xlu0 %v498, 3
    %v591 = vpop.permute.xlu0 %590
    %592 = vrot.lane.b32.xlu0 %v499, 3
    %v593 = vpop.permute.xlu0 %592
    %594 = vrot.lane.b32.xlu0 %v500, 3
    %v595 = vpop.permute.xlu0 %594
    %596 = vrot.lane.b32.xlu0 %v501, 3
    %v597 = vpop.permute.xlu0 %596
    %vm630 = vcmask 31768
    %631 = vst.msk [vmem:[#allocation2] sm:$0xff] %vm630, %v535
    %632 = vst.msk [vmem:[#allocation2 + $0x8] sm:$0xff] %vm630, %v537
    %633 = vst.msk [vmem:[#allocation2 + $0x10] sm:$0xff] %vm630, %v539
    %634 = vst.msk [vmem:[#allocation2 + $0x18] sm:$0xff] %vm630, %v541
    %635 = vst.msk [vmem:[#allocation2 + $0x20] sm:$0xff] %vm630, %v543
    %636 = vst.msk [vmem:[#allocation2 + $0x28] sm:$0xff] %vm630, %v545
    %637 = vst.msk [vmem:[#allocation2 + $0x30] sm:$0xff] %vm630, %v547
    %638 = vst.msk [vmem:[#allocation2 + $0x38] sm:$0xff] %vm630, %v549
    %639 = vst.msk [vmem:[#allocation2 + $0x40] sm:$0xff] %vm630, %v551
    %640 = vst.msk [vmem:[#allocation2 + $0x48] sm:$0xff] %vm630, %v553
    %641 = vst.msk [vmem:[#allocation2 + $0x50] sm:$0xff] %vm630, %v555
    %642 = vst.msk [vmem:[#allocation2 + $0x58] sm:$0xff] %vm630, %v557
    %643 = vst.msk [vmem:[#allocation2 + $0x60] sm:$0xff] %vm630, %v559
    %644 = vst.msk [vmem:[#allocation2 + $0x68] sm:$0xff] %vm630, %v561
    %645 = vst.msk [vmem:[#allocation2 + $0x70] sm:$0xff] %vm630, %v563
    %646 = vst.msk [vmem:[#allocation2 + $0x78] sm:$0xff] %vm630, %v565
    %647 = vst.msk [vmem:[#allocation2 + $0x80] sm:$0xff] %vm630, %v567
    %648 = vst.msk [vmem:[#allocation2 + $0x88] sm:$0xff] %vm630, %v569
    %649 = vst.msk [vmem:[#allocation2 + $0x90] sm:$0xff] %vm630, %v571
    %650 = vst.msk [vmem:[#allocation2 + $0x98] sm:$0xff] %vm630, %v573
    %651 = vst.msk [vmem:[#allocation2 + $0xa0] sm:$0xff] %vm630, %v575
    %652 = vst.msk [vmem:[#allocation2 + $0xa8] sm:$0xff] %vm630, %v577
    %653 = vst.msk [vmem:[#allocation2 + $0xb0] sm:$0xff] %vm630, %v579
    %654 = vst.msk [vmem:[#allocation2 + $0xb8] sm:$0xff] %vm630, %v581
    %655 = vst.msk [vmem:[#allocation2 + $0xc0] sm:$0xff] %vm630, %v583
    %656 = vst.msk [vmem:[#allocation2 + $0xc8] sm:$0xff] %vm630, %v585
    %657 = vst.msk [vmem:[#allocation2 + $0xd0] sm:$0xff] %vm630, %v587
    %658 = vst.msk [vmem:[#allocation2 + $0xd8] sm:$0xff] %vm630, %v589
    %659 = vst.msk [vmem:[#allocation2 + $0xe0] sm:$0xff] %vm630, %v591
    %660 = vst.msk [vmem:[#allocation2 + $0xe8] sm:$0xff] %vm630, %v593
    %661 = vst.msk [vmem:[#allocation2 + $0xf0] sm:$0xff] %vm630, %v595
    %662 = vst.msk [vmem:[#allocation2 + $0xf8] sm:$0xff] %vm630, %v597
    %v663 = vld [vmem:[%s469 + $0x1] sm:$0xff]
    %v664 = vld [vmem:[%s469 + $0x9] sm:$0xff]
    %v665 = vld [vmem:[%s469 + $0x19] sm:$0xff]
    %v666 = vld [vmem:[%s469 + $0x21] sm:$0xff]
    %v667 = vld [vmem:[%s469 + $0x31] sm:$0xff]
    %v668 = vld [vmem:[%s469 + $0x39] sm:$0xff]
    %v669 = vld [vmem:[%s469 + $0x49] sm:$0xff]
    %v670 = vld [vmem:[%s469 + $0x51] sm:$0xff]
    %v671 = vld [vmem:[%s469 + $0x61] sm:$0xff]
    %v672 = vld [vmem:[%s469 + $0x69] sm:$0xff]
    %v673 = vld [vmem:[%s469 + $0x79] sm:$0xff]
    %v674 = vld [vmem:[%s469 + $0x81] sm:$0xff]
    %v675 = vld [vmem:[%s469 + $0x91] sm:$0xff]
    %v676 = vld [vmem:[%s469 + $0x99] sm:$0xff]
    %v677 = vld [vmem:[%s469 + $0xa9] sm:$0xff]
    %v678 = vld [vmem:[%s469 + $0xb1] sm:$0xff]
    %v679 = vld [vmem:[%s469 + $0xc1] sm:$0xff]
    %v680 = vld [vmem:[%s469 + $0xc9] sm:$0xff]
    %v681 = vld [vmem:[%s469 + $0xd9] sm:$0xff]
    %v682 = vld [vmem:[%s469 + $0xe1] sm:$0xff]
    %v683 = vld [vmem:[%s469 + $0xf1] sm:$0xff]
    %v684 = vld [vmem:[%s469 + $0xf9] sm:$0xff]
    %v685 = vld [vmem:[%s469 + $0x109] sm:$0xff]
    %v686 = vld [vmem:[%s469 + $0x111] sm:$0xff]
    %v687 = vld [vmem:[%s469 + $0x121] sm:$0xff]
    %v688 = vld [vmem:[%s469 + $0x129] sm:$0xff]
    %v689 = vld [vmem:[%s469 + $0x139] sm:$0xff]
    %v690 = vld [vmem:[%s469 + $0x141] sm:$0xff]
    %v691 = vld [vmem:[%s469 + $0x151] sm:$0xff]
    %v692 = vld [vmem:[%s469 + $0x159] sm:$0xff]
    %v693 = vld [vmem:[%s469 + $0x169] sm:$0xff]
    %v694 = vld [vmem:[%s469 + $0x171] sm:$0xff]
    %727 = vrot.lane.b32.xlu0 %v663, 4
    %v728 = vpop.permute.xlu0 %727
    %729 = vrot.lane.b32.xlu0 %v664, 4
    %v730 = vpop.permute.xlu0 %729
    %731 = vrot.lane.b32.xlu0 %v665, 4
    %v732 = vpop.permute.xlu0 %731
    %733 = vrot.lane.b32.xlu0 %v666, 4
    %v734 = vpop.permute.xlu0 %733
    %735 = vrot.lane.b32.xlu0 %v667, 4
    %v736 = vpop.permute.xlu0 %735
    %737 = vrot.lane.b32.xlu0 %v668, 4
    %v738 = vpop.permute.xlu0 %737
    %739 = vrot.lane.b32.xlu0 %v669, 4
    %v740 = vpop.permute.xlu0 %739
    %741 = vrot.lane.b32.xlu0 %v670, 4
    %v742 = vpop.permute.xlu0 %741
    %743 = vrot.lane.b32.xlu0 %v671, 4
    %v744 = vpop.permute.xlu0 %743
    %745 = vrot.lane.b32.xlu0 %v672, 4
    %v746 = vpop.permute.xlu0 %745
    %747 = vrot.lane.b32.xlu0 %v673, 4
    %v748 = vpop.permute.xlu0 %747
    %749 = vrot.lane.b32.xlu0 %v674, 4
    %v750 = vpop.permute.xlu0 %749
    %751 = vrot.lane.b32.xlu0 %v675, 4
    %v752 = vpop.permute.xlu0 %751
    %753 = vrot.lane.b32.xlu0 %v676, 4
    %v754 = vpop.permute.xlu0 %753
    %755 = vrot.lane.b32.xlu0 %v677, 4
    %v756 = vpop.permute.xlu0 %755
    %757 = vrot.lane.b32.xlu0 %v678, 4
    %v758 = vpop.permute.xlu0 %757
    %759 = vrot.lane.b32.xlu0 %v679, 4
    %v760 = vpop.permute.xlu0 %759
    %761 = vrot.lane.b32.xlu0 %v680, 4
    %v762 = vpop.permute.xlu0 %761
    %763 = vrot.lane.b32.xlu0 %v681, 4
    %v764 = vpop.permute.xlu0 %763
    %765 = vrot.lane.b32.xlu0 %v682, 4
    %v766 = vpop.permute.xlu0 %765
    %767 = vrot.lane.b32.xlu0 %v683, 4
    %v768 = vpop.permute.xlu0 %767
    %769 = vrot.lane.b32.xlu0 %v684, 4
    %v770 = vpop.permute.xlu0 %769
    %771 = vrot.lane.b32.xlu0 %v685, 4
    %v772 = vpop.permute.xlu0 %771
    %773 = vrot.lane.b32.xlu0 %v686, 4
    %v774 = vpop.permute.xlu0 %773
    %775 = vrot.lane.b32.xlu0 %v687, 4
    %v776 = vpop.permute.xlu0 %775
    %777 = vrot.lane.b32.xlu0 %v688, 4
    %v778 = vpop.permute.xlu0 %777
    %779 = vrot.lane.b32.xlu0 %v689, 4
    %v780 = vpop.permute.xlu0 %779
    %781 = vrot.lane.b32.xlu0 %v690, 4
    %v782 = vpop.permute.xlu0 %781
    %783 = vrot.lane.b32.xlu0 %v691, 4
    %v784 = vpop.permute.xlu0 %783
    %785 = vrot.lane.b32.xlu0 %v692, 4
    %v786 = vpop.permute.xlu0 %785
    %787 = vrot.lane.b32.xlu0 %v693, 4
    %v788 = vpop.permute.xlu0 %787
    %789 = vrot.lane.b32.xlu0 %v694, 4
    %v790 = vpop.permute.xlu0 %789
    %vm823 = vcmask 39968
    %824 = vst.msk [vmem:[#allocation2] sm:$0xff] %vm823, %v728
    %825 = vst.msk [vmem:[#allocation2 + $0x8] sm:$0xff] %vm823, %v730
    %826 = vst.msk [vmem:[#allocation2 + $0x10] sm:$0xff] %vm823, %v732
    %827 = vst.msk [vmem:[#allocation2 + $0x18] sm:$0xff] %vm823, %v734
    %828 = vst.msk [vmem:[#allocation2 + $0x20] sm:$0xff] %vm823, %v736
    %829 = vst.msk [vmem:[#allocation2 + $0x28] sm:$0xff] %vm823, %v738
    %830 = vst.msk [vmem:[#allocation2 + $0x30] sm:$0xff] %vm823, %v740
    %831 = vst.msk [vmem:[#allocation2 + $0x38] sm:$0xff] %vm823, %v742
    %832 = vst.msk [vmem:[#allocation2 + $0x40] sm:$0xff] %vm823, %v744
    %833 = vst.msk [vmem:[#allocation2 + $0x48] sm:$0xff] %vm823, %v746
    %834 = vst.msk [vmem:[#allocation2 + $0x50] sm:$0xff] %vm823, %v748
    %835 = vst.msk [vmem:[#allocation2 + $0x58] sm:$0xff] %vm823, %v750
    %836 = vst.msk [vmem:[#allocation2 + $0x60] sm:$0xff] %vm823, %v752
    %837 = vst.msk [vmem:[#allocation2 + $0x68] sm:$0xff] %vm823, %v754
    %838 = vst.msk [vmem:[#allocation2 + $0x70] sm:$0xff] %vm823, %v756
    %839 = vst.msk [vmem:[#allocation2 + $0x78] sm:$0xff] %vm823, %v758
    %840 = vst.msk [vmem:[#allocation2 + $0x80] sm:$0xff] %vm823, %v760
    %841 = vst.msk [vmem:[#allocation2 + $0x88] sm:$0xff] %vm823, %v762
    %842 = vst.msk [vmem:[#allocation2 + $0x90] sm:$0xff] %vm823, %v764
    %843 = vst.msk [vmem:[#allocation2 + $0x98] sm:$0xff] %vm823, %v766
    %844 = vst.msk [vmem:[#allocation2 + $0xa0] sm:$0xff] %vm823, %v768
    %845 = vst.msk [vmem:[#allocation2 + $0xa8] sm:$0xff] %vm823, %v770
    %846 = vst.msk [vmem:[#allocation2 + $0xb0] sm:$0xff] %vm823, %v772
    %847 = vst.msk [vmem:[#allocation2 + $0xb8] sm:$0xff] %vm823, %v774
    %848 = vst.msk [vmem:[#allocation2 + $0xc0] sm:$0xff] %vm823, %v776
    %849 = vst.msk [vmem:[#allocation2 + $0xc8] sm:$0xff] %vm823, %v778
    %850 = vst.msk [vmem:[#allocation2 + $0xd0] sm:$0xff] %vm823, %v780
    %851 = vst.msk [vmem:[#allocation2 + $0xd8] sm:$0xff] %vm823, %v782
    %852 = vst.msk [vmem:[#allocation2 + $0xe0] sm:$0xff] %vm823, %v784
    %853 = vst.msk [vmem:[#allocation2 + $0xe8] sm:$0xff] %vm823, %v786
    %854 = vst.msk [vmem:[#allocation2 + $0xf0] sm:$0xff] %vm823, %v788
    %855 = vst.msk [vmem:[#allocation2 + $0xf8] sm:$0xff] %vm823, %v790
    %v856 = vld [vmem:[%s469 + $0x2] sm:$0xff]
    %v857 = vld [vmem:[%s469 + $0xa] sm:$0xff]
    %v858 = vld [vmem:[%s469 + $0x1a] sm:$0xff]
    %v859 = vld [vmem:[%s469 + $0x22] sm:$0xff]
    %v860 = vld [vmem:[%s469 + $0x32] sm:$0xff]
    %v861 = vld [vmem:[%s469 + $0x3a] sm:$0xff]
    %v862 = vld [vmem:[%s469 + $0x4a] sm:$0xff]
    %v863 = vld [vmem:[%s469 + $0x52] sm:$0xff]
    %v864 = vld [vmem:[%s469 + $0x62] sm:$0xff]
    %v865 = vld [vmem:[%s469 + $0x6a] sm:$0xff]
    %v866 = vld [vmem:[%s469 + $0x7a] sm:$0xff]
    %v867 = vld [vmem:[%s469 + $0x82] sm:$0xff]
    %v868 = vld [vmem:[%s469 + $0x92] sm:$0xff]
    %v869 = vld [vmem:[%s469 + $0x9a] sm:$0xff]
    %v870 = vld [vmem:[%s469 + $0xaa] sm:$0xff]
    %v871 = vld [vmem:[%s469 + $0xb2] sm:$0xff]
    %v872 = vld [vmem:[%s469 + $0xc2] sm:$0xff]
    %v873 = vld [vmem:[%s469 + $0xca] sm:$0xff]
    %v874 = vld [vmem:[%s469 + $0xda] sm:$0xff]
    %v875 = vld [vmem:[%s469 + $0xe2] sm:$0xff]
    %v876 = vld [vmem:[%s469 + $0xf2] sm:$0xff]
    %v877 = vld [vmem:[%s469 + $0xfa] sm:$0xff]
    %v878 = vld [vmem:[%s469 + $0x10a] sm:$0xff]
    %v879 = vld [vmem:[%s469 + $0x112] sm:$0xff]
    %v880 = vld [vmem:[%s469 + $0x122] sm:$0xff]
    %v881 = vld [vmem:[%s469 + $0x12a] sm:$0xff]
    %v882 = vld [vmem:[%s469 + $0x13a] sm:$0xff]
    %v883 = vld [vmem:[%s469 + $0x142] sm:$0xff]
    %v884 = vld [vmem:[%s469 + $0x152] sm:$0xff]
    %v885 = vld [vmem:[%s469 + $0x15a] sm:$0xff]
    %v886 = vld [vmem:[%s469 + $0x16a] sm:$0xff]
    %v887 = vld [vmem:[%s469 + $0x172] sm:$0xff]
    %920 = vrot.lane.b32.xlu0 %v856, 5
    %v921 = vpop.permute.xlu0 %920
    %922 = vrot.lane.b32.xlu0 %v857, 5
    %v923 = vpop.permute.xlu0 %922
    %924 = vrot.lane.b32.xlu0 %v858, 5
    %v925 = vpop.permute.xlu0 %924
    %926 = vrot.lane.b32.xlu0 %v859, 5
    %v927 = vpop.permute.xlu0 %926
    %928 = vrot.lane.b32.xlu0 %v860, 5
    %v929 = vpop.permute.xlu0 %928
    %930 = vrot.lane.b32.xlu0 %v861, 5
    %v931 = vpop.permute.xlu0 %930
    %932 = vrot.lane.b32.xlu0 %v862, 5
    %v933 = vpop.permute.xlu0 %932
    %934 = vrot.lane.b32.xlu0 %v863, 5
    %v935 = vpop.permute.xlu0 %934
    %936 = vrot.lane.b32.xlu0 %v864, 5
    %v937 = vpop.permute.xlu0 %936
    %938 = vrot.lane.b32.xlu0 %v865, 5
    %v939 = vpop.permute.xlu0 %938
    %940 = vrot.lane.b32.xlu0 %v866, 5
    %v941 = vpop.permute.xlu0 %940
    %942 = vrot.lane.b32.xlu0 %v867, 5
    %v943 = vpop.permute.xlu0 %942
    %944 = vrot.lane.b32.xlu0 %v868, 5
    %v945 = vpop.permute.xlu0 %944
    %946 = vrot.lane.b32.xlu0 %v869, 5
    %v947 = vpop.permute.xlu0 %946
    %948 = vrot.lane.b32.xlu0 %v870, 5
    %v949 = vpop.permute.xlu0 %948
    %950 = vrot.lane.b32.xlu0 %v871, 5
    %v951 = vpop.permute.xlu0 %950
    %952 = vrot.lane.b32.xlu0 %v872, 5
    %v953 = vpop.permute.xlu0 %952
    %954 = vrot.lane.b32.xlu0 %v873, 5
    %v955 = vpop.permute.xlu0 %954
    %956 = vrot.lane.b32.xlu0 %v874, 5
    %v957 = vpop.permute.xlu0 %956
    %958 = vrot.lane.b32.xlu0 %v875, 5
    %v959 = vpop.permute.xlu0 %958
    %960 = vrot.lane.b32.xlu0 %v876, 5
    %v961 = vpop.permute.xlu0 %960
    %962 = vrot.lane.b32.xlu0 %v877, 5
    %v963 = vpop.permute.xlu0 %962
    %964 = vrot.lane.b32.xlu0 %v878, 5
    %v965 = vpop.permute.xlu0 %964
    %966 = vrot.lane.b32.xlu0 %v879, 5
    %v967 = vpop.permute.xlu0 %966
    %968 = vrot.lane.b32.xlu0 %v880, 5
    %v969 = vpop.permute.xlu0 %968
    %970 = vrot.lane.b32.xlu0 %v881, 5
    %v971 = vpop.permute.xlu0 %970
    %972 = vrot.lane.b32.xlu0 %v882, 5
    %v973 = vpop.permute.xlu0 %972
    %974 = vrot.lane.b32.xlu0 %v883, 5
    %v975 = vpop.permute.xlu0 %974
    %976 = vrot.lane.b32.xlu0 %v884, 5
    %v977 = vpop.permute.xlu0 %976
    %978 = vrot.lane.b32.xlu0 %v885, 5
    %v979 = vpop.permute.xlu0 %978
    %980 = vrot.lane.b32.xlu0 %v886, 5
    %v981 = vpop.permute.xlu0 %980
    %982 = vrot.lane.b32.xlu0 %v887, 5
    %v983 = vpop.permute.xlu0 %982
    %vm1016 = vcmask 48168
    %1017 = vst.msk [vmem:[#allocation2] sm:$0xff] %vm1016, %v921
    %1018 = vst.msk [vmem:[#allocation2 + $0x8] sm:$0xff] %vm1016, %v923
    %1019 = vst.msk [vmem:[#allocation2 + $0x10] sm:$0xff] %vm1016, %v925
    %1020 = vst.msk [vmem:[#allocation2 + $0x18] sm:$0xff] %vm1016, %v927
    %1021 = vst.msk [vmem:[#allocation2 + $0x20] sm:$0xff] %vm1016, %v929
    %1022 = vst.msk [vmem:[#allocation2 + $0x28] sm:$0xff] %vm1016, %v931
    %1023 = vst.msk [vmem:[#allocation2 + $0x30] sm:$0xff] %vm1016, %v933
    %1024 = vst.msk [vmem:[#allocation2 + $0x38] sm:$0xff] %vm1016, %v935
    %1025 = vst.msk [vmem:[#allocation2 + $0x40] sm:$0xff] %vm1016, %v937
    %1026 = vst.msk [vmem:[#allocation2 + $0x48] sm:$0xff] %vm1016, %v939
    %1027 = vst.msk [vmem:[#allocation2 + $0x50] sm:$0xff] %vm1016, %v941
    %1028 = vst.msk [vmem:[#allocation2 + $0x58] sm:$0xff] %vm1016, %v943
    %1029 = vst.msk [vmem:[#allocation2 + $0x60] sm:$0xff] %vm1016, %v945
    %1030 = vst.msk [vmem:[#allocation2 + $0x68] sm:$0xff] %vm1016, %v947
    %1031 = vst.msk [vmem:[#allocation2 + $0x70] sm:$0xff] %vm1016, %v949
    %1032 = vst.msk [vmem:[#allocation2 + $0x78] sm:$0xff] %vm1016, %v951
    %1033 = vst.msk [vmem:[#allocation2 + $0x80] sm:$0xff] %vm1016, %v953
    %1034 = vst.msk [vmem:[#allocation2 + $0x88] sm:$0xff] %vm1016, %v955
    %1035 = vst.msk [vmem:[#allocation2 + $0x90] sm:$0xff] %vm1016, %v957
    %1036 = vst.msk [vmem:[#allocation2 + $0x98] sm:$0xff] %vm1016, %v959
    %1037 = vst.msk [vmem:[#allocation2 + $0xa0] sm:$0xff] %vm1016, %v961
    %1038 = vst.msk [vmem:[#allocation2 + $0xa8] sm:$0xff] %vm1016, %v963
    %1039 = vst.msk [vmem:[#allocation2 + $0xb0] sm:$0xff] %vm1016, %v965
    %1040 = vst.msk [vmem:[#allocation2 + $0xb8] sm:$0xff] %vm1016, %v967
    %1041 = vst.msk [vmem:[#allocation2 + $0xc0] sm:$0xff] %vm1016, %v969
    %1042 = vst.msk [vmem:[#allocation2 + $0xc8] sm:$0xff] %vm1016, %v971
    %1043 = vst.msk [vmem:[#allocation2 + $0xd0] sm:$0xff] %vm1016, %v973
    %1044 = vst.msk [vmem:[#allocation2 + $0xd8] sm:$0xff] %vm1016, %v975
    %1045 = vst.msk [vmem:[#allocation2 + $0xe0] sm:$0xff] %vm1016, %v977
    %1046 = vst.msk [vmem:[#allocation2 + $0xe8] sm:$0xff] %vm1016, %v979
    %1047 = vst.msk [vmem:[#allocation2 + $0xf0] sm:$0xff] %vm1016, %v981
    %1048 = vst.msk [vmem:[#allocation2 + $0xf8] sm:$0xff] %vm1016, %v983
    %s1049 = scalar_lea.vmem %s0, 48
    %v1050 = vld [vmem:[%s1049] sm:$0xff]
    %v1051 = vld [vmem:[%s1049 + $0x8] sm:$0xff]
    %v1052 = vld [vmem:[%s1049 + $0x18] sm:$0xff]
    %v1053 = vld [vmem:[%s1049 + $0x20] sm:$0xff]
    %v1054 = vld [vmem:[%s1049 + $0x30] sm:$0xff]
    %v1055 = vld [vmem:[%s1049 + $0x38] sm:$0xff]
    %v1056 = vld [vmem:[%s1049 + $0x48] sm:$0xff]
    %v1057 = vld [vmem:[%s1049 + $0x50] sm:$0xff]
    %v1058 = vld [vmem:[%s1049 + $0x60] sm:$0xff]
    %v1059 = vld [vmem:[%s1049 + $0x68] sm:$0xff]
    %v1060 = vld [vmem:[%s1049 + $0x78] sm:$0xff]
    %v1061 = vld [vmem:[%s1049 + $0x80] sm:$0xff]
    %v1062 = vld [vmem:[%s1049 + $0x90] sm:$0xff]
    %v1063 = vld [vmem:[%s1049 + $0x98] sm:$0xff]
    %v1064 = vld [vmem:[%s1049 + $0xa8] sm:$0xff]
    %v1065 = vld [vmem:[%s1049 + $0xb0] sm:$0xff]
    %v1066 = vld [vmem:[%s1049 + $0xc0] sm:$0xff]
    %v1067 = vld [vmem:[%s1049 + $0xc8] sm:$0xff]
    %v1068 = vld [vmem:[%s1049 + $0xd8] sm:$0xff]
    %v1069 = vld [vmem:[%s1049 + $0xe0] sm:$0xff]
    %v1070 = vld [vmem:[%s1049 + $0xf0] sm:$0xff]
    %v1071 = vld [vmem:[%s1049 + $0xf8] sm:$0xff]
    %v1072 = vld [vmem:[%s1049 + $0x108] sm:$0xff]
    %v1073 = vld [vmem:[%s1049 + $0x110] sm:$0xff]
    %v1074 = vld [vmem:[%s1049 + $0x120] sm:$0xff]
    %v1075 = vld [vmem:[%s1049 + $0x128] sm:$0xff]
    %v1076 = vld [vmem:[%s1049 + $0x138] sm:$0xff]
    %v1077 = vld [vmem:[%s1049 + $0x140] sm:$0xff]
    %v1078 = vld [vmem:[%s1049 + $0x150] sm:$0xff]
    %v1079 = vld [vmem:[%s1049 + $0x158] sm:$0xff]
    %v1080 = vld [vmem:[%s1049 + $0x168] sm:$0xff]
    %v1081 = vld [vmem:[%s1049 + $0x170] sm:$0xff]
    %1114 = vrot.lane.b32.xlu0 %v1050, 6
    %v1115 = vpop.permute.xlu0 %1114
    %1116 = vrot.lane.b32.xlu0 %v1051, 6
    %v1117 = vpop.permute.xlu0 %1116
    %1118 = vrot.lane.b32.xlu0 %v1052, 6
    %v1119 = vpop.permute.xlu0 %1118
    %1120 = vrot.lane.b32.xlu0 %v1053, 6
    %v1121 = vpop.permute.xlu0 %1120
    %1122 = vrot.lane.b32.xlu0 %v1054, 6
    %v1123 = vpop.permute.xlu0 %1122
    %1124 = vrot.lane.b32.xlu0 %v1055, 6
    %v1125 = vpop.permute.xlu0 %1124
    %1126 = vrot.lane.b32.xlu0 %v1056, 6
    %v1127 = vpop.permute.xlu0 %1126
    %1128 = vrot.lane.b32.xlu0 %v1057, 6
    %v1129 = vpop.permute.xlu0 %1128
    %1130 = vrot.lane.b32.xlu0 %v1058, 6
    %v1131 = vpop.permute.xlu0 %1130
    %1132 = vrot.lane.b32.xlu0 %v1059, 6
    %v1133 = vpop.permute.xlu0 %1132
    %1134 = vrot.lane.b32.xlu0 %v1060, 6
    %v1135 = vpop.permute.xlu0 %1134
    %1136 = vrot.lane.b32.xlu0 %v1061, 6
    %v1137 = vpop.permute.xlu0 %1136
    %1138 = vrot.lane.b32.xlu0 %v1062, 6
    %v1139 = vpop.permute.xlu0 %1138
    %1140 = vrot.lane.b32.xlu0 %v1063, 6
    %v1141 = vpop.permute.xlu0 %1140
    %1142 = vrot.lane.b32.xlu0 %v1064, 6
    %v1143 = vpop.permute.xlu0 %1142
    %1144 = vrot.lane.b32.xlu0 %v1065, 6
    %v1145 = vpop.permute.xlu0 %1144
    %1146 = vrot.lane.b32.xlu0 %v1066, 6
    %v1147 = vpop.permute.xlu0 %1146
    %1148 = vrot.lane.b32.xlu0 %v1067, 6
    %v1149 = vpop.permute.xlu0 %1148
    %1150 = vrot.lane.b32.xlu0 %v1068, 6
    %v1151 = vpop.permute.xlu0 %1150
    %1152 = vrot.lane.b32.xlu0 %v1069, 6
    %v1153 = vpop.permute.xlu0 %1152
    %1154 = vrot.lane.b32.xlu0 %v1070, 6
    %v1155 = vpop.permute.xlu0 %1154
    %1156 = vrot.lane.b32.xlu0 %v1071, 6
    %v1157 = vpop.permute.xlu0 %1156
    %1158 = vrot.lane.b32.xlu0 %v1072, 6
    %v1159 = vpop.permute.xlu0 %1158
    %1160 = vrot.lane.b32.xlu0 %v1073, 6
    %v1161 = vpop.permute.xlu0 %1160
    %1162 = vrot.lane.b32.xlu0 %v1074, 6
    %v1163 = vpop.permute.xlu0 %1162
    %1164 = vrot.lane.b32.xlu0 %v1075, 6
    %v1165 = vpop.permute.xlu0 %1164
    %1166 = vrot.lane.b32.xlu0 %v1076, 6
    %v1167 = vpop.permute.xlu0 %1166
    %1168 = vrot.lane.b32.xlu0 %v1077, 6
    %v1169 = vpop.permute.xlu0 %1168
    %1170 = vrot.lane.b32.xlu0 %v1078, 6
    %v1171 = vpop.permute.xlu0 %1170
    %1172 = vrot.lane.b32.xlu0 %v1079, 6
    %v1173 = vpop.permute.xlu0 %1172
    %1174 = vrot.lane.b32.xlu0 %v1080, 6
    %v1175 = vpop.permute.xlu0 %1174
    %1176 = vrot.lane.b32.xlu0 %v1081, 6
    %v1177 = vpop.permute.xlu0 %1176
    %vm1210 = vcmask 56368
    %1211 = vst.msk [vmem:[#allocation2] sm:$0xff] %vm1210, %v1115
    %1212 = vst.msk [vmem:[#allocation2 + $0x8] sm:$0xff] %vm1210, %v1117
    %1213 = vst.msk [vmem:[#allocation2 + $0x10] sm:$0xff] %vm1210, %v1119
    %1214 = vst.msk [vmem:[#allocation2 + $0x18] sm:$0xff] %vm1210, %v1121
    %1215 = vst.msk [vmem:[#allocation2 + $0x20] sm:$0xff] %vm1210, %v1123
    %1216 = vst.msk [vmem:[#allocation2 + $0x28] sm:$0xff] %vm1210, %v1125
    %1217 = vst.msk [vmem:[#allocation2 + $0x30] sm:$0xff] %vm1210, %v1127
    %1218 = vst.msk [vmem:[#allocation2 + $0x38] sm:$0xff] %vm1210, %v1129
    %1219 = vst.msk [vmem:[#allocation2 + $0x40] sm:$0xff] %vm1210, %v1131
    %1220 = vst.msk [vmem:[#allocation2 + $0x48] sm:$0xff] %vm1210, %v1133
    %1221 = vst.msk [vmem:[#allocation2 + $0x50] sm:$0xff] %vm1210, %v1135
    %1222 = vst.msk [vmem:[#allocation2 + $0x58] sm:$0xff] %vm1210, %v1137
    %1223 = vst.msk [vmem:[#allocation2 + $0x60] sm:$0xff] %vm1210, %v1139
    %1224 = vst.msk [vmem:[#allocation2 + $0x68] sm:$0xff] %vm1210, %v1141
    %1225 = vst.msk [vmem:[#allocation2 + $0x70] sm:$0xff] %vm1210, %v1143
    %1226 = vst.msk [vmem:[#allocation2 + $0x78] sm:$0xff] %vm1210, %v1145
    %1227 = vst.msk [vmem:[#allocation2 + $0x80] sm:$0xff] %vm1210, %v1147
    %1228 = vst.msk [vmem:[#allocation2 + $0x88] sm:$0xff] %vm1210, %v1149
    %1229 = vst.msk [vmem:[#allocation2 + $0x90] sm:$0xff] %vm1210, %v1151
    %1230 = vst.msk [vmem:[#allocation2 + $0x98] sm:$0xff] %vm1210, %v1153
    %1231 = vst.msk [vmem:[#allocation2 + $0xa0] sm:$0xff] %vm1210, %v1155
    %1232 = vst.msk [vmem:[#allocation2 + $0xa8] sm:$0xff] %vm1210, %v1157
    %1233 = vst.msk [vmem:[#allocation2 + $0xb0] sm:$0xff] %vm1210, %v1159
    %1234 = vst.msk [vmem:[#allocation2 + $0xb8] sm:$0xff] %vm1210, %v1161
    %1235 = vst.msk [vmem:[#allocation2 + $0xc0] sm:$0xff] %vm1210, %v1163
    %1236 = vst.msk [vmem:[#allocation2 + $0xc8] sm:$0xff] %vm1210, %v1165
    %1237 = vst.msk [vmem:[#allocation2 + $0xd0] sm:$0xff] %vm1210, %v1167
    %1238 = vst.msk [vmem:[#allocation2 + $0xd8] sm:$0xff] %vm1210, %v1169
    %1239 = vst.msk [vmem:[#allocation2 + $0xe0] sm:$0xff] %vm1210, %v1171
    %1240 = vst.msk [vmem:[#allocation2 + $0xe8] sm:$0xff] %vm1210, %v1173
    %1241 = vst.msk [vmem:[#allocation2 + $0xf0] sm:$0xff] %vm1210, %v1175
    %1242 = vst.msk [vmem:[#allocation2 + $0xf8] sm:$0xff] %vm1210, %v1177
    %v1243 = vld [vmem:[%s1049 + $0x1] sm:$0xff]
    %v1244 = vld [vmem:[%s1049 + $0x9] sm:$0xff]
    %v1245 = vld [vmem:[%s1049 + $0x19] sm:$0xff]
    %v1246 = vld [vmem:[%s1049 + $0x21] sm:$0xff]
    %v1247 = vld [vmem:[%s1049 + $0x31] sm:$0xff]
    %v1248 = vld [vmem:[%s1049 + $0x39] sm:$0xff]
    %v1249 = vld [vmem:[%s1049 + $0x49] sm:$0xff]
    %v1250 = vld [vmem:[%s1049 + $0x51] sm:$0xff]
    %v1251 = vld [vmem:[%s1049 + $0x61] sm:$0xff]
    %v1252 = vld [vmem:[%s1049 + $0x69] sm:$0xff]
    %v1253 = vld [vmem:[%s1049 + $0x79] sm:$0xff]
    %v1254 = vld [vmem:[%s1049 + $0x81] sm:$0xff]
    %v1255 = vld [vmem:[%s1049 + $0x91] sm:$0xff]
    %v1256 = vld [vmem:[%s1049 + $0x99] sm:$0xff]
    %v1257 = vld [vmem:[%s1049 + $0xa9] sm:$0xff]
    %v1258 = vld [vmem:[%s1049 + $0xb1] sm:$0xff]
    %v1259 = vld [vmem:[%s1049 + $0xc1] sm:$0xff]
    %v1260 = vld [vmem:[%s1049 + $0xc9] sm:$0xff]
    %v1261 = vld [vmem:[%s1049 + $0xd9] sm:$0xff]
    %v1262 = vld [vmem:[%s1049 + $0xe1] sm:$0xff]
    %v1263 = vld [vmem:[%s1049 + $0xf1] sm:$0xff]
    %v1264 = vld [vmem:[%s1049 + $0xf9] sm:$0xff]
    %v1265 = vld [vmem:[%s1049 + $0x109] sm:$0xff]
    %v1266 = vld [vmem:[%s1049 + $0x111] sm:$0xff]
    %v1267 = vld [vmem:[%s1049 + $0x121] sm:$0xff]
    %v1268 = vld [vmem:[%s1049 + $0x129] sm:$0xff]
    %v1269 = vld [vmem:[%s1049 + $0x139] sm:$0xff]
    %v1270 = vld [vmem:[%s1049 + $0x141] sm:$0xff]
    %v1271 = vld [vmem:[%s1049 + $0x151] sm:$0xff]
    %v1272 = vld [vmem:[%s1049 + $0x159] sm:$0xff]
    %v1273 = vld [vmem:[%s1049 + $0x169] sm:$0xff]
    %v1274 = vld [vmem:[%s1049 + $0x171] sm:$0xff]
    %1307 = vrot.lane.b32.xlu0 %v1243, 7
    %v1308 = vpop.permute.xlu0 %1307
    %1309 = vrot.lane.b32.xlu0 %v1244, 7
    %v1310 = vpop.permute.xlu0 %1309
    %1311 = vrot.lane.b32.xlu0 %v1245, 7
    %v1312 = vpop.permute.xlu0 %1311
    %1313 = vrot.lane.b32.xlu0 %v1246, 7
    %v1314 = vpop.permute.xlu0 %1313
    %1315 = vrot.lane.b32.xlu0 %v1247, 7
    %v1316 = vpop.permute.xlu0 %1315
    %1317 = vrot.lane.b32.xlu0 %v1248, 7
    %v1318 = vpop.permute.xlu0 %1317
    %1319 = vrot.lane.b32.xlu0 %v1249, 7
    %v1320 = vpop.permute.xlu0 %1319
    %1321 = vrot.lane.b32.xlu0 %v1250, 7
    %v1322 = vpop.permute.xlu0 %1321
    %1323 = vrot.lane.b32.xlu0 %v1251, 7
    %v1324 = vpop.permute.xlu0 %1323
    %1325 = vrot.lane.b32.xlu0 %v1252, 7
    %v1326 = vpop.permute.xlu0 %1325
    %1327 = vrot.lane.b32.xlu0 %v1253, 7
    %v1328 = vpop.permute.xlu0 %1327
    %1329 = vrot.lane.b32.xlu0 %v1254, 7
    %v1330 = vpop.permute.xlu0 %1329
    %1331 = vrot.lane.b32.xlu0 %v1255, 7
    %v1332 = vpop.permute.xlu0 %1331
    %1333 = vrot.lane.b32.xlu0 %v1256, 7
    %v1334 = vpop.permute.xlu0 %1333
    %1335 = vrot.lane.b32.xlu0 %v1257, 7
    %v1336 = vpop.permute.xlu0 %1335
    %1337 = vrot.lane.b32.xlu0 %v1258, 7
    %v1338 = vpop.permute.xlu0 %1337
    %1339 = vrot.lane.b32.xlu0 %v1259, 7
    %v1340 = vpop.permute.xlu0 %1339
    %1341 = vrot.lane.b32.xlu0 %v1260, 7
    %v1342 = vpop.permute.xlu0 %1341
    %1343 = vrot.lane.b32.xlu0 %v1261, 7
    %v1344 = vpop.permute.xlu0 %1343
    %1345 = vrot.lane.b32.xlu0 %v1262, 7
    %v1346 = vpop.permute.xlu0 %1345
    %1347 = vrot.lane.b32.xlu0 %v1263, 7
    %v1348 = vpop.permute.xlu0 %1347
    %1349 = vrot.lane.b32.xlu0 %v1264, 7
    %v1350 = vpop.permute.xlu0 %1349
    %1351 = vrot.lane.b32.xlu0 %v1265, 7
    %v1352 = vpop.permute.xlu0 %1351
    %1353 = vrot.lane.b32.xlu0 %v1266, 7
    %v1354 = vpop.permute.xlu0 %1353
    %1355 = vrot.lane.b32.xlu0 %v1267, 7
    %v1356 = vpop.permute.xlu0 %1355
    %1357 = vrot.lane.b32.xlu0 %v1268, 7
    %v1358 = vpop.permute.xlu0 %1357
    %1359 = vrot.lane.b32.xlu0 %v1269, 7
    %v1360 = vpop.permute.xlu0 %1359
    %1361 = vrot.lane.b32.xlu0 %v1270, 7
    %v1362 = vpop.permute.xlu0 %1361
    %1363 = vrot.lane.b32.xlu0 %v1271, 7
    %v1364 = vpop.permute.xlu0 %1363
    %1365 = vrot.lane.b32.xlu0 %v1272, 7
    %v1366 = vpop.permute.xlu0 %1365
    %1367 = vrot.lane.b32.xlu0 %v1273, 7
    %v1368 = vpop.permute.xlu0 %1367
    %1369 = vrot.lane.b32.xlu0 %v1274, 7
    %v1370 = vpop.permute.xlu0 %1369
    %vm1403 = vcmask 64568
    %1404 = vst.msk [vmem:[#allocation2] sm:$0xff] %vm1403, %v1308
    %1405 = vst.msk [vmem:[#allocation2 + $0x8] sm:$0xff] %vm1403, %v1310
    %1406 = vst.msk [vmem:[#allocation2 + $0x10] sm:$0xff] %vm1403, %v1312
    %1407 = vst.msk [vmem:[#allocation2 + $0x18] sm:$0xff] %vm1403, %v1314
    %1408 = vst.msk [vmem:[#allocation2 + $0x20] sm:$0xff] %vm1403, %v1316
    %1409 = vst.msk [vmem:[#allocation2 + $0x28] sm:$0xff] %vm1403, %v1318
    %1410 = vst.msk [vmem:[#allocation2 + $0x30] sm:$0xff] %vm1403, %v1320
    %1411 = vst.msk [vmem:[#allocation2 + $0x38] sm:$0xff] %vm1403, %v1322
    %1412 = vst.msk [vmem:[#allocation2 + $0x40] sm:$0xff] %vm1403, %v1324
    %1413 = vst.msk [vmem:[#allocation2 + $0x48] sm:$0xff] %vm1403, %v1326
    %1414 = vst.msk [vmem:[#allocation2 + $0x50] sm:$0xff] %vm1403, %v1328
    %1415 = vst.msk [vmem:[#allocation2 + $0x58] sm:$0xff] %vm1403, %v1330
    %1416 = vst.msk [vmem:[#allocation2 + $0x60] sm:$0xff] %vm1403, %v1332
    %1417 = vst.msk [vmem:[#allocation2 + $0x68] sm:$0xff] %vm1403, %v1334
    %1418 = vst.msk [vmem:[#allocation2 + $0x70] sm:$0xff] %vm1403, %v1336
    %1419 = vst.msk [vmem:[#allocation2 + $0x78] sm:$0xff] %vm1403, %v1338
    %1420 = vst.msk [vmem:[#allocation2 + $0x80] sm:$0xff] %vm1403, %v1340
    %1421 = vst.msk [vmem:[#allocation2 + $0x88] sm:$0xff] %vm1403, %v1342
    %1422 = vst.msk [vmem:[#allocation2 + $0x90] sm:$0xff] %vm1403, %v1344
    %1423 = vst.msk [vmem:[#allocation2 + $0x98] sm:$0xff] %vm1403, %v1346
    %1424 = vst.msk [vmem:[#allocation2 + $0xa0] sm:$0xff] %vm1403, %v1348
    %1425 = vst.msk [vmem:[#allocation2 + $0xa8] sm:$0xff] %vm1403, %v1350
    %1426 = vst.msk [vmem:[#allocation2 + $0xb0] sm:$0xff] %vm1403, %v1352
    %1427 = vst.msk [vmem:[#allocation2 + $0xb8] sm:$0xff] %vm1403, %v1354
    %1428 = vst.msk [vmem:[#allocation2 + $0xc0] sm:$0xff] %vm1403, %v1356
    %1429 = vst.msk [vmem:[#allocation2 + $0xc8] sm:$0xff] %vm1403, %v1358
    %1430 = vst.msk [vmem:[#allocation2 + $0xd0] sm:$0xff] %vm1403, %v1360
    %1431 = vst.msk [vmem:[#allocation2 + $0xd8] sm:$0xff] %vm1403, %v1362
    %1432 = vst.msk [vmem:[#allocation2 + $0xe0] sm:$0xff] %vm1403, %v1364
    %1433 = vst.msk [vmem:[#allocation2 + $0xe8] sm:$0xff] %vm1403, %v1366
    %1434 = vst.msk [vmem:[#allocation2 + $0xf0] sm:$0xff] %vm1403, %v1368
    %1435 = vst.msk [vmem:[#allocation2 + $0xf8] sm:$0xff] %vm1403, %v1370
    %v1436 = vld [vmem:[%s1049 + $0x2] sm:$0xff]
    %v1437 = vld [vmem:[%s1049 + $0xa] sm:$0xff]
    %v1438 = vld [vmem:[%s1049 + $0x1a] sm:$0xff]
    %v1439 = vld [vmem:[%s1049 + $0x22] sm:$0xff]
    %v1440 = vld [vmem:[%s1049 + $0x32] sm:$0xff]
    %v1441 = vld [vmem:[%s1049 + $0x3a] sm:$0xff]
    %v1442 = vld [vmem:[%s1049 + $0x4a] sm:$0xff]
    %v1443 = vld [vmem:[%s1049 + $0x52] sm:$0xff]
    %v1444 = vld [vmem:[%s1049 + $0x62] sm:$0xff]
    %v1445 = vld [vmem:[%s1049 + $0x6a] sm:$0xff]
    %v1446 = vld [vmem:[%s1049 + $0x7a] sm:$0xff]
    %v1447 = vld [vmem:[%s1049 + $0x82] sm:$0xff]
    %v1448 = vld [vmem:[%s1049 + $0x92] sm:$0xff]
    %v1449 = vld [vmem:[%s1049 + $0x9a] sm:$0xff]
    %v1450 = vld [vmem:[%s1049 + $0xaa] sm:$0xff]
    %v1451 = vld [vmem:[%s1049 + $0xb2] sm:$0xff]
    %v1452 = vld [vmem:[%s1049 + $0xc2] sm:$0xff]
    %v1453 = vld [vmem:[%s1049 + $0xca] sm:$0xff]
    %v1454 = vld [vmem:[%s1049 + $0xda] sm:$0xff]
    %v1455 = vld [vmem:[%s1049 + $0xe2] sm:$0xff]
    %v1456 = vld [vmem:[%s1049 + $0xf2] sm:$0xff]
    %v1457 = vld [vmem:[%s1049 + $0xfa] sm:$0xff]
    %v1458 = vld [vmem:[%s1049 + $0x10a] sm:$0xff]
    %v1459 = vld [vmem:[%s1049 + $0x112] sm:$0xff]
    %v1460 = vld [vmem:[%s1049 + $0x122] sm:$0xff]
    %v1461 = vld [vmem:[%s1049 + $0x12a] sm:$0xff]
    %v1462 = vld [vmem:[%s1049 + $0x13a] sm:$0xff]
    %v1463 = vld [vmem:[%s1049 + $0x142] sm:$0xff]
    %v1464 = vld [vmem:[%s1049 + $0x152] sm:$0xff]
    %v1465 = vld [vmem:[%s1049 + $0x15a] sm:$0xff]
    %v1466 = vld [vmem:[%s1049 + $0x16a] sm:$0xff]
    %v1467 = vld [vmem:[%s1049 + $0x172] sm:$0xff]
    %1500 = vrot.lane.b32.xlu0 %v1436, 8
    %v1501 = vpop.permute.xlu0 %1500
    %1502 = vrot.lane.b32.xlu0 %v1437, 8
    %v1503 = vpop.permute.xlu0 %1502
    %1504 = vrot.lane.b32.xlu0 %v1438, 8
    %v1505 = vpop.permute.xlu0 %1504
    %1506 = vrot.lane.b32.xlu0 %v1439, 8
    %v1507 = vpop.permute.xlu0 %1506
    %1508 = vrot.lane.b32.xlu0 %v1440, 8
    %v1509 = vpop.permute.xlu0 %1508
    %1510 = vrot.lane.b32.xlu0 %v1441, 8
    %v1511 = vpop.permute.xlu0 %1510
    %1512 = vrot.lane.b32.xlu0 %v1442, 8
    %v1513 = vpop.permute.xlu0 %1512
    %1514 = vrot.lane.b32.xlu0 %v1443, 8
    %v1515 = vpop.permute.xlu0 %1514
    %1516 = vrot.lane.b32.xlu0 %v1444, 8
    %v1517 = vpop.permute.xlu0 %1516
    %1518 = vrot.lane.b32.xlu0 %v1445, 8
    %v1519 = vpop.permute.xlu0 %1518
    %1520 = vrot.lane.b32.xlu0 %v1446, 8
    %v1521 = vpop.permute.xlu0 %1520
    %1522 = vrot.lane.b32.xlu0 %v1447, 8
    %v1523 = vpop.permute.xlu0 %1522
    %1524 = vrot.lane.b32.xlu0 %v1448, 8
    %v1525 = vpop.permute.xlu0 %1524
    %1526 = vrot.lane.b32.xlu0 %v1449, 8
    %v1527 = vpop.permute.xlu0 %1526
    %1528 = vrot.lane.b32.xlu0 %v1450, 8
    %v1529 = vpop.permute.xlu0 %1528
    %1530 = vrot.lane.b32.xlu0 %v1451, 8
    %v1531 = vpop.permute.xlu0 %1530
    %1532 = vrot.lane.b32.xlu0 %v1452, 8
    %v1533 = vpop.permute.xlu0 %1532
    %1534 = vrot.lane.b32.xlu0 %v1453, 8
    %v1535 = vpop.permute.xlu0 %1534
    %1536 = vrot.lane.b32.xlu0 %v1454, 8
    %v1537 = vpop.permute.xlu0 %1536
    %1538 = vrot.lane.b32.xlu0 %v1455, 8
    %v1539 = vpop.permute.xlu0 %1538
    %1540 = vrot.lane.b32.xlu0 %v1456, 8
    %v1541 = vpop.permute.xlu0 %1540
    %1542 = vrot.lane.b32.xlu0 %v1457, 8
    %v1543 = vpop.permute.xlu0 %1542
    %1544 = vrot.lane.b32.xlu0 %v1458, 8
    %v1545 = vpop.permute.xlu0 %1544
    %1546 = vrot.lane.b32.xlu0 %v1459, 8
    %v1547 = vpop.permute.xlu0 %1546
    %1548 = vrot.lane.b32.xlu0 %v1460, 8
    %v1549 = vpop.permute.xlu0 %1548
    %1550 = vrot.lane.b32.xlu0 %v1461, 8
    %v1551 = vpop.permute.xlu0 %1550
    %1552 = vrot.lane.b32.xlu0 %v1462, 8
    %v1553 = vpop.permute.xlu0 %1552
    %1554 = vrot.lane.b32.xlu0 %v1463, 8
    %v1555 = vpop.permute.xlu0 %1554
    %1556 = vrot.lane.b32.xlu0 %v1464, 8
    %v1557 = vpop.permute.xlu0 %1556
    %1558 = vrot.lane.b32.xlu0 %v1465, 8
    %v1559 = vpop.permute.xlu0 %1558
    %1560 = vrot.lane.b32.xlu0 %v1466, 8
    %v1561 = vpop.permute.xlu0 %1560
    %1562 = vrot.lane.b32.xlu0 %v1467, 8
    %v1563 = vpop.permute.xlu0 %1562
    %vm1596 = vcmask 72768
    %1597 = vst.msk [vmem:[#allocation2] sm:$0xff] %vm1596, %v1501
    %1598 = vst.msk [vmem:[#allocation2 + $0x8] sm:$0xff] %vm1596, %v1503
    %1599 = vst.msk [vmem:[#allocation2 + $0x10] sm:$0xff] %vm1596, %v1505
    %1600 = vst.msk [vmem:[#allocation2 + $0x18] sm:$0xff] %vm1596, %v1507
    %1601 = vst.msk [vmem:[#allocation2 + $0x20] sm:$0xff] %vm1596, %v1509
    %1602 = vst.msk [vmem:[#allocation2 + $0x28] sm:$0xff] %vm1596, %v1511
    %1603 = vst.msk [vmem:[#allocation2 + $0x30] sm:$0xff] %vm1596, %v1513
    %1604 = vst.msk [vmem:[#allocation2 + $0x38] sm:$0xff] %vm1596, %v1515
    %1605 = vst.msk [vmem:[#allocation2 + $0x40] sm:$0xff] %vm1596, %v1517
    %1606 = vst.msk [vmem:[#allocation2 + $0x48] sm:$0xff] %vm1596, %v1519
    %1607 = vst.msk [vmem:[#allocation2 + $0x50] sm:$0xff] %vm1596, %v1521
    %1608 = vst.msk [vmem:[#allocation2 + $0x58] sm:$0xff] %vm1596, %v1523
    %1609 = vst.msk [vmem:[#allocation2 + $0x60] sm:$0xff] %vm1596, %v1525
    %1610 = vst.msk [vmem:[#allocation2 + $0x68] sm:$0xff] %vm1596, %v1527
    %1611 = vst.msk [vmem:[#allocation2 + $0x70] sm:$0xff] %vm1596, %v1529
    %1612 = vst.msk [vmem:[#allocation2 + $0x78] sm:$0xff] %vm1596, %v1531
    %1613 = vst.msk [vmem:[#allocation2 + $0x80] sm:$0xff] %vm1596, %v1533
    %1614 = vst.msk [vmem:[#allocation2 + $0x88] sm:$0xff] %vm1596, %v1535
    %1615 = vst.msk [vmem:[#allocation2 + $0x90] sm:$0xff] %vm1596, %v1537
    %1616 = vst.msk [vmem:[#allocation2 + $0x98] sm:$0xff] %vm1596, %v1539
    %1617 = vst.msk [vmem:[#allocation2 + $0xa0] sm:$0xff] %vm1596, %v1541
    %1618 = vst.msk [vmem:[#allocation2 + $0xa8] sm:$0xff] %vm1596, %v1543
    %1619 = vst.msk [vmem:[#allocation2 + $0xb0] sm:$0xff] %vm1596, %v1545
    %1620 = vst.msk [vmem:[#allocation2 + $0xb8] sm:$0xff] %vm1596, %v1547
    %1621 = vst.msk [vmem:[#allocation2 + $0xc0] sm:$0xff] %vm1596, %v1549
    %1622 = vst.msk [vmem:[#allocation2 + $0xc8] sm:$0xff] %vm1596, %v1551
    %1623 = vst.msk [vmem:[#allocation2 + $0xd0] sm:$0xff] %vm1596, %v1553
    %1624 = vst.msk [vmem:[#allocation2 + $0xd8] sm:$0xff] %vm1596, %v1555
    %1625 = vst.msk [vmem:[#allocation2 + $0xe0] sm:$0xff] %vm1596, %v1557
    %1626 = vst.msk [vmem:[#allocation2 + $0xe8] sm:$0xff] %vm1596, %v1559
    %1627 = vst.msk [vmem:[#allocation2 + $0xf0] sm:$0xff] %vm1596, %v1561
    %1628 = vst.msk [vmem:[#allocation2 + $0xf8] sm:$0xff] %vm1596, %v1563
    %s1629 = scalar_lea.vmem %s0, 432
    %v1630 = vld [vmem:[%s1629] sm:$0xff]
    %v1631 = vld [vmem:[%s1629 + $0x8] sm:$0xff]
    %v1632 = vld [vmem:[%s1629 + $0x18] sm:$0xff]
    %v1633 = vld [vmem:[%s1629 + $0x20] sm:$0xff]
    %v1634 = vld [vmem:[%s1629 + $0x30] sm:$0xff]
    %v1635 = vld [vmem:[%s1629 + $0x38] sm:$0xff]
    %v1636 = vld [vmem:[%s1629 + $0x48] sm:$0xff]
    %v1637 = vld [vmem:[%s1629 + $0x50] sm:$0xff]
    %v1638 = vld [vmem:[%s1629 + $0x60] sm:$0xff]
    %v1639 = vld [vmem:[%s1629 + $0x68] sm:$0xff]
    %v1640 = vld [vmem:[%s1629 + $0x78] sm:$0xff]
    %v1641 = vld [vmem:[%s1629 + $0x80] sm:$0xff]
    %v1642 = vld [vmem:[%s1629 + $0x90] sm:$0xff]
    %v1643 = vld [vmem:[%s1629 + $0x98] sm:$0xff]
    %v1644 = vld [vmem:[%s1629 + $0xa8] sm:$0xff]
    %v1645 = vld [vmem:[%s1629 + $0xb0] sm:$0xff]
    %v1646 = vld [vmem:[%s1629 + $0xc0] sm:$0xff]
    %v1647 = vld [vmem:[%s1629 + $0xc8] sm:$0xff]
    %v1648 = vld [vmem:[%s1629 + $0xd8] sm:$0xff]
    %v1649 = vld [vmem:[%s1629 + $0xe0] sm:$0xff]
    %v1650 = vld [vmem:[%s1629 + $0xf0] sm:$0xff]
    %v1651 = vld [vmem:[%s1629 + $0xf8] sm:$0xff]
    %v1652 = vld [vmem:[%s1629 + $0x108] sm:$0xff]
    %v1653 = vld [vmem:[%s1629 + $0x110] sm:$0xff]
    %v1654 = vld [vmem:[%s1629 + $0x120] sm:$0xff]
    %v1655 = vld [vmem:[%s1629 + $0x128] sm:$0xff]
    %v1656 = vld [vmem:[%s1629 + $0x138] sm:$0xff]
    %v1657 = vld [vmem:[%s1629 + $0x140] sm:$0xff]
    %v1658 = vld [vmem:[%s1629 + $0x150] sm:$0xff]
    %v1659 = vld [vmem:[%s1629 + $0x158] sm:$0xff]
    %v1660 = vld [vmem:[%s1629 + $0x168] sm:$0xff]
    %v1661 = vld [vmem:[%s1629 + $0x170] sm:$0xff]
    %1662 = vst.msk [vmem:[#allocation2 + $0x100] sm:$0xff] %vm50, %v1630
    %1663 = vst.msk [vmem:[#allocation2 + $0x108] sm:$0xff] %vm50, %v1631
    %1664 = vst.msk [vmem:[#allocation2 + $0x110] sm:$0xff] %vm50, %v1632
    %1665 = vst.msk [vmem:[#allocation2 + $0x118] sm:$0xff] %vm50, %v1633
    %1666 = vst.msk [vmem:[#allocation2 + $0x120] sm:$0xff] %vm50, %v1634
    %1667 = vst.msk [vmem:[#allocation2 + $0x128] sm:$0xff] %vm50, %v1635
    %1668 = vst.msk [vmem:[#allocation2 + $0x130] sm:$0xff] %vm50, %v1636
    %1669 = vst.msk [vmem:[#allocation2 + $0x138] sm:$0xff] %vm50, %v1637
    %1670 = vst.msk [vmem:[#allocation2 + $0x140] sm:$0xff] %vm50, %v1638
    %1671 = vst.msk [vmem:[#allocation2 + $0x148] sm:$0xff] %vm50, %v1639
    %1672 = vst.msk [vmem:[#allocation2 + $0x150] sm:$0xff] %vm50, %v1640
    %1673 = vst.msk [vmem:[#allocation2 + $0x158] sm:$0xff] %vm50, %v1641
    %1674 = vst.msk [vmem:[#allocation2 + $0x160] sm:$0xff] %vm50, %v1642
    %1675 = vst.msk [vmem:[#allocation2 + $0x168] sm:$0xff] %vm50, %v1643
    %1676 = vst.msk [vmem:[#allocation2 + $0x170] sm:$0xff] %vm50, %v1644
    %1677 = vst.msk [vmem:[#allocation2 + $0x178] sm:$0xff] %vm50, %v1645
    %1678 = vst.msk [vmem:[#allocation2 + $0x180] sm:$0xff] %vm50, %v1646
    %1679 = vst.msk [vmem:[#allocation2 + $0x188] sm:$0xff] %vm50, %v1647
    %1680 = vst.msk [vmem:[#allocation2 + $0x190] sm:$0xff] %vm50, %v1648
    %1681 = vst.msk [vmem:[#allocation2 + $0x198] sm:$0xff] %vm50, %v1649
    %1682 = vst.msk [vmem:[#allocation2 + $0x1a0] sm:$0xff] %vm50, %v1650
    %1683 = vst.msk [vmem:[#allocation2 + $0x1a8] sm:$0xff] %vm50, %v1651
    %1684 = vst.msk [vmem:[#allocation2 + $0x1b0] sm:$0xff] %vm50, %v1652
    %1685 = vst.msk [vmem:[#allocation2 + $0x1b8] sm:$0xff] %vm50, %v1653
    %1686 = vst.msk [vmem:[#allocation2 + $0x1c0] sm:$0xff] %vm50, %v1654
    %1687 = vst.msk [vmem:[#allocation2 + $0x1c8] sm:$0xff] %vm50, %v1655
    %1688 = vst.msk [vmem:[#allocation2 + $0x1d0] sm:$0xff] %vm50, %v1656
    %1689 = vst.msk [vmem:[#allocation2 + $0x1d8] sm:$0xff] %vm50, %v1657
    %1690 = vst.msk [vmem:[#allocation2 + $0x1e0] sm:$0xff] %vm50, %v1658
    %1691 = vst.msk [vmem:[#allocation2 + $0x1e8] sm:$0xff] %vm50, %v1659
    %1692 = vst.msk [vmem:[#allocation2 + $0x1f0] sm:$0xff] %vm50, %v1660
    %1693 = vst.msk [vmem:[#allocation2 + $0x1f8] sm:$0xff] %vm50, %v1661
    %v1694 = vld [vmem:[%s1629 + $0x1] sm:$0xff]
    %v1695 = vld [vmem:[%s1629 + $0x9] sm:$0xff]
    %v1696 = vld [vmem:[%s1629 + $0x19] sm:$0xff]
    %v1697 = vld [vmem:[%s1629 + $0x21] sm:$0xff]
    %v1698 = vld [vmem:[%s1629 + $0x31] sm:$0xff]
    %v1699 = vld [vmem:[%s1629 + $0x39] sm:$0xff]
    %v1700 = vld [vmem:[%s1629 + $0x49] sm:$0xff]
    %v1701 = vld [vmem:[%s1629 + $0x51] sm:$0xff]
    %v1702 = vld [vmem:[%s1629 + $0x61] sm:$0xff]
    %v1703 = vld [vmem:[%s1629 + $0x69] sm:$0xff]
    %v1704 = vld [vmem:[%s1629 + $0x79] sm:$0xff]
    %v1705 = vld [vmem:[%s1629 + $0x81] sm:$0xff]
    %v1706 = vld [vmem:[%s1629 + $0x91] sm:$0xff]
    %v1707 = vld [vmem:[%s1629 + $0x99] sm:$0xff]
    %v1708 = vld [vmem:[%s1629 + $0xa9] sm:$0xff]
    %v1709 = vld [vmem:[%s1629 + $0xb1] sm:$0xff]
    %v1710 = vld [vmem:[%s1629 + $0xc1] sm:$0xff]
    %v1711 = vld [vmem:[%s1629 + $0xc9] sm:$0xff]
    %v1712 = vld [vmem:[%s1629 + $0xd9] sm:$0xff]
    %v1713 = vld [vmem:[%s1629 + $0xe1] sm:$0xff]
    %v1714 = vld [vmem:[%s1629 + $0xf1] sm:$0xff]
    %v1715 = vld [vmem:[%s1629 + $0xf9] sm:$0xff]
    %v1716 = vld [vmem:[%s1629 + $0x109] sm:$0xff]
    %v1717 = vld [vmem:[%s1629 + $0x111] sm:$0xff]
    %v1718 = vld [vmem:[%s1629 + $0x121] sm:$0xff]
    %v1719 = vld [vmem:[%s1629 + $0x129] sm:$0xff]
    %v1720 = vld [vmem:[%s1629 + $0x139] sm:$0xff]
    %v1721 = vld [vmem:[%s1629 + $0x141] sm:$0xff]
    %v1722 = vld [vmem:[%s1629 + $0x151] sm:$0xff]
    %v1723 = vld [vmem:[%s1629 + $0x159] sm:$0xff]
    %v1724 = vld [vmem:[%s1629 + $0x169] sm:$0xff]
    %v1725 = vld [vmem:[%s1629 + $0x171] sm:$0xff]
    %1758 = vrot.lane.b32.xlu0 %v1694, 1
    %v1759 = vpop.permute.xlu0 %1758
    %1760 = vrot.lane.b32.xlu0 %v1695, 1
    %v1761 = vpop.permute.xlu0 %1760
    %1762 = vrot.lane.b32.xlu0 %v1696, 1
    %v1763 = vpop.permute.xlu0 %1762
    %1764 = vrot.lane.b32.xlu0 %v1697, 1
    %v1765 = vpop.permute.xlu0 %1764
    %1766 = vrot.lane.b32.xlu0 %v1698, 1
    %v1767 = vpop.permute.xlu0 %1766
    %1768 = vrot.lane.b32.xlu0 %v1699, 1
    %v1769 = vpop.permute.xlu0 %1768
    %1770 = vrot.lane.b32.xlu0 %v1700, 1
    %v1771 = vpop.permute.xlu0 %1770
    %1772 = vrot.lane.b32.xlu0 %v1701, 1
    %v1773 = vpop.permute.xlu0 %1772
    %1774 = vrot.lane.b32.xlu0 %v1702, 1
    %v1775 = vpop.permute.xlu0 %1774
    %1776 = vrot.lane.b32.xlu0 %v1703, 1
    %v1777 = vpop.permute.xlu0 %1776
    %1778 = vrot.lane.b32.xlu0 %v1704, 1
    %v1779 = vpop.permute.xlu0 %1778
    %1780 = vrot.lane.b32.xlu0 %v1705, 1
    %v1781 = vpop.permute.xlu0 %1780
    %1782 = vrot.lane.b32.xlu0 %v1706, 1
    %v1783 = vpop.permute.xlu0 %1782
    %1784 = vrot.lane.b32.xlu0 %v1707, 1
    %v1785 = vpop.permute.xlu0 %1784
    %1786 = vrot.lane.b32.xlu0 %v1708, 1
    %v1787 = vpop.permute.xlu0 %1786
    %1788 = vrot.lane.b32.xlu0 %v1709, 1
    %v1789 = vpop.permute.xlu0 %1788
    %1790 = vrot.lane.b32.xlu0 %v1710, 1
    %v1791 = vpop.permute.xlu0 %1790
    %1792 = vrot.lane.b32.xlu0 %v1711, 1
    %v1793 = vpop.permute.xlu0 %1792
    %1794 = vrot.lane.b32.xlu0 %v1712, 1
    %v1795 = vpop.permute.xlu0 %1794
    %1796 = vrot.lane.b32.xlu0 %v1713, 1
    %v1797 = vpop.permute.xlu0 %1796
    %1798 = vrot.lane.b32.xlu0 %v1714, 1
    %v1799 = vpop.permute.xlu0 %1798
    %1800 = vrot.lane.b32.xlu0 %v1715, 1
    %v1801 = vpop.permute.xlu0 %1800
    %1802 = vrot.lane.b32.xlu0 %v1716, 1
    %v1803 = vpop.permute.xlu0 %1802
    %1804 = vrot.lane.b32.xlu0 %v1717, 1
    %v1805 = vpop.permute.xlu0 %1804
    %1806 = vrot.lane.b32.xlu0 %v1718, 1
    %v1807 = vpop.permute.xlu0 %1806
    %1808 = vrot.lane.b32.xlu0 %v1719, 1
    %v1809 = vpop.permute.xlu0 %1808
    %1810 = vrot.lane.b32.xlu0 %v1720, 1
    %v1811 = vpop.permute.xlu0 %1810
    %1812 = vrot.lane.b32.xlu0 %v1721, 1
    %v1813 = vpop.permute.xlu0 %1812
    %1814 = vrot.lane.b32.xlu0 %v1722, 1
    %v1815 = vpop.permute.xlu0 %1814
    %1816 = vrot.lane.b32.xlu0 %v1723, 1
    %v1817 = vpop.permute.xlu0 %1816
    %1818 = vrot.lane.b32.xlu0 %v1724, 1
    %v1819 = vpop.permute.xlu0 %1818
    %1820 = vrot.lane.b32.xlu0 %v1725, 1
    %v1821 = vpop.permute.xlu0 %1820
    %1854 = vst.msk [vmem:[#allocation2 + $0x100] sm:$0xff] %vm243, %v1759
    %1855 = vst.msk [vmem:[#allocation2 + $0x108] sm:$0xff] %vm243, %v1761
    %1856 = vst.msk [vmem:[#allocation2 + $0x110] sm:$0xff] %vm243, %v1763
    %1857 = vst.msk [vmem:[#allocation2 + $0x118] sm:$0xff] %vm243, %v1765
    %1858 = vst.msk [vmem:[#allocation2 + $0x120] sm:$0xff] %vm243, %v1767
    %1859 = vst.msk [vmem:[#allocation2 + $0x128] sm:$0xff] %vm243, %v1769
    %1860 = vst.msk [vmem:[#allocation2 + $0x130] sm:$0xff] %vm243, %v1771
    %1861 = vst.msk [vmem:[#allocation2 + $0x138] sm:$0xff] %vm243, %v1773
    %1862 = vst.msk [vmem:[#allocation2 + $0x140] sm:$0xff] %vm243, %v1775
    %1863 = vst.msk [vmem:[#allocation2 + $0x148] sm:$0xff] %vm243, %v1777
    %1864 = vst.msk [vmem:[#allocation2 + $0x150] sm:$0xff] %vm243, %v1779
    %1865 = vst.msk [vmem:[#allocation2 + $0x158] sm:$0xff] %vm243, %v1781
    %1866 = vst.msk [vmem:[#allocation2 + $0x160] sm:$0xff] %vm243, %v1783
    %1867 = vst.msk [vmem:[#allocation2 + $0x168] sm:$0xff] %vm243, %v1785
    %1868 = vst.msk [vmem:[#allocation2 + $0x170] sm:$0xff] %vm243, %v1787
    %1869 = vst.msk [vmem:[#allocation2 + $0x178] sm:$0xff] %vm243, %v1789
    %1870 = vst.msk [vmem:[#allocation2 + $0x180] sm:$0xff] %vm243, %v1791
    %1871 = vst.msk [vmem:[#allocation2 + $0x188] sm:$0xff] %vm243, %v1793
    %1872 = vst.msk [vmem:[#allocation2 + $0x190] sm:$0xff] %vm243, %v1795
    %1873 = vst.msk [vmem:[#allocation2 + $0x198] sm:$0xff] %vm243, %v1797
    %1874 = vst.msk [vmem:[#allocation2 + $0x1a0] sm:$0xff] %vm243, %v1799
    %1875 = vst.msk [vmem:[#allocation2 + $0x1a8] sm:$0xff] %vm243, %v1801
    %1876 = vst.msk [vmem:[#allocation2 + $0x1b0] sm:$0xff] %vm243, %v1803
    %1877 = vst.msk [vmem:[#allocation2 + $0x1b8] sm:$0xff] %vm243, %v1805
    %1878 = vst.msk [vmem:[#allocation2 + $0x1c0] sm:$0xff] %vm243, %v1807
    %1879 = vst.msk [vmem:[#allocation2 + $0x1c8] sm:$0xff] %vm243, %v1809
    %1880 = vst.msk [vmem:[#allocation2 + $0x1d0] sm:$0xff] %vm243, %v1811
    %1881 = vst.msk [vmem:[#allocation2 + $0x1d8] sm:$0xff] %vm243, %v1813
    %1882 = vst.msk [vmem:[#allocation2 + $0x1e0] sm:$0xff] %vm243, %v1815
    %1883 = vst.msk [vmem:[#allocation2 + $0x1e8] sm:$0xff] %vm243, %v1817
    %1884 = vst.msk [vmem:[#allocation2 + $0x1f0] sm:$0xff] %vm243, %v1819
    %1885 = vst.msk [vmem:[#allocation2 + $0x1f8] sm:$0xff] %vm243, %v1821
    %v1886 = vld [vmem:[%s1629 + $0x2] sm:$0xff]
    %v1887 = vld [vmem:[%s1629 + $0xa] sm:$0xff]
    %v1888 = vld [vmem:[%s1629 + $0x1a] sm:$0xff]
    %v1889 = vld [vmem:[%s1629 + $0x22] sm:$0xff]
    %v1890 = vld [vmem:[%s1629 + $0x32] sm:$0xff]
    %v1891 = vld [vmem:[%s1629 + $0x3a] sm:$0xff]
    %v1892 = vld [vmem:[%s1629 + $0x4a] sm:$0xff]
    %v1893 = vld [vmem:[%s1629 + $0x52] sm:$0xff]
    %v1894 = vld [vmem:[%s1629 + $0x62] sm:$0xff]
    %v1895 = vld [vmem:[%s1629 + $0x6a] sm:$0xff]
    %v1896 = vld [vmem:[%s1629 + $0x7a] sm:$0xff]
    %v1897 = vld [vmem:[%s1629 + $0x82] sm:$0xff]
    %v1898 = vld [vmem:[%s1629 + $0x92] sm:$0xff]
    %v1899 = vld [vmem:[%s1629 + $0x9a] sm:$0xff]
    %v1900 = vld [vmem:[%s1629 + $0xaa] sm:$0xff]
    %v1901 = vld [vmem:[%s1629 + $0xb2] sm:$0xff]
    %v1902 = vld [vmem:[%s1629 + $0xc2] sm:$0xff]
    %v1903 = vld [vmem:[%s1629 + $0xca] sm:$0xff]
    %v1904 = vld [vmem:[%s1629 + $0xda] sm:$0xff]
    %v1905 = vld [vmem:[%s1629 + $0xe2] sm:$0xff]
    %v1906 = vld [vmem:[%s1629 + $0xf2] sm:$0xff]
    %v1907 = vld [vmem:[%s1629 + $0xfa] sm:$0xff]
    %v1908 = vld [vmem:[%s1629 + $0x10a] sm:$0xff]
    %v1909 = vld [vmem:[%s1629 + $0x112] sm:$0xff]
    %v1910 = vld [vmem:[%s1629 + $0x122] sm:$0xff]
    %v1911 = vld [vmem:[%s1629 + $0x12a] sm:$0xff]
    %v1912 = vld [vmem:[%s1629 + $0x13a] sm:$0xff]
    %v1913 = vld [vmem:[%s1629 + $0x142] sm:$0xff]
    %v1914 = vld [vmem:[%s1629 + $0x152] sm:$0xff]
    %v1915 = vld [vmem:[%s1629 + $0x15a] sm:$0xff]
    %v1916 = vld [vmem:[%s1629 + $0x16a] sm:$0xff]
    %v1917 = vld [vmem:[%s1629 + $0x172] sm:$0xff]
    %1950 = vrot.lane.b32.xlu0 %v1886, 2
    %v1951 = vpop.permute.xlu0 %1950
    %1952 = vrot.lane.b32.xlu0 %v1887, 2
    %v1953 = vpop.permute.xlu0 %1952
    %1954 = vrot.lane.b32.xlu0 %v1888, 2
    %v1955 = vpop.permute.xlu0 %1954
    %1956 = vrot.lane.b32.xlu0 %v1889, 2
    %v1957 = vpop.permute.xlu0 %1956
    %1958 = vrot.lane.b32.xlu0 %v1890, 2
    %v1959 = vpop.permute.xlu0 %1958
    %1960 = vrot.lane.b32.xlu0 %v1891, 2
    %v1961 = vpop.permute.xlu0 %1960
    %1962 = vrot.lane.b32.xlu0 %v1892, 2
    %v1963 = vpop.permute.xlu0 %1962
    %1964 = vrot.lane.b32.xlu0 %v1893, 2
    %v1965 = vpop.permute.xlu0 %1964
    %1966 = vrot.lane.b32.xlu0 %v1894, 2
    %v1967 = vpop.permute.xlu0 %1966
    %1968 = vrot.lane.b32.xlu0 %v1895, 2
    %v1969 = vpop.permute.xlu0 %1968
    %1970 = vrot.lane.b32.xlu0 %v1896, 2
    %v1971 = vpop.permute.xlu0 %1970
    %1972 = vrot.lane.b32.xlu0 %v1897, 2
    %v1973 = vpop.permute.xlu0 %1972
    %1974 = vrot.lane.b32.xlu0 %v1898, 2
    %v1975 = vpop.permute.xlu0 %1974
    %1976 = vrot.lane.b32.xlu0 %v1899, 2
    %v1977 = vpop.permute.xlu0 %1976
    %1978 = vrot.lane.b32.xlu0 %v1900, 2
    %v1979 = vpop.permute.xlu0 %1978
    %1980 = vrot.lane.b32.xlu0 %v1901, 2
    %v1981 = vpop.permute.xlu0 %1980
    %1982 = vrot.lane.b32.xlu0 %v1902, 2
    %v1983 = vpop.permute.xlu0 %1982
    %1984 = vrot.lane.b32.xlu0 %v1903, 2
    %v1985 = vpop.permute.xlu0 %1984
    %1986 = vrot.lane.b32.xlu0 %v1904, 2
    %v1987 = vpop.permute.xlu0 %1986
    %1988 = vrot.lane.b32.xlu0 %v1905, 2
    %v1989 = vpop.permute.xlu0 %1988
    %1990 = vrot.lane.b32.xlu0 %v1906, 2
    %v1991 = vpop.permute.xlu0 %1990
    %1992 = vrot.lane.b32.xlu0 %v1907, 2
    %v1993 = vpop.permute.xlu0 %1992
    %1994 = vrot.lane.b32.xlu0 %v1908, 2
    %v1995 = vpop.permute.xlu0 %1994
    %1996 = vrot.lane.b32.xlu0 %v1909, 2
    %v1997 = vpop.permute.xlu0 %1996
    %1998 = vrot.lane.b32.xlu0 %v1910, 2
    %v1999 = vpop.permute.xlu0 %1998
    %2000 = vrot.lane.b32.xlu0 %v1911, 2
    %v2001 = vpop.permute.xlu0 %2000
    %2002 = vrot.lane.b32.xlu0 %v1912, 2
    %v2003 = vpop.permute.xlu0 %2002
    %2004 = vrot.lane.b32.xlu0 %v1913, 2
    %v2005 = vpop.permute.xlu0 %2004
    %2006 = vrot.lane.b32.xlu0 %v1914, 2
    %v2007 = vpop.permute.xlu0 %2006
    %2008 = vrot.lane.b32.xlu0 %v1915, 2
    %v2009 = vpop.permute.xlu0 %2008
    %2010 = vrot.lane.b32.xlu0 %v1916, 2
    %v2011 = vpop.permute.xlu0 %2010
    %2012 = vrot.lane.b32.xlu0 %v1917, 2
    %v2013 = vpop.permute.xlu0 %2012
    %2046 = vst.msk [vmem:[#allocation2 + $0x100] sm:$0xff] %vm436, %v1951
    %2047 = vst.msk [vmem:[#allocation2 + $0x108] sm:$0xff] %vm436, %v1953
    %2048 = vst.msk [vmem:[#allocation2 + $0x110] sm:$0xff] %vm436, %v1955
    %2049 = vst.msk [vmem:[#allocation2 + $0x118] sm:$0xff] %vm436, %v1957
    %2050 = vst.msk [vmem:[#allocation2 + $0x120] sm:$0xff] %vm436, %v1959
    %2051 = vst.msk [vmem:[#allocation2 + $0x128] sm:$0xff] %vm436, %v1961
    %2052 = vst.msk [vmem:[#allocation2 + $0x130] sm:$0xff] %vm436, %v1963
    %2053 = vst.msk [vmem:[#allocation2 + $0x138] sm:$0xff] %vm436, %v1965
    %2054 = vst.msk [vmem:[#allocation2 + $0x140] sm:$0xff] %vm436, %v1967
    %2055 = vst.msk [vmem:[#allocation2 + $0x148] sm:$0xff] %vm436, %v1969
    %2056 = vst.msk [vmem:[#allocation2 + $0x150] sm:$0xff] %vm436, %v1971
    %2057 = vst.msk [vmem:[#allocation2 + $0x158] sm:$0xff] %vm436, %v1973
    %2058 = vst.msk [vmem:[#allocation2 + $0x160] sm:$0xff] %vm436, %v1975
    %2059 = vst.msk [vmem:[#allocation2 + $0x168] sm:$0xff] %vm436, %v1977
    %2060 = vst.msk [vmem:[#allocation2 + $0x170] sm:$0xff] %vm436, %v1979
    %2061 = vst.msk [vmem:[#allocation2 + $0x178] sm:$0xff] %vm436, %v1981
    %2062 = vst.msk [vmem:[#allocation2 + $0x180] sm:$0xff] %vm436, %v1983
    %2063 = vst.msk [vmem:[#allocation2 + $0x188] sm:$0xff] %vm436, %v1985
    %2064 = vst.msk [vmem:[#allocation2 + $0x190] sm:$0xff] %vm436, %v1987
    %2065 = vst.msk [vmem:[#allocation2 + $0x198] sm:$0xff] %vm436, %v1989
    %2066 = vst.msk [vmem:[#allocation2 + $0x1a0] sm:$0xff] %vm436, %v1991
    %2067 = vst.msk [vmem:[#allocation2 + $0x1a8] sm:$0xff] %vm436, %v1993
    %2068 = vst.msk [vmem:[#allocation2 + $0x1b0] sm:$0xff] %vm436, %v1995
    %2069 = vst.msk [vmem:[#allocation2 + $0x1b8] sm:$0xff] %vm436, %v1997
    %2070 = vst.msk [vmem:[#allocation2 + $0x1c0] sm:$0xff] %vm436, %v1999
    %2071 = vst.msk [vmem:[#allocation2 + $0x1c8] sm:$0xff] %vm436, %v2001
    %2072 = vst.msk [vmem:[#allocation2 + $0x1d0] sm:$0xff] %vm436, %v2003
    %2073 = vst.msk [vmem:[#allocation2 + $0x1d8] sm:$0xff] %vm436, %v2005
    %2074 = vst.msk [vmem:[#allocation2 + $0x1e0] sm:$0xff] %vm436, %v2007
    %2075 = vst.msk [vmem:[#allocation2 + $0x1e8] sm:$0xff] %vm436, %v2009
    %2076 = vst.msk [vmem:[#allocation2 + $0x1f0] sm:$0xff] %vm436, %v2011
    %2077 = vst.msk [vmem:[#allocation2 + $0x1f8] sm:$0xff] %vm436, %v2013
    %s2078 = scalar_lea.vmem %s0, 456
    %v2079 = vld [vmem:[%s2078] sm:$0xff]
    %v2080 = vld [vmem:[%s2078 + $0x8] sm:$0xff]
    %v2081 = vld [vmem:[%s2078 + $0x18] sm:$0xff]
    %v2082 = vld [vmem:[%s2078 + $0x20] sm:$0xff]
    %v2083 = vld [vmem:[%s2078 + $0x30] sm:$0xff]
    %v2084 = vld [vmem:[%s2078 + $0x38] sm:$0xff]
    %v2085 = vld [vmem:[%s2078 + $0x48] sm:$0xff]
    %v2086 = vld [vmem:[%s2078 + $0x50] sm:$0xff]
    %v2087 = vld [vmem:[%s2078 + $0x60] sm:$0xff]
    %v2088 = vld [vmem:[%s2078 + $0x68] sm:$0xff]
    %v2089 = vld [vmem:[%s2078 + $0x78] sm:$0xff]
    %v2090 = vld [vmem:[%s2078 + $0x80] sm:$0xff]
    %v2091 = vld [vmem:[%s2078 + $0x90] sm:$0xff]
    %v2092 = vld [vmem:[%s2078 + $0x98] sm:$0xff]
    %v2093 = vld [vmem:[%s2078 + $0xa8] sm:$0xff]
    %v2094 = vld [vmem:[%s2078 + $0xb0] sm:$0xff]
    %v2095 = vld [vmem:[%s2078 + $0xc0] sm:$0xff]
    %v2096 = vld [vmem:[%s2078 + $0xc8] sm:$0xff]
    %v2097 = vld [vmem:[%s2078 + $0xd8] sm:$0xff]
    %v2098 = vld [vmem:[%s2078 + $0xe0] sm:$0xff]
    %v2099 = vld [vmem:[%s2078 + $0xf0] sm:$0xff]
    %v2100 = vld [vmem:[%s2078 + $0xf8] sm:$0xff]
    %v2101 = vld [vmem:[%s2078 + $0x108] sm:$0xff]
    %v2102 = vld [vmem:[%s2078 + $0x110] sm:$0xff]
    %v2103 = vld [vmem:[%s2078 + $0x120] sm:$0xff]
    %v2104 = vld [vmem:[%s2078 + $0x128] sm:$0xff]
    %v2105 = vld [vmem:[%s2078 + $0x138] sm:$0xff]
    %v2106 = vld [vmem:[%s2078 + $0x140] sm:$0xff]
    %v2107 = vld [vmem:[%s2078 + $0x150] sm:$0xff]
    %v2108 = vld [vmem:[%s2078 + $0x158] sm:$0xff]
    %v2109 = vld [vmem:[%s2078 + $0x168] sm:$0xff]
    %v2110 = vld [vmem:[%s2078 + $0x170] sm:$0xff]
    %2143 = vrot.lane.b32.xlu0 %v2079, 3
    %v2144 = vpop.permute.xlu0 %2143
    %2145 = vrot.lane.b32.xlu0 %v2080, 3
    %v2146 = vpop.permute.xlu0 %2145
    %2147 = vrot.lane.b32.xlu0 %v2081, 3
    %v2148 = vpop.permute.xlu0 %2147
    %2149 = vrot.lane.b32.xlu0 %v2082, 3
    %v2150 = vpop.permute.xlu0 %2149
    %2151 = vrot.lane.b32.xlu0 %v2083, 3
    %v2152 = vpop.permute.xlu0 %2151
    %2153 = vrot.lane.b32.xlu0 %v2084, 3
    %v2154 = vpop.permute.xlu0 %2153
    %2155 = vrot.lane.b32.xlu0 %v2085, 3
    %v2156 = vpop.permute.xlu0 %2155
    %2157 = vrot.lane.b32.xlu0 %v2086, 3
    %v2158 = vpop.permute.xlu0 %2157
    %2159 = vrot.lane.b32.xlu0 %v2087, 3
    %v2160 = vpop.permute.xlu0 %2159
    %2161 = vrot.lane.b32.xlu0 %v2088, 3
    %v2162 = vpop.permute.xlu0 %2161
    %2163 = vrot.lane.b32.xlu0 %v2089, 3
    %v2164 = vpop.permute.xlu0 %2163
    %2165 = vrot.lane.b32.xlu0 %v2090, 3
    %v2166 = vpop.permute.xlu0 %2165
    %2167 = vrot.lane.b32.xlu0 %v2091, 3
    %v2168 = vpop.permute.xlu0 %2167
    %2169 = vrot.lane.b32.xlu0 %v2092, 3
    %v2170 = vpop.permute.xlu0 %2169
    %2171 = vrot.lane.b32.xlu0 %v2093, 3
    %v2172 = vpop.permute.xlu0 %2171
    %2173 = vrot.lane.b32.xlu0 %v2094, 3
    %v2174 = vpop.permute.xlu0 %2173
    %2175 = vrot.lane.b32.xlu0 %v2095, 3
    %v2176 = vpop.permute.xlu0 %2175
    %2177 = vrot.lane.b32.xlu0 %v2096, 3
    %v2178 = vpop.permute.xlu0 %2177
    %2179 = vrot.lane.b32.xlu0 %v2097, 3
    %v2180 = vpop.permute.xlu0 %2179
    %2181 = vrot.lane.b32.xlu0 %v2098, 3
    %v2182 = vpop.permute.xlu0 %2181
    %2183 = vrot.lane.b32.xlu0 %v2099, 3
    %v2184 = vpop.permute.xlu0 %2183
    %2185 = vrot.lane.b32.xlu0 %v2100, 3
    %v2186 = vpop.permute.xlu0 %2185
    %2187 = vrot.lane.b32.xlu0 %v2101, 3
    %v2188 = vpop.permute.xlu0 %2187
    %2189 = vrot.lane.b32.xlu0 %v2102, 3
    %v2190 = vpop.permute.xlu0 %2189
    %2191 = vrot.lane.b32.xlu0 %v2103, 3
    %v2192 = vpop.permute.xlu0 %2191
    %2193 = vrot.lane.b32.xlu0 %v2104, 3
    %v2194 = vpop.permute.xlu0 %2193
    %2195 = vrot.lane.b32.xlu0 %v2105, 3
    %v2196 = vpop.permute.xlu0 %2195
    %2197 = vrot.lane.b32.xlu0 %v2106, 3
    %v2198 = vpop.permute.xlu0 %2197
    %2199 = vrot.lane.b32.xlu0 %v2107, 3
    %v2200 = vpop.permute.xlu0 %2199
    %2201 = vrot.lane.b32.xlu0 %v2108, 3
    %v2202 = vpop.permute.xlu0 %2201
    %2203 = vrot.lane.b32.xlu0 %v2109, 3
    %v2204 = vpop.permute.xlu0 %2203
    %2205 = vrot.lane.b32.xlu0 %v2110, 3
    %v2206 = vpop.permute.xlu0 %2205
    %2239 = vst.msk [vmem:[#allocation2 + $0x100] sm:$0xff] %vm630, %v2144
    %2240 = vst.msk [vmem:[#allocation2 + $0x108] sm:$0xff] %vm630, %v2146
    %2241 = vst.msk [vmem:[#allocation2 + $0x110] sm:$0xff] %vm630, %v2148
    %2242 = vst.msk [vmem:[#allocation2 + $0x118] sm:$0xff] %vm630, %v2150
    %2243 = vst.msk [vmem:[#allocation2 + $0x120] sm:$0xff] %vm630, %v2152
    %2244 = vst.msk [vmem:[#allocation2 + $0x128] sm:$0xff] %vm630, %v2154
    %2245 = vst.msk [vmem:[#allocation2 + $0x130] sm:$0xff] %vm630, %v2156
    %2246 = vst.msk [vmem:[#allocation2 + $0x138] sm:$0xff] %vm630, %v2158
    %2247 = vst.msk [vmem:[#allocation2 + $0x140] sm:$0xff] %vm630, %v2160
    %2248 = vst.msk [vmem:[#allocation2 + $0x148] sm:$0xff] %vm630, %v2162
    %2249 = vst.msk [vmem:[#allocation2 + $0x150] sm:$0xff] %vm630, %v2164
    %2250 = vst.msk [vmem:[#allocation2 + $0x158] sm:$0xff] %vm630, %v2166
    %2251 = vst.msk [vmem:[#allocation2 + $0x160] sm:$0xff] %vm630, %v2168
    %2252 = vst.msk [vmem:[#allocation2 + $0x168] sm:$0xff] %vm630, %v2170
    %2253 = vst.msk [vmem:[#allocation2 + $0x170] sm:$0xff] %vm630, %v2172
    %2254 = vst.msk [vmem:[#allocation2 + $0x178] sm:$0xff] %vm630, %v2174
    %2255 = vst.msk [vmem:[#allocation2 + $0x180] sm:$0xff] %vm630, %v2176
    %2256 = vst.msk [vmem:[#allocation2 + $0x188] sm:$0xff] %vm630, %v2178
    %2257 = vst.msk [vmem:[#allocation2 + $0x190] sm:$0xff] %vm630, %v2180
    %2258 = vst.msk [vmem:[#allocation2 + $0x198] sm:$0xff] %vm630, %v2182
    %2259 = vst.msk [vmem:[#allocation2 + $0x1a0] sm:$0xff] %vm630, %v2184
    %2260 = vst.msk [vmem:[#allocation2 + $0x1a8] sm:$0xff] %vm630, %v2186
    %2261 = vst.msk [vmem:[#allocation2 + $0x1b0] sm:$0xff] %vm630, %v2188
    %2262 = vst.msk [vmem:[#allocation2 + $0x1b8] sm:$0xff] %vm630, %v2190
    %2263 = vst.msk [vmem:[#allocation2 + $0x1c0] sm:$0xff] %vm630, %v2192
    %2264 = vst.msk [vmem:[#allocation2 + $0x1c8] sm:$0xff] %vm630, %v2194
    %2265 = vst.msk [vmem:[#allocation2 + $0x1d0] sm:$0xff] %vm630, %v2196
    %2266 = vst.msk [vmem:[#allocation2 + $0x1d8] sm:$0xff] %vm630, %v2198
    %2267 = vst.msk [vmem:[#allocation2 + $0x1e0] sm:$0xff] %vm630, %v2200
    %2268 = vst.msk [vmem:[#allocation2 + $0x1e8] sm:$0xff] %vm630, %v2202
    %2269 = vst.msk [vmem:[#allocation2 + $0x1f0] sm:$0xff] %vm630, %v2204
    %2270 = vst.msk [vmem:[#allocation2 + $0x1f8] sm:$0xff] %vm630, %v2206
    %v2271 = vld [vmem:[%s2078 + $0x1] sm:$0xff]
    %v2272 = vld [vmem:[%s2078 + $0x9] sm:$0xff]
    %v2273 = vld [vmem:[%s2078 + $0x19] sm:$0xff]
    %v2274 = vld [vmem:[%s2078 + $0x21] sm:$0xff]
    %v2275 = vld [vmem:[%s2078 + $0x31] sm:$0xff]
    %v2276 = vld [vmem:[%s2078 + $0x39] sm:$0xff]
    %v2277 = vld [vmem:[%s2078 + $0x49] sm:$0xff]
    %v2278 = vld [vmem:[%s2078 + $0x51] sm:$0xff]
    %v2279 = vld [vmem:[%s2078 + $0x61] sm:$0xff]
    %v2280 = vld [vmem:[%s2078 + $0x69] sm:$0xff]
    %v2281 = vld [vmem:[%s2078 + $0x79] sm:$0xff]
    %v2282 = vld [vmem:[%s2078 + $0x81] sm:$0xff]
    %v2283 = vld [vmem:[%s2078 + $0x91] sm:$0xff]
    %v2284 = vld [vmem:[%s2078 + $0x99] sm:$0xff]
    %v2285 = vld [vmem:[%s2078 + $0xa9] sm:$0xff]
    %v2286 = vld [vmem:[%s2078 + $0xb1] sm:$0xff]
    %v2287 = vld [vmem:[%s2078 + $0xc1] sm:$0xff]
    %v2288 = vld [vmem:[%s2078 + $0xc9] sm:$0xff]
    %v2289 = vld [vmem:[%s2078 + $0xd9] sm:$0xff]
    %v2290 = vld [vmem:[%s2078 + $0xe1] sm:$0xff]
    %v2291 = vld [vmem:[%s2078 + $0xf1] sm:$0xff]
    %v2292 = vld [vmem:[%s2078 + $0xf9] sm:$0xff]
    %v2293 = vld [vmem:[%s2078 + $0x109] sm:$0xff]
    %v2294 = vld [vmem:[%s2078 + $0x111] sm:$0xff]
    %v2295 = vld [vmem:[%s2078 + $0x121] sm:$0xff]
    %v2296 = vld [vmem:[%s2078 + $0x129] sm:$0xff]
    %v2297 = vld [vmem:[%s2078 + $0x139] sm:$0xff]
    %v2298 = vld [vmem:[%s2078 + $0x141] sm:$0xff]
    %v2299 = vld [vmem:[%s2078 + $0x151] sm:$0xff]
    %v2300 = vld [vmem:[%s2078 + $0x159] sm:$0xff]
    %v2301 = vld [vmem:[%s2078 + $0x169] sm:$0xff]
    %v2302 = vld [vmem:[%s2078 + $0x171] sm:$0xff]
    %2335 = vrot.lane.b32.xlu0 %v2271, 4
    %v2336 = vpop.permute.xlu0 %2335
    %2337 = vrot.lane.b32.xlu0 %v2272, 4
    %v2338 = vpop.permute.xlu0 %2337
    %2339 = vrot.lane.b32.xlu0 %v2273, 4
    %v2340 = vpop.permute.xlu0 %2339
    %2341 = vrot.lane.b32.xlu0 %v2274, 4
    %v2342 = vpop.permute.xlu0 %2341
    %2343 = vrot.lane.b32.xlu0 %v2275, 4
    %v2344 = vpop.permute.xlu0 %2343
    %2345 = vrot.lane.b32.xlu0 %v2276, 4
    %v2346 = vpop.permute.xlu0 %2345
    %2347 = vrot.lane.b32.xlu0 %v2277, 4
    %v2348 = vpop.permute.xlu0 %2347
    %2349 = vrot.lane.b32.xlu0 %v2278, 4
    %v2350 = vpop.permute.xlu0 %2349
    %2351 = vrot.lane.b32.xlu0 %v2279, 4
    %v2352 = vpop.permute.xlu0 %2351
    %2353 = vrot.lane.b32.xlu0 %v2280, 4
    %v2354 = vpop.permute.xlu0 %2353
    %2355 = vrot.lane.b32.xlu0 %v2281, 4
    %v2356 = vpop.permute.xlu0 %2355
    %2357 = vrot.lane.b32.xlu0 %v2282, 4
    %v2358 = vpop.permute.xlu0 %2357
    %2359 = vrot.lane.b32.xlu0 %v2283, 4
    %v2360 = vpop.permute.xlu0 %2359
    %2361 = vrot.lane.b32.xlu0 %v2284, 4
    %v2362 = vpop.permute.xlu0 %2361
    %2363 = vrot.lane.b32.xlu0 %v2285, 4
    %v2364 = vpop.permute.xlu0 %2363
    %2365 = vrot.lane.b32.xlu0 %v2286, 4
    %v2366 = vpop.permute.xlu0 %2365
    %2367 = vrot.lane.b32.xlu0 %v2287, 4
    %v2368 = vpop.permute.xlu0 %2367
    %2369 = vrot.lane.b32.xlu0 %v2288, 4
    %v2370 = vpop.permute.xlu0 %2369
    %2371 = vrot.lane.b32.xlu0 %v2289, 4
    %v2372 = vpop.permute.xlu0 %2371
    %2373 = vrot.lane.b32.xlu0 %v2290, 4
    %v2374 = vpop.permute.xlu0 %2373
    %2375 = vrot.lane.b32.xlu0 %v2291, 4
    %v2376 = vpop.permute.xlu0 %2375
    %2377 = vrot.lane.b32.xlu0 %v2292, 4
    %v2378 = vpop.permute.xlu0 %2377
    %2379 = vrot.lane.b32.xlu0 %v2293, 4
    %v2380 = vpop.permute.xlu0 %2379
    %2381 = vrot.lane.b32.xlu0 %v2294, 4
    %v2382 = vpop.permute.xlu0 %2381
    %2383 = vrot.lane.b32.xlu0 %v2295, 4
    %v2384 = vpop.permute.xlu0 %2383
    %2385 = vrot.lane.b32.xlu0 %v2296, 4
    %v2386 = vpop.permute.xlu0 %2385
    %2387 = vrot.lane.b32.xlu0 %v2297, 4
    %v2388 = vpop.permute.xlu0 %2387
    %2389 = vrot.lane.b32.xlu0 %v2298, 4
    %v2390 = vpop.permute.xlu0 %2389
    %2391 = vrot.lane.b32.xlu0 %v2299, 4
    %v2392 = vpop.permute.xlu0 %2391
    %2393 = vrot.lane.b32.xlu0 %v2300, 4
    %v2394 = vpop.permute.xlu0 %2393
    %2395 = vrot.lane.b32.xlu0 %v2301, 4
    %v2396 = vpop.permute.xlu0 %2395
    %2397 = vrot.lane.b32.xlu0 %v2302, 4
    %v2398 = vpop.permute.xlu0 %2397
    %2431 = vst.msk [vmem:[#allocation2 + $0x100] sm:$0xff] %vm823, %v2336
    %2432 = vst.msk [vmem:[#allocation2 + $0x108] sm:$0xff] %vm823, %v2338
    %2433 = vst.msk [vmem:[#allocation2 + $0x110] sm:$0xff] %vm823, %v2340
    %2434 = vst.msk [vmem:[#allocation2 + $0x118] sm:$0xff] %vm823, %v2342
    %2435 = vst.msk [vmem:[#allocation2 + $0x120] sm:$0xff] %vm823, %v2344
    %2436 = vst.msk [vmem:[#allocation2 + $0x128] sm:$0xff] %vm823, %v2346
    %2437 = vst.msk [vmem:[#allocation2 + $0x130] sm:$0xff] %vm823, %v2348
    %2438 = vst.msk [vmem:[#allocation2 + $0x138] sm:$0xff] %vm823, %v2350
    %2439 = vst.msk [vmem:[#allocation2 + $0x140] sm:$0xff] %vm823, %v2352
    %2440 = vst.msk [vmem:[#allocation2 + $0x148] sm:$0xff] %vm823, %v2354
    %2441 = vst.msk [vmem:[#allocation2 + $0x150] sm:$0xff] %vm823, %v2356
    %2442 = vst.msk [vmem:[#allocation2 + $0x158] sm:$0xff] %vm823, %v2358
    %2443 = vst.msk [vmem:[#allocation2 + $0x160] sm:$0xff] %vm823, %v2360
    %2444 = vst.msk [vmem:[#allocation2 + $0x168] sm:$0xff] %vm823, %v2362
    %2445 = vst.msk [vmem:[#allocation2 + $0x170] sm:$0xff] %vm823, %v2364
    %2446 = vst.msk [vmem:[#allocation2 + $0x178] sm:$0xff] %vm823, %v2366
    %2447 = vst.msk [vmem:[#allocation2 + $0x180] sm:$0xff] %vm823, %v2368
    %2448 = vst.msk [vmem:[#allocation2 + $0x188] sm:$0xff] %vm823, %v2370
    %2449 = vst.msk [vmem:[#allocation2 + $0x190] sm:$0xff] %vm823, %v2372
    %2450 = vst.msk [vmem:[#allocation2 + $0x198] sm:$0xff] %vm823, %v2374
    %2451 = vst.msk [vmem:[#allocation2 + $0x1a0] sm:$0xff] %vm823, %v2376
    %2452 = vst.msk [vmem:[#allocation2 + $0x1a8] sm:$0xff] %vm823, %v2378
    %2453 = vst.msk [vmem:[#allocation2 + $0x1b0] sm:$0xff] %vm823, %v2380
    %2454 = vst.msk [vmem:[#allocation2 + $0x1b8] sm:$0xff] %vm823, %v2382
    %2455 = vst.msk [vmem:[#allocation2 + $0x1c0] sm:$0xff] %vm823, %v2384
    %2456 = vst.msk [vmem:[#allocation2 + $0x1c8] sm:$0xff] %vm823, %v2386
    %2457 = vst.msk [vmem:[#allocation2 + $0x1d0] sm:$0xff] %vm823, %v2388
    %2458 = vst.msk [vmem:[#allocation2 + $0x1d8] sm:$0xff] %vm823, %v2390
    %2459 = vst.msk [vmem:[#allocation2 + $0x1e0] sm:$0xff] %vm823, %v2392
    %2460 = vst.msk [vmem:[#allocation2 + $0x1e8] sm:$0xff] %vm823, %v2394
    %2461 = vst.msk [vmem:[#allocation2 + $0x1f0] sm:$0xff] %vm823, %v2396
    %2462 = vst.msk [vmem:[#allocation2 + $0x1f8] sm:$0xff] %vm823, %v2398
    %v2463 = vld [vmem:[%s2078 + $0x2] sm:$0xff]
    %v2464 = vld [vmem:[%s2078 + $0xa] sm:$0xff]
    %v2465 = vld [vmem:[%s2078 + $0x1a] sm:$0xff]
    %v2466 = vld [vmem:[%s2078 + $0x22] sm:$0xff]
    %v2467 = vld [vmem:[%s2078 + $0x32] sm:$0xff]
    %v2468 = vld [vmem:[%s2078 + $0x3a] sm:$0xff]
    %v2469 = vld [vmem:[%s2078 + $0x4a] sm:$0xff]
    %v2470 = vld [vmem:[%s2078 + $0x52] sm:$0xff]
    %v2471 = vld [vmem:[%s2078 + $0x62] sm:$0xff]
    %v2472 = vld [vmem:[%s2078 + $0x6a] sm:$0xff]
    %v2473 = vld [vmem:[%s2078 + $0x7a] sm:$0xff]
    %v2474 = vld [vmem:[%s2078 + $0x82] sm:$0xff]
    %v2475 = vld [vmem:[%s2078 + $0x92] sm:$0xff]
    %v2476 = vld [vmem:[%s2078 + $0x9a] sm:$0xff]
    %v2477 = vld [vmem:[%s2078 + $0xaa] sm:$0xff]
    %v2478 = vld [vmem:[%s2078 + $0xb2] sm:$0xff]
    %v2479 = vld [vmem:[%s2078 + $0xc2] sm:$0xff]
    %v2480 = vld [vmem:[%s2078 + $0xca] sm:$0xff]
    %v2481 = vld [vmem:[%s2078 + $0xda] sm:$0xff]
    %v2482 = vld [vmem:[%s2078 + $0xe2] sm:$0xff]
    %v2483 = vld [vmem:[%s2078 + $0xf2] sm:$0xff]
    %v2484 = vld [vmem:[%s2078 + $0xfa] sm:$0xff]
    %v2485 = vld [vmem:[%s2078 + $0x10a] sm:$0xff]
    %v2486 = vld [vmem:[%s2078 + $0x112] sm:$0xff]
    %v2487 = vld [vmem:[%s2078 + $0x122] sm:$0xff]
    %v2488 = vld [vmem:[%s2078 + $0x12a] sm:$0xff]
    %v2489 = vld [vmem:[%s2078 + $0x13a] sm:$0xff]
    %v2490 = vld [vmem:[%s2078 + $0x142] sm:$0xff]
    %v2491 = vld [vmem:[%s2078 + $0x152] sm:$0xff]
    %v2492 = vld [vmem:[%s2078 + $0x15a] sm:$0xff]
    %v2493 = vld [vmem:[%s2078 + $0x16a] sm:$0xff]
    %v2494 = vld [vmem:[%s2078 + $0x172] sm:$0xff]
    %2527 = vrot.lane.b32.xlu0 %v2463, 5
    %v2528 = vpop.permute.xlu0 %2527
    %2529 = vrot.lane.b32.xlu0 %v2464, 5
    %v2530 = vpop.permute.xlu0 %2529
    %2531 = vrot.lane.b32.xlu0 %v2465, 5
    %v2532 = vpop.permute.xlu0 %2531
    %2533 = vrot.lane.b32.xlu0 %v2466, 5
    %v2534 = vpop.permute.xlu0 %2533
    %2535 = vrot.lane.b32.xlu0 %v2467, 5
    %v2536 = vpop.permute.xlu0 %2535
    %2537 = vrot.lane.b32.xlu0 %v2468, 5
    %v2538 = vpop.permute.xlu0 %2537
    %2539 = vrot.lane.b32.xlu0 %v2469, 5
    %v2540 = vpop.permute.xlu0 %2539
    %2541 = vrot.lane.b32.xlu0 %v2470, 5
    %v2542 = vpop.permute.xlu0 %2541
    %2543 = vrot.lane.b32.xlu0 %v2471, 5
    %v2544 = vpop.permute.xlu0 %2543
    %2545 = vrot.lane.b32.xlu0 %v2472, 5
    %v2546 = vpop.permute.xlu0 %2545
    %2547 = vrot.lane.b32.xlu0 %v2473, 5
    %v2548 = vpop.permute.xlu0 %2547
    %2549 = vrot.lane.b32.xlu0 %v2474, 5
    %v2550 = vpop.permute.xlu0 %2549
    %2551 = vrot.lane.b32.xlu0 %v2475, 5
    %v2552 = vpop.permute.xlu0 %2551
    %2553 = vrot.lane.b32.xlu0 %v2476, 5
    %v2554 = vpop.permute.xlu0 %2553
    %2555 = vrot.lane.b32.xlu0 %v2477, 5
    %v2556 = vpop.permute.xlu0 %2555
    %2557 = vrot.lane.b32.xlu0 %v2478, 5
    %v2558 = vpop.permute.xlu0 %2557
    %2559 = vrot.lane.b32.xlu0 %v2479, 5
    %v2560 = vpop.permute.xlu0 %2559
    %2561 = vrot.lane.b32.xlu0 %v2480, 5
    %v2562 = vpop.permute.xlu0 %2561
    %2563 = vrot.lane.b32.xlu0 %v2481, 5
    %v2564 = vpop.permute.xlu0 %2563
    %2565 = vrot.lane.b32.xlu0 %v2482, 5
    %v2566 = vpop.permute.xlu0 %2565
    %2567 = vrot.lane.b32.xlu0 %v2483, 5
    %v2568 = vpop.permute.xlu0 %2567
    %2569 = vrot.lane.b32.xlu0 %v2484, 5
    %v2570 = vpop.permute.xlu0 %2569
    %2571 = vrot.lane.b32.xlu0 %v2485, 5
    %v2572 = vpop.permute.xlu0 %2571
    %2573 = vrot.lane.b32.xlu0 %v2486, 5
    %v2574 = vpop.permute.xlu0 %2573
    %2575 = vrot.lane.b32.xlu0 %v2487, 5
    %v2576 = vpop.permute.xlu0 %2575
    %2577 = vrot.lane.b32.xlu0 %v2488, 5
    %v2578 = vpop.permute.xlu0 %2577
    %2579 = vrot.lane.b32.xlu0 %v2489, 5
    %v2580 = vpop.permute.xlu0 %2579
    %2581 = vrot.lane.b32.xlu0 %v2490, 5
    %v2582 = vpop.permute.xlu0 %2581
    %2583 = vrot.lane.b32.xlu0 %v2491, 5
    %v2584 = vpop.permute.xlu0 %2583
    %2585 = vrot.lane.b32.xlu0 %v2492, 5
    %v2586 = vpop.permute.xlu0 %2585
    %2587 = vrot.lane.b32.xlu0 %v2493, 5
    %v2588 = vpop.permute.xlu0 %2587
    %2589 = vrot.lane.b32.xlu0 %v2494, 5
    %v2590 = vpop.permute.xlu0 %2589
    %2623 = vst.msk [vmem:[#allocation2 + $0x100] sm:$0xff] %vm1016, %v2528
    %2624 = vst.msk [vmem:[#allocation2 + $0x108] sm:$0xff] %vm1016, %v2530
    %2625 = vst.msk [vmem:[#allocation2 + $0x110] sm:$0xff] %vm1016, %v2532
    %2626 = vst.msk [vmem:[#allocation2 + $0x118] sm:$0xff] %vm1016, %v2534
    %2627 = vst.msk [vmem:[#allocation2 + $0x120] sm:$0xff] %vm1016, %v2536
    %2628 = vst.msk [vmem:[#allocation2 + $0x128] sm:$0xff] %vm1016, %v2538
    %2629 = vst.msk [vmem:[#allocation2 + $0x130] sm:$0xff] %vm1016, %v2540
    %2630 = vst.msk [vmem:[#allocation2 + $0x138] sm:$0xff] %vm1016, %v2542
    %2631 = vst.msk [vmem:[#allocation2 + $0x140] sm:$0xff] %vm1016, %v2544
    %2632 = vst.msk [vmem:[#allocation2 + $0x148] sm:$0xff] %vm1016, %v2546
    %2633 = vst.msk [vmem:[#allocation2 + $0x150] sm:$0xff] %vm1016, %v2548
    %2634 = vst.msk [vmem:[#allocation2 + $0x158] sm:$0xff] %vm1016, %v2550
    %2635 = vst.msk [vmem:[#allocation2 + $0x160] sm:$0xff] %vm1016, %v2552
    %2636 = vst.msk [vmem:[#allocation2 + $0x168] sm:$0xff] %vm1016, %v2554
    %2637 = vst.msk [vmem:[#allocation2 + $0x170] sm:$0xff] %vm1016, %v2556
    %2638 = vst.msk [vmem:[#allocation2 + $0x178] sm:$0xff] %vm1016, %v2558
    %2639 = vst.msk [vmem:[#allocation2 + $0x180] sm:$0xff] %vm1016, %v2560
    %2640 = vst.msk [vmem:[#allocation2 + $0x188] sm:$0xff] %vm1016, %v2562
    %2641 = vst.msk [vmem:[#allocation2 + $0x190] sm:$0xff] %vm1016, %v2564
    %2642 = vst.msk [vmem:[#allocation2 + $0x198] sm:$0xff] %vm1016, %v2566
    %2643 = vst.msk [vmem:[#allocation2 + $0x1a0] sm:$0xff] %vm1016, %v2568
    %2644 = vst.msk [vmem:[#allocation2 + $0x1a8] sm:$0xff] %vm1016, %v2570
    %2645 = vst.msk [vmem:[#allocation2 + $0x1b0] sm:$0xff] %vm1016, %v2572
    %2646 = vst.msk [vmem:[#allocation2 + $0x1b8] sm:$0xff] %vm1016, %v2574
    %2647 = vst.msk [vmem:[#allocation2 + $0x1c0] sm:$0xff] %vm1016, %v2576
    %2648 = vst.msk [vmem:[#allocation2 + $0x1c8] sm:$0xff] %vm1016, %v2578
    %2649 = vst.msk [vmem:[#allocation2 + $0x1d0] sm:$0xff] %vm1016, %v2580
    %2650 = vst.msk [vmem:[#allocation2 + $0x1d8] sm:$0xff] %vm1016, %v2582
    %2651 = vst.msk [vmem:[#allocation2 + $0x1e0] sm:$0xff] %vm1016, %v2584
    %2652 = vst.msk [vmem:[#allocation2 + $0x1e8] sm:$0xff] %vm1016, %v2586
    %2653 = vst.msk [vmem:[#allocation2 + $0x1f0] sm:$0xff] %vm1016, %v2588
    %2654 = vst.msk [vmem:[#allocation2 + $0x1f8] sm:$0xff] %vm1016, %v2590
    %s2655 = scalar_lea.vmem %s0, 480
    %v2656 = vld [vmem:[%s2655] sm:$0xff]
    %v2657 = vld [vmem:[%s2655 + $0x8] sm:$0xff]
    %v2658 = vld [vmem:[%s2655 + $0x18] sm:$0xff]
    %v2659 = vld [vmem:[%s2655 + $0x20] sm:$0xff]
    %v2660 = vld [vmem:[%s2655 + $0x30] sm:$0xff]
    %v2661 = vld [vmem:[%s2655 + $0x38] sm:$0xff]
    %v2662 = vld [vmem:[%s2655 + $0x48] sm:$0xff]
    %v2663 = vld [vmem:[%s2655 + $0x50] sm:$0xff]
    %v2664 = vld [vmem:[%s2655 + $0x60] sm:$0xff]
    %v2665 = vld [vmem:[%s2655 + $0x68] sm:$0xff]
    %v2666 = vld [vmem:[%s2655 + $0x78] sm:$0xff]
    %v2667 = vld [vmem:[%s2655 + $0x80] sm:$0xff]
    %v2668 = vld [vmem:[%s2655 + $0x90] sm:$0xff]
    %v2669 = vld [vmem:[%s2655 + $0x98] sm:$0xff]
    %v2670 = vld [vmem:[%s2655 + $0xa8] sm:$0xff]
    %v2671 = vld [vmem:[%s2655 + $0xb0] sm:$0xff]
    %v2672 = vld [vmem:[%s2655 + $0xc0] sm:$0xff]
    %v2673 = vld [vmem:[%s2655 + $0xc8] sm:$0xff]
    %v2674 = vld [vmem:[%s2655 + $0xd8] sm:$0xff]
    %v2675 = vld [vmem:[%s2655 + $0xe0] sm:$0xff]
    %v2676 = vld [vmem:[%s2655 + $0xf0] sm:$0xff]
    %v2677 = vld [vmem:[%s2655 + $0xf8] sm:$0xff]
    %v2678 = vld [vmem:[%s2655 + $0x108] sm:$0xff]
    %v2679 = vld [vmem:[%s2655 + $0x110] sm:$0xff]
    %v2680 = vld [vmem:[%s2655 + $0x120] sm:$0xff]
    %v2681 = vld [vmem:[%s2655 + $0x128] sm:$0xff]
    %v2682 = vld [vmem:[%s2655 + $0x138] sm:$0xff]
    %v2683 = vld [vmem:[%s2655 + $0x140] sm:$0xff]
    %v2684 = vld [vmem:[%s2655 + $0x150] sm:$0xff]
    %v2685 = vld [vmem:[%s2655 + $0x158] sm:$0xff]
    %v2686 = vld [vmem:[%s2655 + $0x168] sm:$0xff]
    %v2687 = vld [vmem:[%s2655 + $0x170] sm:$0xff]
    %2720 = vrot.lane.b32.xlu0 %v2656, 6
    %v2721 = vpop.permute.xlu0 %2720
    %2722 = vrot.lane.b32.xlu0 %v2657, 6
    %v2723 = vpop.permute.xlu0 %2722
    %2724 = vrot.lane.b32.xlu0 %v2658, 6
    %v2725 = vpop.permute.xlu0 %2724
    %2726 = vrot.lane.b32.xlu0 %v2659, 6
    %v2727 = vpop.permute.xlu0 %2726
    %2728 = vrot.lane.b32.xlu0 %v2660, 6
    %v2729 = vpop.permute.xlu0 %2728
    %2730 = vrot.lane.b32.xlu0 %v2661, 6
    %v2731 = vpop.permute.xlu0 %2730
    %2732 = vrot.lane.b32.xlu0 %v2662, 6
    %v2733 = vpop.permute.xlu0 %2732
    %2734 = vrot.lane.b32.xlu0 %v2663, 6
    %v2735 = vpop.permute.xlu0 %2734
    %2736 = vrot.lane.b32.xlu0 %v2664, 6
    %v2737 = vpop.permute.xlu0 %2736
    %2738 = vrot.lane.b32.xlu0 %v2665, 6
    %v2739 = vpop.permute.xlu0 %2738
    %2740 = vrot.lane.b32.xlu0 %v2666, 6
    %v2741 = vpop.permute.xlu0 %2740
    %2742 = vrot.lane.b32.xlu0 %v2667, 6
    %v2743 = vpop.permute.xlu0 %2742
    %2744 = vrot.lane.b32.xlu0 %v2668, 6
    %v2745 = vpop.permute.xlu0 %2744
    %2746 = vrot.lane.b32.xlu0 %v2669, 6
    %v2747 = vpop.permute.xlu0 %2746
    %2748 = vrot.lane.b32.xlu0 %v2670, 6
    %v2749 = vpop.permute.xlu0 %2748
    %2750 = vrot.lane.b32.xlu0 %v2671, 6
    %v2751 = vpop.permute.xlu0 %2750
    %2752 = vrot.lane.b32.xlu0 %v2672, 6
    %v2753 = vpop.permute.xlu0 %2752
    %2754 = vrot.lane.b32.xlu0 %v2673, 6
    %v2755 = vpop.permute.xlu0 %2754
    %2756 = vrot.lane.b32.xlu0 %v2674, 6
    %v2757 = vpop.permute.xlu0 %2756
    %2758 = vrot.lane.b32.xlu0 %v2675, 6
    %v2759 = vpop.permute.xlu0 %2758
    %2760 = vrot.lane.b32.xlu0 %v2676, 6
    %v2761 = vpop.permute.xlu0 %2760
    %2762 = vrot.lane.b32.xlu0 %v2677, 6
    %v2763 = vpop.permute.xlu0 %2762
    %2764 = vrot.lane.b32.xlu0 %v2678, 6
    %v2765 = vpop.permute.xlu0 %2764
    %2766 = vrot.lane.b32.xlu0 %v2679, 6
    %v2767 = vpop.permute.xlu0 %2766
    %2768 = vrot.lane.b32.xlu0 %v2680, 6
    %v2769 = vpop.permute.xlu0 %2768
    %2770 = vrot.lane.b32.xlu0 %v2681, 6
    %v2771 = vpop.permute.xlu0 %2770
    %2772 = vrot.lane.b32.xlu0 %v2682, 6
    %v2773 = vpop.permute.xlu0 %2772
    %2774 = vrot.lane.b32.xlu0 %v2683, 6
    %v2775 = vpop.permute.xlu0 %2774
    %2776 = vrot.lane.b32.xlu0 %v2684, 6
    %v2777 = vpop.permute.xlu0 %2776
    %2778 = vrot.lane.b32.xlu0 %v2685, 6
    %v2779 = vpop.permute.xlu0 %2778
    %2780 = vrot.lane.b32.xlu0 %v2686, 6
    %v2781 = vpop.permute.xlu0 %2780
    %2782 = vrot.lane.b32.xlu0 %v2687, 6
    %v2783 = vpop.permute.xlu0 %2782
    %2816 = vst.msk [vmem:[#allocation2 + $0x100] sm:$0xff] %vm1210, %v2721
    %2817 = vst.msk [vmem:[#allocation2 + $0x108] sm:$0xff] %vm1210, %v2723
    %2818 = vst.msk [vmem:[#allocation2 + $0x110] sm:$0xff] %vm1210, %v2725
    %2819 = vst.msk [vmem:[#allocation2 + $0x118] sm:$0xff] %vm1210, %v2727
    %2820 = vst.msk [vmem:[#allocation2 + $0x120] sm:$0xff] %vm1210, %v2729
    %2821 = vst.msk [vmem:[#allocation2 + $0x128] sm:$0xff] %vm1210, %v2731
    %2822 = vst.msk [vmem:[#allocation2 + $0x130] sm:$0xff] %vm1210, %v2733
    %2823 = vst.msk [vmem:[#allocation2 + $0x138] sm:$0xff] %vm1210, %v2735
    %2824 = vst.msk [vmem:[#allocation2 + $0x140] sm:$0xff] %vm1210, %v2737
    %2825 = vst.msk [vmem:[#allocation2 + $0x148] sm:$0xff] %vm1210, %v2739
    %2826 = vst.msk [vmem:[#allocation2 + $0x150] sm:$0xff] %vm1210, %v2741
    %2827 = vst.msk [vmem:[#allocation2 + $0x158] sm:$0xff] %vm1210, %v2743
    %2828 = vst.msk [vmem:[#allocation2 + $0x160] sm:$0xff] %vm1210, %v2745
    %2829 = vst.msk [vmem:[#allocation2 + $0x168] sm:$0xff] %vm1210, %v2747
    %2830 = vst.msk [vmem:[#allocation2 + $0x170] sm:$0xff] %vm1210, %v2749
    %2831 = vst.msk [vmem:[#allocation2 + $0x178] sm:$0xff] %vm1210, %v2751
    %2832 = vst.msk [vmem:[#allocation2 + $0x180] sm:$0xff] %vm1210, %v2753
    %2833 = vst.msk [vmem:[#allocation2 + $0x188] sm:$0xff] %vm1210, %v2755
    %2834 = vst.msk [vmem:[#allocation2 + $0x190] sm:$0xff] %vm1210, %v2757
    %2835 = vst.msk [vmem:[#allocation2 + $0x198] sm:$0xff] %vm1210, %v2759
    %2836 = vst.msk [vmem:[#allocation2 + $0x1a0] sm:$0xff] %vm1210, %v2761
    %2837 = vst.msk [vmem:[#allocation2 + $0x1a8] sm:$0xff] %vm1210, %v2763
    %2838 = vst.msk [vmem:[#allocation2 + $0x1b0] sm:$0xff] %vm1210, %v2765
    %2839 = vst.msk [vmem:[#allocation2 + $0x1b8] sm:$0xff] %vm1210, %v2767
    %2840 = vst.msk [vmem:[#allocation2 + $0x1c0] sm:$0xff] %vm1210, %v2769
    %2841 = vst.msk [vmem:[#allocation2 + $0x1c8] sm:$0xff] %vm1210, %v2771
    %2842 = vst.msk [vmem:[#allocation2 + $0x1d0] sm:$0xff] %vm1210, %v2773
    %2843 = vst.msk [vmem:[#allocation2 + $0x1d8] sm:$0xff] %vm1210, %v2775
    %2844 = vst.msk [vmem:[#allocation2 + $0x1e0] sm:$0xff] %vm1210, %v2777
    %2845 = vst.msk [vmem:[#allocation2 + $0x1e8] sm:$0xff] %vm1210, %v2779
    %2846 = vst.msk [vmem:[#allocation2 + $0x1f0] sm:$0xff] %vm1210, %v2781
    %2847 = vst.msk [vmem:[#allocation2 + $0x1f8] sm:$0xff] %vm1210, %v2783
    %v2848 = vld [vmem:[%s2655 + $0x1] sm:$0xff]
    %v2849 = vld [vmem:[%s2655 + $0x9] sm:$0xff]
    %v2850 = vld [vmem:[%s2655 + $0x19] sm:$0xff]
    %v2851 = vld [vmem:[%s2655 + $0x21] sm:$0xff]
    %v2852 = vld [vmem:[%s2655 + $0x31] sm:$0xff]
    %v2853 = vld [vmem:[%s2655 + $0x39] sm:$0xff]
    %v2854 = vld [vmem:[%s2655 + $0x49] sm:$0xff]
    %v2855 = vld [vmem:[%s2655 + $0x51] sm:$0xff]
    %v2856 = vld [vmem:[%s2655 + $0x61] sm:$0xff]
    %v2857 = vld [vmem:[%s2655 + $0x69] sm:$0xff]
    %v2858 = vld [vmem:[%s2655 + $0x79] sm:$0xff]
    %v2859 = vld [vmem:[%s2655 + $0x81] sm:$0xff]
    %v2860 = vld [vmem:[%s2655 + $0x91] sm:$0xff]
    %v2861 = vld [vmem:[%s2655 + $0x99] sm:$0xff]
    %v2862 = vld [vmem:[%s2655 + $0xa9] sm:$0xff]
    %v2863 = vld [vmem:[%s2655 + $0xb1] sm:$0xff]
    %v2864 = vld [vmem:[%s2655 + $0xc1] sm:$0xff]
    %v2865 = vld [vmem:[%s2655 + $0xc9] sm:$0xff]
    %v2866 = vld [vmem:[%s2655 + $0xd9] sm:$0xff]
    %v2867 = vld [vmem:[%s2655 + $0xe1] sm:$0xff]
    %v2868 = vld [vmem:[%s2655 + $0xf1] sm:$0xff]
    %v2869 = vld [vmem:[%s2655 + $0xf9] sm:$0xff]
    %v2870 = vld [vmem:[%s2655 + $0x109] sm:$0xff]
    %v2871 = vld [vmem:[%s2655 + $0x111] sm:$0xff]
    %v2872 = vld [vmem:[%s2655 + $0x121] sm:$0xff]
    %v2873 = vld [vmem:[%s2655 + $0x129] sm:$0xff]
    %v2874 = vld [vmem:[%s2655 + $0x139] sm:$0xff]
    %v2875 = vld [vmem:[%s2655 + $0x141] sm:$0xff]
    %v2876 = vld [vmem:[%s2655 + $0x151] sm:$0xff]
    %v2877 = vld [vmem:[%s2655 + $0x159] sm:$0xff]
    %v2878 = vld [vmem:[%s2655 + $0x169] sm:$0xff]
    %v2879 = vld [vmem:[%s2655 + $0x171] sm:$0xff]
    %2912 = vrot.lane.b32.xlu0 %v2848, 7
    %v2913 = vpop.permute.xlu0 %2912
    %2914 = vrot.lane.b32.xlu0 %v2849, 7
    %v2915 = vpop.permute.xlu0 %2914
    %2916 = vrot.lane.b32.xlu0 %v2850, 7
    %v2917 = vpop.permute.xlu0 %2916
    %2918 = vrot.lane.b32.xlu0 %v2851, 7
    %v2919 = vpop.permute.xlu0 %2918
    %2920 = vrot.lane.b32.xlu0 %v2852, 7
    %v2921 = vpop.permute.xlu0 %2920
    %2922 = vrot.lane.b32.xlu0 %v2853, 7
    %v2923 = vpop.permute.xlu0 %2922
    %2924 = vrot.lane.b32.xlu0 %v2854, 7
    %v2925 = vpop.permute.xlu0 %2924
    %2926 = vrot.lane.b32.xlu0 %v2855, 7
    %v2927 = vpop.permute.xlu0 %2926
    %2928 = vrot.lane.b32.xlu0 %v2856, 7
    %v2929 = vpop.permute.xlu0 %2928
    %2930 = vrot.lane.b32.xlu0 %v2857, 7
    %v2931 = vpop.permute.xlu0 %2930
    %2932 = vrot.lane.b32.xlu0 %v2858, 7
    %v2933 = vpop.permute.xlu0 %2932
    %2934 = vrot.lane.b32.xlu0 %v2859, 7
    %v2935 = vpop.permute.xlu0 %2934
    %2936 = vrot.lane.b32.xlu0 %v2860, 7
    %v2937 = vpop.permute.xlu0 %2936
    %2938 = vrot.lane.b32.xlu0 %v2861, 7
    %v2939 = vpop.permute.xlu0 %2938
    %2940 = vrot.lane.b32.xlu0 %v2862, 7
    %v2941 = vpop.permute.xlu0 %2940
    %2942 = vrot.lane.b32.xlu0 %v2863, 7
    %v2943 = vpop.permute.xlu0 %2942
    %2944 = vrot.lane.b32.xlu0 %v2864, 7
    %v2945 = vpop.permute.xlu0 %2944
    %2946 = vrot.lane.b32.xlu0 %v2865, 7
    %v2947 = vpop.permute.xlu0 %2946
    %2948 = vrot.lane.b32.xlu0 %v2866, 7
    %v2949 = vpop.permute.xlu0 %2948
    %2950 = vrot.lane.b32.xlu0 %v2867, 7
    %v2951 = vpop.permute.xlu0 %2950
    %2952 = vrot.lane.b32.xlu0 %v2868, 7
    %v2953 = vpop.permute.xlu0 %2952
    %2954 = vrot.lane.b32.xlu0 %v2869, 7
    %v2955 = vpop.permute.xlu0 %2954
    %2956 = vrot.lane.b32.xlu0 %v2870, 7
    %v2957 = vpop.permute.xlu0 %2956
    %2958 = vrot.lane.b32.xlu0 %v2871, 7
    %v2959 = vpop.permute.xlu0 %2958
    %2960 = vrot.lane.b32.xlu0 %v2872, 7
    %v2961 = vpop.permute.xlu0 %2960
    %2962 = vrot.lane.b32.xlu0 %v2873, 7
    %v2963 = vpop.permute.xlu0 %2962
    %2964 = vrot.lane.b32.xlu0 %v2874, 7
    %v2965 = vpop.permute.xlu0 %2964
    %2966 = vrot.lane.b32.xlu0 %v2875, 7
    %v2967 = vpop.permute.xlu0 %2966
    %2968 = vrot.lane.b32.xlu0 %v2876, 7
    %v2969 = vpop.permute.xlu0 %2968
    %2970 = vrot.lane.b32.xlu0 %v2877, 7
    %v2971 = vpop.permute.xlu0 %2970
    %2972 = vrot.lane.b32.xlu0 %v2878, 7
    %v2973 = vpop.permute.xlu0 %2972
    %2974 = vrot.lane.b32.xlu0 %v2879, 7
    %v2975 = vpop.permute.xlu0 %2974
    %3008 = vst.msk [vmem:[#allocation2 + $0x100] sm:$0xff] %vm1403, %v2913
    %3009 = vst.msk [vmem:[#allocation2 + $0x108] sm:$0xff] %vm1403, %v2915
    %3010 = vst.msk [vmem:[#allocation2 + $0x110] sm:$0xff] %vm1403, %v2917
    %3011 = vst.msk [vmem:[#allocation2 + $0x118] sm:$0xff] %vm1403, %v2919
    %3012 = vst.msk [vmem:[#allocation2 + $0x120] sm:$0xff] %vm1403, %v2921
    %3013 = vst.msk [vmem:[#allocation2 + $0x128] sm:$0xff] %vm1403, %v2923
    %3014 = vst.msk [vmem:[#allocation2 + $0x130] sm:$0xff] %vm1403, %v2925
    %3015 = vst.msk [vmem:[#allocation2 + $0x138] sm:$0xff] %vm1403, %v2927
    %3016 = vst.msk [vmem:[#allocation2 + $0x140] sm:$0xff] %vm1403, %v2929
    %3017 = vst.msk [vmem:[#allocation2 + $0x148] sm:$0xff] %vm1403, %v2931
    %3018 = vst.msk [vmem:[#allocation2 + $0x150] sm:$0xff] %vm1403, %v2933
    %3019 = vst.msk [vmem:[#allocation2 + $0x158] sm:$0xff] %vm1403, %v2935
    %3020 = vst.msk [vmem:[#allocation2 + $0x160] sm:$0xff] %vm1403, %v2937
    %3021 = vst.msk [vmem:[#allocation2 + $0x168] sm:$0xff] %vm1403, %v2939
    %3022 = vst.msk [vmem:[#allocation2 + $0x170] sm:$0xff] %vm1403, %v2941
    %3023 = vst.msk [vmem:[#allocation2 + $0x178] sm:$0xff] %vm1403, %v2943
    %3024 = vst.msk [vmem:[#allocation2 + $0x180] sm:$0xff] %vm1403, %v2945
    %3025 = vst.msk [vmem:[#allocation2 + $0x188] sm:$0xff] %vm1403, %v2947
    %3026 = vst.msk [vmem:[#allocation2 + $0x190] sm:$0xff] %vm1403, %v2949
    %3027 = vst.msk [vmem:[#allocation2 + $0x198] sm:$0xff] %vm1403, %v2951
    %3028 = vst.msk [vmem:[#allocation2 + $0x1a0] sm:$0xff] %vm1403, %v2953
    %3029 = vst.msk [vmem:[#allocation2 + $0x1a8] sm:$0xff] %vm1403, %v2955
    %3030 = vst.msk [vmem:[#allocation2 + $0x1b0] sm:$0xff] %vm1403, %v2957
    %3031 = vst.msk [vmem:[#allocation2 + $0x1b8] sm:$0xff] %vm1403, %v2959
    %3032 = vst.msk [vmem:[#allocation2 + $0x1c0] sm:$0xff] %vm1403, %v2961
    %3033 = vst.msk [vmem:[#allocation2 + $0x1c8] sm:$0xff] %vm1403, %v2963
    %3034 = vst.msk [vmem:[#allocation2 + $0x1d0] sm:$0xff] %vm1403, %v2965
    %3035 = vst.msk [vmem:[#allocation2 + $0x1d8] sm:$0xff] %vm1403, %v2967
    %3036 = vst.msk [vmem:[#allocation2 + $0x1e0] sm:$0xff] %vm1403, %v2969
    %3037 = vst.msk [vmem:[#allocation2 + $0x1e8] sm:$0xff] %vm1403, %v2971
    %3038 = vst.msk [vmem:[#allocation2 + $0x1f0] sm:$0xff] %vm1403, %v2973
    %3039 = vst.msk [vmem:[#allocation2 + $0x1f8] sm:$0xff] %vm1403, %v2975
    %v3040 = vld [vmem:[%s2655 + $0x2] sm:$0xff]
    %v3041 = vld [vmem:[%s2655 + $0xa] sm:$0xff]
    %v3042 = vld [vmem:[%s2655 + $0x1a] sm:$0xff]
    %v3043 = vld [vmem:[%s2655 + $0x22] sm:$0xff]
    %v3044 = vld [vmem:[%s2655 + $0x32] sm:$0xff]
    %v3045 = vld [vmem:[%s2655 + $0x3a] sm:$0xff]
    %v3046 = vld [vmem:[%s2655 + $0x4a] sm:$0xff]
    %v3047 = vld [vmem:[%s2655 + $0x52] sm:$0xff]
    %v3048 = vld [vmem:[%s2655 + $0x62] sm:$0xff]
    %v3049 = vld [vmem:[%s2655 + $0x6a] sm:$0xff]
    %v3050 = vld [vmem:[%s2655 + $0x7a] sm:$0xff]
    %v3051 = vld [vmem:[%s2655 + $0x82] sm:$0xff]
    %v3052 = vld [vmem:[%s2655 + $0x92] sm:$0xff]
    %v3053 = vld [vmem:[%s2655 + $0x9a] sm:$0xff]
    %v3054 = vld [vmem:[%s2655 + $0xaa] sm:$0xff]
    %v3055 = vld [vmem:[%s2655 + $0xb2] sm:$0xff]
    %v3056 = vld [vmem:[%s2655 + $0xc2] sm:$0xff]
    %v3057 = vld [vmem:[%s2655 + $0xca] sm:$0xff]
    %v3058 = vld [vmem:[%s2655 + $0xda] sm:$0xff]
    %v3059 = vld [vmem:[%s2655 + $0xe2] sm:$0xff]
    %v3060 = vld [vmem:[%s2655 + $0xf2] sm:$0xff]
    %v3061 = vld [vmem:[%s2655 + $0xfa] sm:$0xff]
    %v3062 = vld [vmem:[%s2655 + $0x10a] sm:$0xff]
    %v3063 = vld [vmem:[%s2655 + $0x112] sm:$0xff]
    %v3064 = vld [vmem:[%s2655 + $0x122] sm:$0xff]
    %v3065 = vld [vmem:[%s2655 + $0x12a] sm:$0xff]
    %v3066 = vld [vmem:[%s2655 + $0x13a] sm:$0xff]
    %v3067 = vld [vmem:[%s2655 + $0x142] sm:$0xff]
    %v3068 = vld [vmem:[%s2655 + $0x152] sm:$0xff]
    %v3069 = vld [vmem:[%s2655 + $0x15a] sm:$0xff]
    %v3070 = vld [vmem:[%s2655 + $0x16a] sm:$0xff]
    %v3071 = vld [vmem:[%s2655 + $0x172] sm:$0xff]
    %3104 = vrot.lane.b32.xlu0 %v3040, 8
    %v3105 = vpop.permute.xlu0 %3104
    %3106 = vrot.lane.b32.xlu0 %v3041, 8
    %v3107 = vpop.permute.xlu0 %3106
    %3108 = vrot.lane.b32.xlu0 %v3042, 8
    %v3109 = vpop.permute.xlu0 %3108
    %3110 = vrot.lane.b32.xlu0 %v3043, 8
    %v3111 = vpop.permute.xlu0 %3110
    %3112 = vrot.lane.b32.xlu0 %v3044, 8
    %v3113 = vpop.permute.xlu0 %3112
    %3114 = vrot.lane.b32.xlu0 %v3045, 8
    %v3115 = vpop.permute.xlu0 %3114
    %3116 = vrot.lane.b32.xlu0 %v3046, 8
    %v3117 = vpop.permute.xlu0 %3116
    %3118 = vrot.lane.b32.xlu0 %v3047, 8
    %v3119 = vpop.permute.xlu0 %3118
    %3120 = vrot.lane.b32.xlu0 %v3048, 8
    %v3121 = vpop.permute.xlu0 %3120
    %3122 = vrot.lane.b32.xlu0 %v3049, 8
    %v3123 = vpop.permute.xlu0 %3122
    %3124 = vrot.lane.b32.xlu0 %v3050, 8
    %v3125 = vpop.permute.xlu0 %3124
    %3126 = vrot.lane.b32.xlu0 %v3051, 8
    %v3127 = vpop.permute.xlu0 %3126
    %3128 = vrot.lane.b32.xlu0 %v3052, 8
    %v3129 = vpop.permute.xlu0 %3128
    %3130 = vrot.lane.b32.xlu0 %v3053, 8
    %v3131 = vpop.permute.xlu0 %3130
    %3132 = vrot.lane.b32.xlu0 %v3054, 8
    %v3133 = vpop.permute.xlu0 %3132
    %3134 = vrot.lane.b32.xlu0 %v3055, 8
    %v3135 = vpop.permute.xlu0 %3134
    %3136 = vrot.lane.b32.xlu0 %v3056, 8
    %v3137 = vpop.permute.xlu0 %3136
    %3138 = vrot.lane.b32.xlu0 %v3057, 8
    %v3139 = vpop.permute.xlu0 %3138
    %3140 = vrot.lane.b32.xlu0 %v3058, 8
    %v3141 = vpop.permute.xlu0 %3140
    %3142 = vrot.lane.b32.xlu0 %v3059, 8
    %v3143 = vpop.permute.xlu0 %3142
    %3144 = vrot.lane.b32.xlu0 %v3060, 8
    %v3145 = vpop.permute.xlu0 %3144
    %3146 = vrot.lane.b32.xlu0 %v3061, 8
    %v3147 = vpop.permute.xlu0 %3146
    %3148 = vrot.lane.b32.xlu0 %v3062, 8
    %v3149 = vpop.permute.xlu0 %3148
    %3150 = vrot.lane.b32.xlu0 %v3063, 8
    %v3151 = vpop.permute.xlu0 %3150
    %3152 = vrot.lane.b32.xlu0 %v3064, 8
    %v3153 = vpop.permute.xlu0 %3152
    %3154 = vrot.lane.b32.xlu0 %v3065, 8
    %v3155 = vpop.permute.xlu0 %3154
    %3156 = vrot.lane.b32.xlu0 %v3066, 8
    %v3157 = vpop.permute.xlu0 %3156
    %3158 = vrot.lane.b32.xlu0 %v3067, 8
    %v3159 = vpop.permute.xlu0 %3158
    %3160 = vrot.lane.b32.xlu0 %v3068, 8
    %v3161 = vpop.permute.xlu0 %3160
    %3162 = vrot.lane.b32.xlu0 %v3069, 8
    %v3163 = vpop.permute.xlu0 %3162
    %3164 = vrot.lane.b32.xlu0 %v3070, 8
    %v3165 = vpop.permute.xlu0 %3164
    %3166 = vrot.lane.b32.xlu0 %v3071, 8
    %v3167 = vpop.permute.xlu0 %3166
    %3200 = vst.msk [vmem:[#allocation2 + $0x100] sm:$0xff] %vm1596, %v3105
    %3201 = vst.msk [vmem:[#allocation2 + $0x108] sm:$0xff] %vm1596, %v3107
    %3202 = vst.msk [vmem:[#allocation2 + $0x110] sm:$0xff] %vm1596, %v3109
    %3203 = vst.msk [vmem:[#allocation2 + $0x118] sm:$0xff] %vm1596, %v3111
    %3204 = vst.msk [vmem:[#allocation2 + $0x120] sm:$0xff] %vm1596, %v3113
    %3205 = vst.msk [vmem:[#allocation2 + $0x128] sm:$0xff] %vm1596, %v3115
    %3206 = vst.msk [vmem:[#allocation2 + $0x130] sm:$0xff] %vm1596, %v3117
    %3207 = vst.msk [vmem:[#allocation2 + $0x138] sm:$0xff] %vm1596, %v3119
    %3208 = vst.msk [vmem:[#allocation2 + $0x140] sm:$0xff] %vm1596, %v3121
    %3209 = vst.msk [vmem:[#allocation2 + $0x148] sm:$0xff] %vm1596, %v3123
    %3210 = vst.msk [vmem:[#allocation2 + $0x150] sm:$0xff] %vm1596, %v3125
    %3211 = vst.msk [vmem:[#allocation2 + $0x158] sm:$0xff] %vm1596, %v3127
    %3212 = vst.msk [vmem:[#allocation2 + $0x160] sm:$0xff] %vm1596, %v3129
    %3213 = vst.msk [vmem:[#allocation2 + $0x168] sm:$0xff] %vm1596, %v3131
    %3214 = vst.msk [vmem:[#allocation2 + $0x170] sm:$0xff] %vm1596, %v3133
    %3215 = vst.msk [vmem:[#allocation2 + $0x178] sm:$0xff] %vm1596, %v3135
    %3216 = vst.msk [vmem:[#allocation2 + $0x180] sm:$0xff] %vm1596, %v3137
    %3217 = vst.msk [vmem:[#allocation2 + $0x188] sm:$0xff] %vm1596, %v3139
    %3218 = vst.msk [vmem:[#allocation2 + $0x190] sm:$0xff] %vm1596, %v3141
    %3219 = vst.msk [vmem:[#allocation2 + $0x198] sm:$0xff] %vm1596, %v3143
    %3220 = vst.msk [vmem:[#allocation2 + $0x1a0] sm:$0xff] %vm1596, %v3145
    %3221 = vst.msk [vmem:[#allocation2 + $0x1a8] sm:$0xff] %vm1596, %v3147
    %3222 = vst.msk [vmem:[#allocation2 + $0x1b0] sm:$0xff] %vm1596, %v3149
    %3223 = vst.msk [vmem:[#allocation2 + $0x1b8] sm:$0xff] %vm1596, %v3151
    %3224 = vst.msk [vmem:[#allocation2 + $0x1c0] sm:$0xff] %vm1596, %v3153
    %3225 = vst.msk [vmem:[#allocation2 + $0x1c8] sm:$0xff] %vm1596, %v3155
    %3226 = vst.msk [vmem:[#allocation2 + $0x1d0] sm:$0xff] %vm1596, %v3157
    %3227 = vst.msk [vmem:[#allocation2 + $0x1d8] sm:$0xff] %vm1596, %v3159
    %3228 = vst.msk [vmem:[#allocation2 + $0x1e0] sm:$0xff] %vm1596, %v3161
    %3229 = vst.msk [vmem:[#allocation2 + $0x1e8] sm:$0xff] %vm1596, %v3163
    %3230 = vst.msk [vmem:[#allocation2 + $0x1f0] sm:$0xff] %vm1596, %v3165
    %3231 = vst.msk [vmem:[#allocation2 + $0x1f8] sm:$0xff] %vm1596, %v3167
    %v3232 = vld [vmem:[#allocation2] sm:$0xff]
    %v3233 = vld [vmem:[#allocation2 + $0x8] sm:$0xff]
    %v3234 = vld [vmem:[#allocation2 + $0x10] sm:$0xff]
    %v3235 = vld [vmem:[#allocation2 + $0x18] sm:$0xff]
    %v3236 = vld [vmem:[#allocation2 + $0x20] sm:$0xff]
    %v3237 = vld [vmem:[#allocation2 + $0x28] sm:$0xff]
    %v3238 = vld [vmem:[#allocation2 + $0x30] sm:$0xff]
    %v3239 = vld [vmem:[#allocation2 + $0x38] sm:$0xff]
    %v3240 = vld [vmem:[#allocation2 + $0x40] sm:$0xff]
    %v3241 = vld [vmem:[#allocation2 + $0x48] sm:$0xff]
    %v3242 = vld [vmem:[#allocation2 + $0x50] sm:$0xff]
    %v3243 = vld [vmem:[#allocation2 + $0x58] sm:$0xff]
    %v3244 = vld [vmem:[#allocation2 + $0x60] sm:$0xff]
    %v3245 = vld [vmem:[#allocation2 + $0x68] sm:$0xff]
    %v3246 = vld [vmem:[#allocation2 + $0x70] sm:$0xff]
    %v3247 = vld [vmem:[#allocation2 + $0x78] sm:$0xff]
    %v3248 = vld [vmem:[#allocation2 + $0x80] sm:$0xff]
    %v3249 = vld [vmem:[#allocation2 + $0x88] sm:$0xff]
    %v3250 = vld [vmem:[#allocation2 + $0x90] sm:$0xff]
    %v3251 = vld [vmem:[#allocation2 + $0x98] sm:$0xff]
    %v3252 = vld [vmem:[#allocation2 + $0xa0] sm:$0xff]
    %v3253 = vld [vmem:[#allocation2 + $0xa8] sm:$0xff]
    %v3254 = vld [vmem:[#allocation2 + $0xb0] sm:$0xff]
    %v3255 = vld [vmem:[#allocation2 + $0xb8] sm:$0xff]
    %v3256 = vld [vmem:[#allocation2 + $0xc0] sm:$0xff]
    %v3257 = vld [vmem:[#allocation2 + $0xc8] sm:$0xff]
    %v3258 = vld [vmem:[#allocation2 + $0xd0] sm:$0xff]
    %v3259 = vld [vmem:[#allocation2 + $0xd8] sm:$0xff]
    %v3260 = vld [vmem:[#allocation2 + $0xe0] sm:$0xff]
    %v3261 = vld [vmem:[#allocation2 + $0xe8] sm:$0xff]
    %v3262 = vld [vmem:[#allocation2 + $0xf0] sm:$0xff]
    %v3263 = vld [vmem:[#allocation2 + $0xf8] sm:$0xff]
    %v3264 = vld [vmem:[#allocation2 + $0x100] sm:$0xff]
    %v3265 = vld [vmem:[#allocation2 + $0x108] sm:$0xff]
    %v3266 = vld [vmem:[#allocation2 + $0x110] sm:$0xff]
    %v3267 = vld [vmem:[#allocation2 + $0x118] sm:$0xff]
    %v3268 = vld [vmem:[#allocation2 + $0x120] sm:$0xff]
    %v3269 = vld [vmem:[#allocation2 + $0x128] sm:$0xff]
    %v3270 = vld [vmem:[#allocation2 + $0x130] sm:$0xff]
    %v3271 = vld [vmem:[#allocation2 + $0x138] sm:$0xff]
    %v3272 = vld [vmem:[#allocation2 + $0x140] sm:$0xff]
    %v3273 = vld [vmem:[#allocation2 + $0x148] sm:$0xff]
    %v3274 = vld [vmem:[#allocation2 + $0x150] sm:$0xff]
    %v3275 = vld [vmem:[#allocation2 + $0x158] sm:$0xff]
    %v3276 = vld [vmem:[#allocation2 + $0x160] sm:$0xff]
    %v3277 = vld [vmem:[#allocation2 + $0x168] sm:$0xff]
    %v3278 = vld [vmem:[#allocation2 + $0x170] sm:$0xff]
    %v3279 = vld [vmem:[#allocation2 + $0x178] sm:$0xff]
    %v3280 = vld [vmem:[#allocation2 + $0x180] sm:$0xff]
    %v3281 = vld [vmem:[#allocation2 + $0x188] sm:$0xff]
    %v3282 = vld [vmem:[#allocation2 + $0x190] sm:$0xff]
    %v3283 = vld [vmem:[#allocation2 + $0x198] sm:$0xff]
    %v3284 = vld [vmem:[#allocation2 + $0x1a0] sm:$0xff]
    %v3285 = vld [vmem:[#allocation2 + $0x1a8] sm:$0xff]
    %v3286 = vld [vmem:[#allocation2 + $0x1b0] sm:$0xff]
    %v3287 = vld [vmem:[#allocation2 + $0x1b8] sm:$0xff]
    %v3288 = vld [vmem:[#allocation2 + $0x1c0] sm:$0xff]
    %v3289 = vld [vmem:[#allocation2 + $0x1c8] sm:$0xff]
    %v3290 = vld [vmem:[#allocation2 + $0x1d0] sm:$0xff]
    %v3291 = vld [vmem:[#allocation2 + $0x1d8] sm:$0xff]
    %v3292 = vld [vmem:[#allocation2 + $0x1e0] sm:$0xff]
    %v3293 = vld [vmem:[#allocation2 + $0x1e8] sm:$0xff]
    %v3294 = vld [vmem:[#allocation2 + $0x1f0] sm:$0xff]
    %v3295 = vld [vmem:[#allocation2 + $0x1f8] sm:$0xff]
    %v3296 = vld [vmem:[%s1] sm:$0xff]
    %v3297 = vld [vmem:[%s1 + $0x8] sm:$0x1]
    %vm3298 = vcmask 72704
    %v3300 = vsel %vm3298, %v3232, 0
    %v3303 = vsel %vm3298, %v3233, 0
    %v3306 = vsel %vm3298, %v3234, 0
    %v3309 = vsel %vm3298, %v3235, 0
    %v3312 = vsel %vm3298, %v3236, 0
    %v3315 = vsel %vm3298, %v3237, 0
    %v3318 = vsel %vm3298, %v3238, 0
    %v3321 = vsel %vm3298, %v3239, 0
    %v3324 = vsel %vm3298, %v3240, 0
    %v3327 = vsel %vm3298, %v3241, 0
    %v3330 = vsel %vm3298, %v3242, 0
    %v3333 = vsel %vm3298, %v3243, 0
    %v3336 = vsel %vm3298, %v3244, 0
    %v3339 = vsel %vm3298, %v3245, 0
    %v3342 = vsel %vm3298, %v3246, 0
    %v3345 = vsel %vm3298, %v3247, 0
    %v3348 = vsel %vm3298, %v3248, 0
    %v3351 = vsel %vm3298, %v3249, 0
    %v3354 = vsel %vm3298, %v3250, 0
    %v3357 = vsel %vm3298, %v3251, 0
    %v3360 = vsel %vm3298, %v3252, 0
    %v3363 = vsel %vm3298, %v3253, 0
    %v3366 = vsel %vm3298, %v3254, 0
    %v3369 = vsel %vm3298, %v3255, 0
    %v3372 = vsel %vm3298, %v3256, 0
    %v3375 = vsel %vm3298, %v3257, 0
    %v3378 = vsel %vm3298, %v3258, 0
    %v3381 = vsel %vm3298, %v3259, 0
    %v3384 = vsel %vm3298, %v3260, 0
    %v3387 = vsel %vm3298, %v3261, 0
    %v3390 = vsel %vm3298, %v3262, 0
    %v3393 = vsel %vm3298, %v3263, 0
    %v3396 = vsel %vm3298, %v3264, 0
    %v3399 = vsel %vm3298, %v3265, 0
    %v3402 = vsel %vm3298, %v3266, 0
    %v3405 = vsel %vm3298, %v3267, 0
    %v3408 = vsel %vm3298, %v3268, 0
    %v3411 = vsel %vm3298, %v3269, 0
    %v3414 = vsel %vm3298, %v3270, 0
    %v3417 = vsel %vm3298, %v3271, 0
    %v3420 = vsel %vm3298, %v3272, 0
    %v3423 = vsel %vm3298, %v3273, 0
    %v3426 = vsel %vm3298, %v3274, 0
    %v3429 = vsel %vm3298, %v3275, 0
    %v3432 = vsel %vm3298, %v3276, 0
    %v3435 = vsel %vm3298, %v3277, 0
    %v3438 = vsel %vm3298, %v3278, 0
    %v3441 = vsel %vm3298, %v3279, 0
    %v3444 = vsel %vm3298, %v3280, 0
    %v3447 = vsel %vm3298, %v3281, 0
    %v3450 = vsel %vm3298, %v3282, 0
    %v3453 = vsel %vm3298, %v3283, 0
    %v3456 = vsel %vm3298, %v3284, 0
    %v3459 = vsel %vm3298, %v3285, 0
    %v3462 = vsel %vm3298, %v3286, 0
    %v3465 = vsel %vm3298, %v3287, 0
    %v3468 = vsel %vm3298, %v3288, 0
    %v3471 = vsel %vm3298, %v3289, 0
    %v3474 = vsel %vm3298, %v3290, 0
    %v3477 = vsel %vm3298, %v3291, 0
    %v3480 = vsel %vm3298, %v3292, 0
    %v3483 = vsel %vm3298, %v3293, 0
    %v3486 = vsel %vm3298, %v3294, 0
    %v3489 = vsel %vm3298, %v3295, 0
    %vm3491 = vcmask 1040384
    %v3493 = vsel %vm3491, %v3297, 0
    %3495 = vmatprep.subr.mxu0 0.0
    %3496 = vmatpush1.msra.mxu0 %v3296
    %3497 = vmatprep.subr.mxu0 0.0
    %3498 = vmatpush1.msra.mxu0 %v3493
    %3499 = vmatprep.subr.mxu0 0.0
    %3500 = vmatpush1.msra.mxu0 0.0
    %3501 = vmatprep.subr.mxu0 0.0
    %3502 = vmatpush1.msra.mxu0 0.0
    %3503 = vmatprep.subr.mxu0 0.0
    %3504 = vmatpush1.msra.mxu0 0.0
    %3505 = vmatprep.subr.mxu0 0.0
    %3506 = vmatpush1.msra.mxu0 0.0
    %3507 = vmatprep.subr.mxu0 0.0
    %3508 = vmatpush1.msra.mxu0 0.0
    %3509 = vmatprep.subr.mxu0 0.0
    %3510 = vmatpush1.msra.mxu0 0.0
    %3511 = vmatprep.subr.mxu0 0.0
    %3512 = vmatpush1.msra.mxu0 0.0
    %3513 = vmatprep.subr.mxu0 0.0
    %3514 = vmatpush1.msra.mxu0 0.0
    %3515 = vmatprep.subr.mxu0 0.0
    %3516 = vmatpush1.msra.mxu0 0.0
    %3517 = vmatprep.subr.mxu0 0.0
    %3518 = vmatpush1.msra.mxu0 0.0
    %3519 = vmatprep.subr.mxu0 0.0
    %3520 = vmatpush1.msra.mxu0 0.0
    %3521 = vmatprep.subr.mxu0 0.0
    %3522 = vmatpush1.msra.mxu0 0.0
    %3523 = vmatprep.subr.mxu0 0.0
    %3524 = vmatpush1.msra.mxu0 0.0
    %3525 = vmatprep.subr.mxu0 0.0
    %3526 = vmatpush1.msra.mxu0 0.0
    %3527 = vmatprep.subr.mxu0 0.0
    %3528 = vmatpush1.msra.mxu0 0.0
    %3529 = vmatprep.subr.mxu0 0.0
    %3530 = vmatpush1.msra.mxu0 0.0
    %3531 = vmatprep.subr.mxu0 0.0
    %3532 = vmatpush1.msra.mxu0 0.0
    %3533 = vmatprep.subr.mxu0 0.0
    %3534 = vmatpush1.msra.mxu0 0.0
    %3535 = vmatprep.subr.mxu0 0.0
    %3536 = vmatpush1.msra.mxu0 0.0
    %3537 = vmatprep.subr.mxu0 0.0
    %3538 = vmatpush1.msra.mxu0 0.0
    %3539 = vmatprep.subr.mxu0 0.0
    %3540 = vmatpush1.msra.mxu0 0.0
    %3541 = vmatprep.subr.mxu0 0.0
    %3542 = vmatpush1.msra.mxu0 0.0
    %3543 = vmatprep.subr.mxu0 0.0
    %3544 = vmatpush1.msra.mxu0 0.0
    %3545 = vmatprep.subr.mxu0 0.0
    %3546 = vmatpush1.msra.mxu0 0.0
    %3547 = vmatprep.subr.mxu0 0.0
    %3548 = vmatpush1.msra.mxu0 0.0
    %3549 = vmatprep.subr.mxu0 0.0
    %3550 = vmatpush1.msra.mxu0 0.0
    %3551 = vmatprep.subr.mxu0 0.0
    %3552 = vmatpush1.msra.mxu0 0.0
    %3553 = vmatprep.subr.mxu0 0.0
    %3554 = vmatpush1.msra.mxu0 0.0
    %3555 = vmatprep.subr.mxu0 0.0
    %3556 = vmatpush1.msra.mxu0 0.0
    %3557 = vmatprep.subr.mxu0 0.0
    %3558 = vmatpush1.msra.mxu0 0.0
    %3559 = vmatprep.mubr.f32.mxu0 0.0
    %3560 = vmatmul.mubr.f32.gmra.mrb[0].mxu0 %v3300
    %v3561 = vpop.f32.mrb[0].mxu0
    %v3562 = vadd.f32 0.0, %v3561
    %v3563 = vpop.f32.mrb[0].mxu0
    %3564 = vmatprep.mubr.f32.mxu0 0.0
    %3565 = vmatmul.mubr.f32.gmra.mrb[0].mxu0 %v3303
    %v3566 = vpop.f32.mrb[0].mxu0
    %v3567 = vadd.f32 0.0, %v3566
    %v3568 = vpop.f32.mrb[0].mxu0
    %3569 = vmatprep.mubr.f32.mxu0 0.0
    %3570 = vmatmul.mubr.f32.gmra.mrb[0].mxu0 %v3306
    %v3571 = vpop.f32.mrb[0].mxu0
    %v3572 = vadd.f32 0.0, %v3571
    %v3573 = vpop.f32.mrb[0].mxu0
    %3574 = vmatprep.mubr.f32.mxu0 0.0
    %3575 = vmatmul.mubr.f32.gmra.mrb[0].mxu0 %v3309
    %v3576 = vpop.f32.mrb[0].mxu0
    %v3577 = vadd.f32 0.0, %v3576
    %v3578 = vpop.f32.mrb[0].mxu0
    %3579 = vmatprep.mubr.f32.mxu0 0.0
    %3580 = vmatmul.mubr.f32.gmra.mrb[0].mxu0 %v3312
    %v3581 = vpop.f32.mrb[0].mxu0
    %v3582 = vadd.f32 0.0, %v3581
    %v3583 = vpop.f32.mrb[0].mxu0
    %3584 = vmatprep.mubr.f32.mxu0 0.0
    %3585 = vmatmul.mubr.f32.gmra.mrb[0].mxu0 %v3315
    %v3586 = vpop.f32.mrb[0].mxu0
    %v3587 = vadd.f32 0.0, %v3586
    %v3588 = vpop.f32.mrb[0].mxu0
    %3589 = vmatprep.mubr.f32.mxu0 0.0
    %3590 = vmatmul.mubr.f32.gmra.mrb[0].mxu0 %v3318
    %v3591 = vpop.f32.mrb[0].mxu0
    %v3592 = vadd.f32 0.0, %v3591
    %v3593 = vpop.f32.mrb[0].mxu0
    %3594 = vmatprep.mubr.f32.mxu0 0.0
    %3595 = vmatmul.mubr.f32.gmra.mrb[0].mxu0 %v3321
    %v3596 = vpop.f32.mrb[0].mxu0
    %v3597 = vadd.f32 0.0, %v3596
    %v3598 = vpop.f32.mrb[0].mxu0
    %3599 = vmatprep.mubr.f32.mxu0 0.0
    %3600 = vmatmul.mubr.f32.gmra.mrb[0].mxu0 %v3324
    %v3601 = vpop.f32.mrb[0].mxu0
    %v3602 = vadd.f32 0.0, %v3601
    %v3603 = vpop.f32.mrb[0].mxu0
    %3604 = vmatprep.mubr.f32.mxu0 0.0
    %3605 = vmatmul.mubr.f32.gmra.mrb[0].mxu0 %v3327
    %v3606 = vpop.f32.mrb[0].mxu0
    %v3607 = vadd.f32 0.0, %v3606
    %v3608 = vpop.f32.mrb[0].mxu0
    %3609 = vmatprep.mubr.f32.mxu0 0.0
    %3610 = vmatmul.mubr.f32.gmra.mrb[0].mxu0 %v3330
    %v3611 = vpop.f32.mrb[0].mxu0
    %v3612 = vadd.f32 0.0, %v3611
    %v3613 = vpop.f32.mrb[0].mxu0
    %3614 = vmatprep.mubr.f32.mxu0 0.0
    %3615 = vmatmul.mubr.f32.gmra.mrb[0].mxu0 %v3333
    %v3616 = vpop.f32.mrb[0].mxu0
    %v3617 = vadd.f32 0.0, %v3616
    %v3618 = vpop.f32.mrb[0].mxu0
    %3619 = vmatprep.mubr.f32.mxu0 0.0
    %3620 = vmatmul.mubr.f32.gmra.mrb[0].mxu0 %v3336
    %v3621 = vpop.f32.mrb[0].mxu0
    %v3622 = vadd.f32 0.0, %v3621
    %v3623 = vpop.f32.mrb[0].mxu0
    %3624 = vmatprep.mubr.f32.mxu0 0.0
    %3625 = vmatmul.mubr.f32.gmra.mrb[0].mxu0 %v3339
    %v3626 = vpop.f32.mrb[0].mxu0
    %v3627 = vadd.f32 0.0, %v3626
    %v3628 = vpop.f32.mrb[0].mxu0
    %3629 = vmatprep.mubr.f32.mxu0 0.0
    %3630 = vmatmul.mubr.f32.gmra.mrb[0].mxu0 %v3342
    %v3631 = vpop.f32.mrb[0].mxu0
    %v3632 = vadd.f32 0.0, %v3631
    %v3633 = vpop.f32.mrb[0].mxu0
    %3634 = vmatprep.mubr.f32.mxu0 0.0
    %3635 = vmatmul.mubr.f32.gmra.mrb[0].mxu0 %v3345
    %v3636 = vpop.f32.mrb[0].mxu0
    %v3637 = vadd.f32 0.0, %v3636
    %v3638 = vpop.f32.mrb[0].mxu0
    %3639 = vmatprep.mubr.f32.mxu0 0.0
    %3640 = vmatmul.mubr.f32.gmra.mrb[0].mxu0 %v3348
    %v3641 = vpop.f32.mrb[0].mxu0
    %v3642 = vadd.f32 0.0, %v3641
    %v3643 = vpop.f32.mrb[0].mxu0
    %3644 = vmatprep.mubr.f32.mxu0 0.0
    %3645 = vmatmul.mubr.f32.gmra.mrb[0].mxu0 %v3351
    %v3646 = vpop.f32.mrb[0].mxu0
    %v3647 = vadd.f32 0.0, %v3646
    %v3648 = vpop.f32.mrb[0].mxu0
    %3649 = vmatprep.mubr.f32.mxu0 0.0
    %3650 = vmatmul.mubr.f32.gmra.mrb[0].mxu0 %v3354
    %v3651 = vpop.f32.mrb[0].mxu0
    %v3652 = vadd.f32 0.0, %v3651
    %v3653 = vpop.f32.mrb[0].mxu0
    %3654 = vmatprep.mubr.f32.mxu0 0.0
    %3655 = vmatmul.mubr.f32.gmra.mrb[0].mxu0 %v3357
    %v3656 = vpop.f32.mrb[0].mxu0
    %v3657 = vadd.f32 0.0, %v3656
    %v3658 = vpop.f32.mrb[0].mxu0
    %3659 = vmatprep.mubr.f32.mxu0 0.0
    %3660 = vmatmul.mubr.f32.gmra.mrb[0].mxu0 %v3360
    %v3661 = vpop.f32.mrb[0].mxu0
    %v3662 = vadd.f32 0.0, %v3661
    %v3663 = vpop.f32.mrb[0].mxu0
    %3664 = vmatprep.mubr.f32.mxu0 0.0
    %3665 = vmatmul.mubr.f32.gmra.mrb[0].mxu0 %v3363
    %v3666 = vpop.f32.mrb[0].mxu0
    %v3667 = vadd.f32 0.0, %v3666
    %v3668 = vpop.f32.mrb[0].mxu0
    %3669 = vmatprep.mubr.f32.mxu0 0.0
    %3670 = vmatmul.mubr.f32.gmra.mrb[0].mxu0 %v3366
    %v3671 = vpop.f32.mrb[0].mxu0
    %v3672 = vadd.f32 0.0, %v3671
    %v3673 = vpop.f32.mrb[0].mxu0
    %3674 = vmatprep.mubr.f32.mxu0 0.0
    %3675 = vmatmul.mubr.f32.gmra.mrb[0].mxu0 %v3369
    %v3676 = vpop.f32.mrb[0].mxu0
    %v3677 = vadd.f32 0.0, %v3676
    %v3678 = vpop.f32.mrb[0].mxu0
    %3679 = vmatprep.mubr.f32.mxu0 0.0
    %3680 = vmatmul.mubr.f32.gmra.mrb[0].mxu0 %v3372
    %v3681 = vpop.f32.mrb[0].mxu0
    %v3682 = vadd.f32 0.0, %v3681
    %v3683 = vpop.f32.mrb[0].mxu0
    %3684 = vmatprep.mubr.f32.mxu0 0.0
    %3685 = vmatmul.mubr.f32.gmra.mrb[0].mxu0 %v3375
    %v3686 = vpop.f32.mrb[0].mxu0
    %v3687 = vadd.f32 0.0, %v3686
    %v3688 = vpop.f32.mrb[0].mxu0
    %3689 = vmatprep.mubr.f32.mxu0 0.0
    %3690 = vmatmul.mubr.f32.gmra.mrb[0].mxu0 %v3378
    %v3691 = vpop.f32.mrb[0].mxu0
    %v3692 = vadd.f32 0.0, %v3691
    %v3693 = vpop.f32.mrb[0].mxu0
    %3694 = vmatprep.mubr.f32.mxu0 0.0
    %3695 = vmatmul.mubr.f32.gmra.mrb[0].mxu0 %v3381
    %v3696 = vpop.f32.mrb[0].mxu0
    %v3697 = vadd.f32 0.0, %v3696
    %v3698 = vpop.f32.mrb[0].mxu0
    %3699 = vmatprep.mubr.f32.mxu0 0.0
    %3700 = vmatmul.mubr.f32.gmra.mrb[0].mxu0 %v3384
    %v3701 = vpop.f32.mrb[0].mxu0
    %v3702 = vadd.f32 0.0, %v3701
    %v3703 = vpop.f32.mrb[0].mxu0
    %3704 = vmatprep.mubr.f32.mxu0 0.0
    %3705 = vmatmul.mubr.f32.gmra.mrb[0].mxu0 %v3387
    %v3706 = vpop.f32.mrb[0].mxu0
    %v3707 = vadd.f32 0.0, %v3706
    %v3708 = vpop.f32.mrb[0].mxu0
    %3709 = vmatprep.mubr.f32.mxu0 0.0
    %3710 = vmatmul.mubr.f32.gmra.mrb[0].mxu0 %v3390
    %v3711 = vpop.f32.mrb[0].mxu0
    %v3712 = vadd.f32 0.0, %v3711
    %v3713 = vpop.f32.mrb[0].mxu0
    %3714 = vmatprep.mubr.f32.mxu0 0.0
    %3715 = vmatmul.mubr.f32.gmra.mrb[0].mxu0 %v3393
    %v3716 = vpop.f32.mrb[0].mxu0
    %v3717 = vadd.f32 0.0, %v3716
    %v3718 = vpop.f32.mrb[0].mxu0
    %3719 = vmatprep.mubr.f32.mxu0 0.0
    %3720 = vmatmul.mubr.f32.gmra.mrb[0].mxu0 %v3396
    %v3721 = vpop.f32.mrb[0].mxu0
    %v3722 = vadd.f32 0.0, %v3721
    %v3723 = vpop.f32.mrb[0].mxu0
    %3724 = vmatprep.mubr.f32.mxu0 0.0
    %3725 = vmatmul.mubr.f32.gmra.mrb[0].mxu0 %v3399
    %v3726 = vpop.f32.mrb[0].mxu0
    %v3727 = vadd.f32 0.0, %v3726
    %v3728 = vpop.f32.mrb[0].mxu0
    %3729 = vmatprep.mubr.f32.mxu0 0.0
    %3730 = vmatmul.mubr.f32.gmra.mrb[0].mxu0 %v3402
    %v3731 = vpop.f32.mrb[0].mxu0
    %v3732 = vadd.f32 0.0, %v3731
    %v3733 = vpop.f32.mrb[0].mxu0
    %3734 = vmatprep.mubr.f32.mxu0 0.0
    %3735 = vmatmul.mubr.f32.gmra.mrb[0].mxu0 %v3405
    %v3736 = vpop.f32.mrb[0].mxu0
    %v3737 = vadd.f32 0.0, %v3736
    %v3738 = vpop.f32.mrb[0].mxu0
    %3739 = vmatprep.mubr.f32.mxu0 0.0
    %3740 = vmatmul.mubr.f32.gmra.mrb[0].mxu0 %v3408
    %v3741 = vpop.f32.mrb[0].mxu0
    %v3742 = vadd.f32 0.0, %v3741
    %v3743 = vpop.f32.mrb[0].mxu0
    %3744 = vmatprep.mubr.f32.mxu0 0.0
    %3745 = vmatmul.mubr.f32.gmra.mrb[0].mxu0 %v3411
    %v3746 = vpop.f32.mrb[0].mxu0
    %v3747 = vadd.f32 0.0, %v3746
    %v3748 = vpop.f32.mrb[0].mxu0
    %3749 = vmatprep.mubr.f32.mxu0 0.0
    %3750 = vmatmul.mubr.f32.gmra.mrb[0].mxu0 %v3414
    %v3751 = vpop.f32.mrb[0].mxu0
    %v3752 = vadd.f32 0.0, %v3751
    %v3753 = vpop.f32.mrb[0].mxu0
    %3754 = vmatprep.mubr.f32.mxu0 0.0
    %3755 = vmatmul.mubr.f32.gmra.mrb[0].mxu0 %v3417
    %v3756 = vpop.f32.mrb[0].mxu0
    %v3757 = vadd.f32 0.0, %v3756
    %v3758 = vpop.f32.mrb[0].mxu0
    %3759 = vmatprep.mubr.f32.mxu0 0.0
    %3760 = vmatmul.mubr.f32.gmra.mrb[0].mxu0 %v3420
    %v3761 = vpop.f32.mrb[0].mxu0
    %v3762 = vadd.f32 0.0, %v3761
    %v3763 = vpop.f32.mrb[0].mxu0
    %3764 = vmatprep.mubr.f32.mxu0 0.0
    %3765 = vmatmul.mubr.f32.gmra.mrb[0].mxu0 %v3423
    %v3766 = vpop.f32.mrb[0].mxu0
    %v3767 = vadd.f32 0.0, %v3766
    %v3768 = vpop.f32.mrb[0].mxu0
    %3769 = vmatprep.mubr.f32.mxu0 0.0
    %3770 = vmatmul.mubr.f32.gmra.mrb[0].mxu0 %v3426
    %v3771 = vpop.f32.mrb[0].mxu0
    %v3772 = vadd.f32 0.0, %v3771
    %v3773 = vpop.f32.mrb[0].mxu0
    %3774 = vmatprep.mubr.f32.mxu0 0.0
    %3775 = vmatmul.mubr.f32.gmra.mrb[0].mxu0 %v3429
    %v3776 = vpop.f32.mrb[0].mxu0
    %v3777 = vadd.f32 0.0, %v3776
    %v3778 = vpop.f32.mrb[0].mxu0
    %3779 = vmatprep.mubr.f32.mxu0 0.0
    %3780 = vmatmul.mubr.f32.gmra.mrb[0].mxu0 %v3432
    %v3781 = vpop.f32.mrb[0].mxu0
    %v3782 = vadd.f32 0.0, %v3781
    %v3783 = vpop.f32.mrb[0].mxu0
    %3784 = vmatprep.mubr.f32.mxu0 0.0
    %3785 = vmatmul.mubr.f32.gmra.mrb[0].mxu0 %v3435
    %v3786 = vpop.f32.mrb[0].mxu0
    %v3787 = vadd.f32 0.0, %v3786
    %v3788 = vpop.f32.mrb[0].mxu0
    %3789 = vmatprep.mubr.f32.mxu0 0.0
    %3790 = vmatmul.mubr.f32.gmra.mrb[0].mxu0 %v3438
    %v3791 = vpop.f32.mrb[0].mxu0
    %v3792 = vadd.f32 0.0, %v3791
    %v3793 = vpop.f32.mrb[0].mxu0
    %3794 = vmatprep.mubr.f32.mxu0 0.0
    %3795 = vmatmul.mubr.f32.gmra.mrb[0].mxu0 %v3441
    %v3796 = vpop.f32.mrb[0].mxu0
    %v3797 = vadd.f32 0.0, %v3796
    %v3798 = vpop.f32.mrb[0].mxu0
    %3799 = vmatprep.mubr.f32.mxu0 0.0
    %3800 = vmatmul.mubr.f32.gmra.mrb[0].mxu0 %v3444
    %v3801 = vpop.f32.mrb[0].mxu0
    %v3802 = vadd.f32 0.0, %v3801
    %v3803 = vpop.f32.mrb[0].mxu0
    %3804 = vmatprep.mubr.f32.mxu0 0.0
    %3805 = vmatmul.mubr.f32.gmra.mrb[0].mxu0 %v3447
    %v3806 = vpop.f32.mrb[0].mxu0
    %v3807 = vadd.f32 0.0, %v3806
    %v3808 = vpop.f32.mrb[0].mxu0
    %3809 = vmatprep.mubr.f32.mxu0 0.0
    %3810 = vmatmul.mubr.f32.gmra.mrb[0].mxu0 %v3450
    %v3811 = vpop.f32.mrb[0].mxu0
    %v3812 = vadd.f32 0.0, %v3811
    %v3813 = vpop.f32.mrb[0].mxu0
    %3814 = vmatprep.mubr.f32.mxu0 0.0
    %3815 = vmatmul.mubr.f32.gmra.mrb[0].mxu0 %v3453
    %v3816 = vpop.f32.mrb[0].mxu0
    %v3817 = vadd.f32 0.0, %v3816
    %v3818 = vpop.f32.mrb[0].mxu0
    %3819 = vmatprep.mubr.f32.mxu0 0.0
    %3820 = vmatmul.mubr.f32.gmra.mrb[0].mxu0 %v3456
    %v3821 = vpop.f32.mrb[0].mxu0
    %v3822 = vadd.f32 0.0, %v3821
    %v3823 = vpop.f32.mrb[0].mxu0
    %3824 = vmatprep.mubr.f32.mxu0 0.0
    %3825 = vmatmul.mubr.f32.gmra.mrb[0].mxu0 %v3459
    %v3826 = vpop.f32.mrb[0].mxu0
    %v3827 = vadd.f32 0.0, %v3826
    %v3828 = vpop.f32.mrb[0].mxu0
    %3829 = vmatprep.mubr.f32.mxu0 0.0
    %3830 = vmatmul.mubr.f32.gmra.mrb[0].mxu0 %v3462
    %v3831 = vpop.f32.mrb[0].mxu0
    %v3832 = vadd.f32 0.0, %v3831
    %v3833 = vpop.f32.mrb[0].mxu0
    %3834 = vmatprep.mubr.f32.mxu0 0.0
    %3835 = vmatmul.mubr.f32.gmra.mrb[0].mxu0 %v3465
    %v3836 = vpop.f32.mrb[0].mxu0
    %v3837 = vadd.f32 0.0, %v3836
    %v3838 = vpop.f32.mrb[0].mxu0
    %3839 = vmatprep.mubr.f32.mxu0 0.0
    %3840 = vmatmul.mubr.f32.gmra.mrb[0].mxu0 %v3468
    %v3841 = vpop.f32.mrb[0].mxu0
    %v3842 = vadd.f32 0.0, %v3841
    %v3843 = vpop.f32.mrb[0].mxu0
    %3844 = vmatprep.mubr.f32.mxu0 0.0
    %3845 = vmatmul.mubr.f32.gmra.mrb[0].mxu0 %v3471
    %v3846 = vpop.f32.mrb[0].mxu0
    %v3847 = vadd.f32 0.0, %v3846
    %v3848 = vpop.f32.mrb[0].mxu0
    %3849 = vmatprep.mubr.f32.mxu0 0.0
    %3850 = vmatmul.mubr.f32.gmra.mrb[0].mxu0 %v3474
    %v3851 = vpop.f32.mrb[0].mxu0
    %v3852 = vadd.f32 0.0, %v3851
    %v3853 = vpop.f32.mrb[0].mxu0
    %3854 = vmatprep.mubr.f32.mxu0 0.0
    %3855 = vmatmul.mubr.f32.gmra.mrb[0].mxu0 %v3477
    %v3856 = vpop.f32.mrb[0].mxu0
    %v3857 = vadd.f32 0.0, %v3856
    %v3858 = vpop.f32.mrb[0].mxu0
    %3859 = vmatprep.mubr.f32.mxu0 0.0
    %3860 = vmatmul.mubr.f32.gmra.mrb[0].mxu0 %v3480
    %v3861 = vpop.f32.mrb[0].mxu0
    %v3862 = vadd.f32 0.0, %v3861
    %v3863 = vpop.f32.mrb[0].mxu0
    %3864 = vmatprep.mubr.f32.mxu0 0.0
    %3865 = vmatmul.mubr.f32.gmra.mrb[0].mxu0 %v3483
    %v3866 = vpop.f32.mrb[0].mxu0
    %v3867 = vadd.f32 0.0, %v3866
    %v3868 = vpop.f32.mrb[0].mxu0
    %3869 = vmatprep.mubr.f32.mxu0 0.0
    %3870 = vmatmul.mubr.f32.gmra.mrb[0].mxu0 %v3486
    %v3871 = vpop.f32.mrb[0].mxu0
    %v3872 = vadd.f32 0.0, %v3871
    %v3873 = vpop.f32.mrb[0].mxu0
    %3874 = vmatprep.mubr.f32.mxu0 0.0
    %3875 = vmatmul.mubr.f32.gmra.mrb[0].mxu0 %v3489
    %v3876 = vpop.f32.mrb[0].mxu0
    %v3877 = vadd.f32 0.0, %v3876
    %v3878 = vpop.f32.mrb[0].mxu0
    %3879 = vdwg.mxu0
    %v3880 = vld [vmem:[%s2] sm:$0x1]
    %v3882 = vlaneseq
    %v3883 = vshrl.u32 %v3882, 7
    %v3884 = vsub.s32 0, %v3883
    %v3885 = vrot.slane %v3880, %v3884
    %v3887 = vmul.f32 %v3562, %v3885
    %v3888 = vmul.f32 %v3567, %v3885
    %v3889 = vmul.f32 %v3572, %v3885
    %v3890 = vmul.f32 %v3577, %v3885
    %v3891 = vmul.f32 %v3582, %v3885
    %v3892 = vmul.f32 %v3587, %v3885
    %v3893 = vmul.f32 %v3592, %v3885
    %v3894 = vmul.f32 %v3597, %v3885
    %v3895 = vmul.f32 %v3602, %v3885
    %v3896 = vmul.f32 %v3607, %v3885
    %v3897 = vmul.f32 %v3612, %v3885
    %v3898 = vmul.f32 %v3617, %v3885
    %v3899 = vmul.f32 %v3622, %v3885
    %v3900 = vmul.f32 %v3627, %v3885
    %v3901 = vmul.f32 %v3632, %v3885
    %v3902 = vmul.f32 %v3637, %v3885
    %v3903 = vmul.f32 %v3642, %v3885
    %v3904 = vmul.f32 %v3647, %v3885
    %v3905 = vmul.f32 %v3652, %v3885
    %v3906 = vmul.f32 %v3657, %v3885
    %v3907 = vmul.f32 %v3662, %v3885
    %v3908 = vmul.f32 %v3667, %v3885
    %v3909 = vmul.f32 %v3672, %v3885
    %v3910 = vmul.f32 %v3677, %v3885
    %v3911 = vmul.f32 %v3682, %v3885
    %v3912 = vmul.f32 %v3687, %v3885
    %v3913 = vmul.f32 %v3692, %v3885
    %v3914 = vmul.f32 %v3697, %v3885
    %v3915 = vmul.f32 %v3702, %v3885
    %v3916 = vmul.f32 %v3707, %v3885
    %v3917 = vmul.f32 %v3712, %v3885
    %v3918 = vmul.f32 %v3717, %v3885
    %v3919 = vmul.f32 %v3722, %v3885
    %v3920 = vmul.f32 %v3727, %v3885
    %v3921 = vmul.f32 %v3732, %v3885
    %v3922 = vmul.f32 %v3737, %v3885
    %v3923 = vmul.f32 %v3742, %v3885
    %v3924 = vmul.f32 %v3747, %v3885
    %v3925 = vmul.f32 %v3752, %v3885
    %v3926 = vmul.f32 %v3757, %v3885
    %v3927 = vmul.f32 %v3762, %v3885
    %v3928 = vmul.f32 %v3767, %v3885
    %v3929 = vmul.f32 %v3772, %v3885
    %v3930 = vmul.f32 %v3777, %v3885
    %v3931 = vmul.f32 %v3782, %v3885
    %v3932 = vmul.f32 %v3787, %v3885
    %v3933 = vmul.f32 %v3792, %v3885
    %v3934 = vmul.f32 %v3797, %v3885
    %v3935 = vmul.f32 %v3802, %v3885
    %v3936 = vmul.f32 %v3807, %v3885
    %v3937 = vmul.f32 %v3812, %v3885
    %v3938 = vmul.f32 %v3817, %v3885
    %v3939 = vmul.f32 %v3822, %v3885
    %v3940 = vmul.f32 %v3827, %v3885
    %v3941 = vmul.f32 %v3832, %v3885
    %v3942 = vmul.f32 %v3837, %v3885
    %v3943 = vmul.f32 %v3842, %v3885
    %v3944 = vmul.f32 %v3847, %v3885
    %v3945 = vmul.f32 %v3852, %v3885
    %v3946 = vmul.f32 %v3857, %v3885
    %v3947 = vmul.f32 %v3862, %v3885
    %v3948 = vmul.f32 %v3867, %v3885
    %v3949 = vmul.f32 %v3872, %v3885
    %v3950 = vmul.f32 %v3877, %v3885
    %v3951 = vld [vmem:[%s3] sm:$0x1]
    %v3953 = vlaneseq
    %v3954 = vshrl.u32 %v3953, 7
    %v3955 = vsub.s32 0, %v3954
    %v3956 = vrot.slane %v3951, %v3955
    %v3958 = vadd.f32 %v3887, %v3956
    %v3959 = vadd.f32 %v3888, %v3956
    %v3960 = vadd.f32 %v3889, %v3956
    %v3961 = vadd.f32 %v3890, %v3956
    %v3962 = vadd.f32 %v3891, %v3956
    %v3963 = vadd.f32 %v3892, %v3956
    %v3964 = vadd.f32 %v3893, %v3956
    %v3965 = vadd.f32 %v3894, %v3956
    %v3966 = vadd.f32 %v3895, %v3956
    %v3967 = vadd.f32 %v3896, %v3956
    %v3968 = vadd.f32 %v3897, %v3956
    %v3969 = vadd.f32 %v3898, %v3956
    %v3970 = vadd.f32 %v3899, %v3956
    %v3971 = vadd.f32 %v3900, %v3956
    %v3972 = vadd.f32 %v3901, %v3956
    %v3973 = vadd.f32 %v3902, %v3956
    %v3974 = vadd.f32 %v3903, %v3956
    %v3975 = vadd.f32 %v3904, %v3956
    %v3976 = vadd.f32 %v3905, %v3956
    %v3977 = vadd.f32 %v3906, %v3956
    %v3978 = vadd.f32 %v3907, %v3956
    %v3979 = vadd.f32 %v3908, %v3956
    %v3980 = vadd.f32 %v3909, %v3956
    %v3981 = vadd.f32 %v3910, %v3956
    %v3982 = vadd.f32 %v3911, %v3956
    %v3983 = vadd.f32 %v3912, %v3956
    %v3984 = vadd.f32 %v3913, %v3956
    %v3985 = vadd.f32 %v3914, %v3956
    %v3986 = vadd.f32 %v3915, %v3956
    %v3987 = vadd.f32 %v3916, %v3956
    %v3988 = vadd.f32 %v3917, %v3956
    %v3989 = vadd.f32 %v3918, %v3956
    %v3990 = vadd.f32 %v3919, %v3956
    %v3991 = vadd.f32 %v3920, %v3956
    %v3992 = vadd.f32 %v3921, %v3956
    %v3993 = vadd.f32 %v3922, %v3956
    %v3994 = vadd.f32 %v3923, %v3956
    %v3995 = vadd.f32 %v3924, %v3956
    %v3996 = vadd.f32 %v3925, %v3956
    %v3997 = vadd.f32 %v3926, %v3956
    %v3998 = vadd.f32 %v3927, %v3956
    %v3999 = vadd.f32 %v3928, %v3956
    %v4000 = vadd.f32 %v3929, %v3956
    %v4001 = vadd.f32 %v3930, %v3956
    %v4002 = vadd.f32 %v3931, %v3956
    %v4003 = vadd.f32 %v3932, %v3956
    %v4004 = vadd.f32 %v3933, %v3956
    %v4005 = vadd.f32 %v3934, %v3956
    %v4006 = vadd.f32 %v3935, %v3956
    %v4007 = vadd.f32 %v3936, %v3956
    %v4008 = vadd.f32 %v3937, %v3956
    %v4009 = vadd.f32 %v3938, %v3956
    %v4010 = vadd.f32 %v3939, %v3956
    %v4011 = vadd.f32 %v3940, %v3956
    %v4012 = vadd.f32 %v3941, %v3956
    %v4013 = vadd.f32 %v3942, %v3956
    %v4014 = vadd.f32 %v3943, %v3956
    %v4015 = vadd.f32 %v3944, %v3956
    %v4016 = vadd.f32 %v3945, %v3956
    %v4017 = vadd.f32 %v3946, %v3956
    %v4018 = vadd.f32 %v3947, %v3956
    %v4019 = vadd.f32 %v3948, %v3956
    %v4020 = vadd.f32 %v3949, %v3956
    %v4021 = vadd.f32 %v3950, %v3956
    %v4022 = vmax.f32 %v3958, 0.0
    %v4023 = vmax.f32 %v3959, 0.0
    %v4024 = vmax.f32 %v3960, 0.0
    %v4025 = vmax.f32 %v3961, 0.0
    %v4026 = vmax.f32 %v3962, 0.0
    %v4027 = vmax.f32 %v3963, 0.0
    %v4028 = vmax.f32 %v3964, 0.0
    %v4029 = vmax.f32 %v3965, 0.0
    %v4030 = vmax.f32 %v3966, 0.0
    %v4031 = vmax.f32 %v3967, 0.0
    %v4032 = vmax.f32 %v3968, 0.0
    %v4033 = vmax.f32 %v3969, 0.0
    %v4034 = vmax.f32 %v3970, 0.0
    %v4035 = vmax.f32 %v3971, 0.0
    %v4036 = vmax.f32 %v3972, 0.0
    %v4037 = vmax.f32 %v3973, 0.0
    %v4038 = vmax.f32 %v3974, 0.0
    %v4039 = vmax.f32 %v3975, 0.0
    %v4040 = vmax.f32 %v3976, 0.0
    %v4041 = vmax.f32 %v3977, 0.0
    %v4042 = vmax.f32 %v3978, 0.0
    %v4043 = vmax.f32 %v3979, 0.0
    %v4044 = vmax.f32 %v3980, 0.0
    %v4045 = vmax.f32 %v3981, 0.0
    %v4046 = vmax.f32 %v3982, 0.0
    %v4047 = vmax.f32 %v3983, 0.0
    %v4048 = vmax.f32 %v3984, 0.0
    %v4049 = vmax.f32 %v3985, 0.0
    %v4050 = vmax.f32 %v3986, 0.0
    %v4051 = vmax.f32 %v3987, 0.0
    %v4052 = vmax.f32 %v3988, 0.0
    %v4053 = vmax.f32 %v3989, 0.0
    %v4054 = vmax.f32 %v3990, 0.0
    %v4055 = vmax.f32 %v3991, 0.0
    %v4056 = vmax.f32 %v3992, 0.0
    %v4057 = vmax.f32 %v3993, 0.0
    %v4058 = vmax.f32 %v3994, 0.0
    %v4059 = vmax.f32 %v3995, 0.0
    %v4060 = vmax.f32 %v3996, 0.0
    %v4061 = vmax.f32 %v3997, 0.0
    %v4062 = vmax.f32 %v3998, 0.0
    %v4063 = vmax.f32 %v3999, 0.0
    %v4064 = vmax.f32 %v4000, 0.0
    %v4065 = vmax.f32 %v4001, 0.0
    %v4066 = vmax.f32 %v4002, 0.0
    %v4067 = vmax.f32 %v4003, 0.0
    %v4068 = vmax.f32 %v4004, 0.0
    %v4069 = vmax.f32 %v4005, 0.0
    %v4070 = vmax.f32 %v4006, 0.0
    %v4071 = vmax.f32 %v4007, 0.0
    %v4072 = vmax.f32 %v4008, 0.0
    %v4073 = vmax.f32 %v4009, 0.0
    %v4074 = vmax.f32 %v4010, 0.0
    %v4075 = vmax.f32 %v4011, 0.0
    %v4076 = vmax.f32 %v4012, 0.0
    %v4077 = vmax.f32 %v4013, 0.0
    %v4078 = vmax.f32 %v4014, 0.0
    %v4079 = vmax.f32 %v4015, 0.0
    %v4080 = vmax.f32 %v4016, 0.0
    %v4081 = vmax.f32 %v4017, 0.0
    %v4082 = vmax.f32 %v4018, 0.0
    %v4083 = vmax.f32 %v4019, 0.0
    %v4084 = vmax.f32 %v4020, 0.0
    %v4085 = vmax.f32 %v4021, 0.0
    %v4150 = vcombine.high %v4022, %v4022
    %v4151 = vcombine.high %v4023, %v4023
    %v4152 = vcombine.high %v4024, %v4024
    %v4153 = vcombine.high %v4025, %v4025
    %v4154 = vcombine.high %v4026, %v4026
    %v4155 = vcombine.high %v4027, %v4027
    %v4156 = vcombine.high %v4028, %v4028
    %v4157 = vcombine.high %v4029, %v4029
    %v4158 = vcombine.high %v4030, %v4030
    %v4159 = vcombine.high %v4031, %v4031
    %v4160 = vcombine.high %v4032, %v4032
    %v4161 = vcombine.high %v4033, %v4033
    %v4162 = vcombine.high %v4034, %v4034
    %v4163 = vcombine.high %v4035, %v4035
    %v4164 = vcombine.high %v4036, %v4036
    %v4165 = vcombine.high %v4037, %v4037
    %v4166 = vcombine.high %v4038, %v4038
    %v4167 = vcombine.high %v4039, %v4039
    %v4168 = vcombine.high %v4040, %v4040
    %v4169 = vcombine.high %v4041, %v4041
    %v4170 = vcombine.high %v4042, %v4042
    %v4171 = vcombine.high %v4043, %v4043
    %v4172 = vcombine.high %v4044, %v4044
    %v4173 = vcombine.high %v4045, %v4045
    %v4174 = vcombine.high %v4046, %v4046
    %v4175 = vcombine.high %v4047, %v4047
    %v4176 = vcombine.high %v4048, %v4048
    %v4177 = vcombine.high %v4049, %v4049
    %v4178 = vcombine.high %v4050, %v4050
    %v4179 = vcombine.high %v4051, %v4051
    %v4180 = vcombine.high %v4052, %v4052
    %v4181 = vcombine.high %v4053, %v4053
    %v4182 = vcombine.high %v4054, %v4054
    %v4183 = vcombine.high %v4055, %v4055
    %v4184 = vcombine.high %v4056, %v4056
    %v4185 = vcombine.high %v4057, %v4057
    %v4186 = vcombine.high %v4058, %v4058
    %v4187 = vcombine.high %v4059, %v4059
    %v4188 = vcombine.high %v4060, %v4060
    %v4189 = vcombine.high %v4061, %v4061
    %v4190 = vcombine.high %v4062, %v4062
    %v4191 = vcombine.high %v4063, %v4063
    %v4192 = vcombine.high %v4064, %v4064
    %v4193 = vcombine.high %v4065, %v4065
    %v4194 = vcombine.high %v4066, %v4066
    %v4195 = vcombine.high %v4067, %v4067
    %v4196 = vcombine.high %v4068, %v4068
    %v4197 = vcombine.high %v4069, %v4069
    %v4198 = vcombine.high %v4070, %v4070
    %v4199 = vcombine.high %v4071, %v4071
    %v4200 = vcombine.high %v4072, %v4072
    %v4201 = vcombine.high %v4073, %v4073
    %v4202 = vcombine.high %v4074, %v4074
    %v4203 = vcombine.high %v4075, %v4075
    %v4204 = vcombine.high %v4076, %v4076
    %v4205 = vcombine.high %v4077, %v4077
    %v4206 = vcombine.high %v4078, %v4078
    %v4207 = vcombine.high %v4079, %v4079
    %v4208 = vcombine.high %v4080, %v4080
    %v4209 = vcombine.high %v4081, %v4081
    %v4210 = vcombine.high %v4082, %v4082
    %v4211 = vcombine.high %v4083, %v4083
    %v4212 = vcombine.high %v4084, %v4084
    %v4213 = vcombine.high %v4085, %v4085
    %vm4278 = vcmask 1043456
    %v4279 = vsel %vm4278, %v4022, 0.0
    %v4280 = vrot.slane %v4279, 4
    %v4281 = vadd.f32 %v4279, %v4280
    %v4282 = vrot.slane %v4281, 2
    %v4283 = vadd.f32 %v4281, %v4282
    %v4284 = vrot.slane %v4283, 1
    %v4285 = vadd.f32 %v4283, %v4284
    %v4286 = vsel %vm4278, %v4150, 0.0
    %v4287 = vrot.slane %v4286, 4
    %v4288 = vadd.f32 %v4286, %v4287
    %v4289 = vrot.slane %v4288, 2
    %v4290 = vadd.f32 %v4288, %v4289
    %v4291 = vrot.slane %v4290, 1
    %v4292 = vadd.f32 %v4290, %v4291
    %v4293 = vsel %vm4278, %v4023, 0.0
    %v4294 = vrot.slane %v4293, 4
    %v4295 = vadd.f32 %v4293, %v4294
    %v4296 = vrot.slane %v4295, 2
    %v4297 = vadd.f32 %v4295, %v4296
    %v4298 = vrot.slane %v4297, 1
    %v4299 = vadd.f32 %v4297, %v4298
    %v4300 = vsel %vm4278, %v4151, 0.0
    %v4301 = vrot.slane %v4300, 4
    %v4302 = vadd.f32 %v4300, %v4301
    %v4303 = vrot.slane %v4302, 2
    %v4304 = vadd.f32 %v4302, %v4303
    %v4305 = vrot.slane %v4304, 1
    %v4306 = vadd.f32 %v4304, %v4305
    %v4307 = vsel %vm4278, %v4024, 0.0
    %v4308 = vrot.slane %v4307, 4
    %v4309 = vadd.f32 %v4307, %v4308
    %v4310 = vrot.slane %v4309, 2
    %v4311 = vadd.f32 %v4309, %v4310
    %v4312 = vrot.slane %v4311, 1
    %v4313 = vadd.f32 %v4311, %v4312
    %v4314 = vsel %vm4278, %v4152, 0.0
    %v4315 = vrot.slane %v4314, 4
    %v4316 = vadd.f32 %v4314, %v4315
    %v4317 = vrot.slane %v4316, 2
    %v4318 = vadd.f32 %v4316, %v4317
    %v4319 = vrot.slane %v4318, 1
    %v4320 = vadd.f32 %v4318, %v4319
    %v4321 = vsel %vm4278, %v4025, 0.0
    %v4322 = vrot.slane %v4321, 4
    %v4323 = vadd.f32 %v4321, %v4322
    %v4324 = vrot.slane %v4323, 2
    %v4325 = vadd.f32 %v4323, %v4324
    %v4326 = vrot.slane %v4325, 1
    %v4327 = vadd.f32 %v4325, %v4326
    %v4328 = vsel %vm4278, %v4153, 0.0
    %v4329 = vrot.slane %v4328, 4
    %v4330 = vadd.f32 %v4328, %v4329
    %v4331 = vrot.slane %v4330, 2
    %v4332 = vadd.f32 %v4330, %v4331
    %v4333 = vrot.slane %v4332, 1
    %v4334 = vadd.f32 %v4332, %v4333
    %v4335 = vsel %vm4278, %v4026, 0.0
    %v4336 = vrot.slane %v4335, 4
    %v4337 = vadd.f32 %v4335, %v4336
    %v4338 = vrot.slane %v4337, 2
    %v4339 = vadd.f32 %v4337, %v4338
    %v4340 = vrot.slane %v4339, 1
    %v4341 = vadd.f32 %v4339, %v4340
    %v4342 = vsel %vm4278, %v4154, 0.0
    %v4343 = vrot.slane %v4342, 4
    %v4344 = vadd.f32 %v4342, %v4343
    %v4345 = vrot.slane %v4344, 2
    %v4346 = vadd.f32 %v4344, %v4345
    %v4347 = vrot.slane %v4346, 1
    %v4348 = vadd.f32 %v4346, %v4347
    %v4349 = vsel %vm4278, %v4027, 0.0
    %v4350 = vrot.slane %v4349, 4
    %v4351 = vadd.f32 %v4349, %v4350
    %v4352 = vrot.slane %v4351, 2
    %v4353 = vadd.f32 %v4351, %v4352
    %v4354 = vrot.slane %v4353, 1
    %v4355 = vadd.f32 %v4353, %v4354
    %v4356 = vsel %vm4278, %v4155, 0.0
    %v4357 = vrot.slane %v4356, 4
    %v4358 = vadd.f32 %v4356, %v4357
    %v4359 = vrot.slane %v4358, 2
    %v4360 = vadd.f32 %v4358, %v4359
    %v4361 = vrot.slane %v4360, 1
    %v4362 = vadd.f32 %v4360, %v4361
    %v4363 = vsel %vm4278, %v4028, 0.0
    %v4364 = vrot.slane %v4363, 4
    %v4365 = vadd.f32 %v4363, %v4364
    %v4366 = vrot.slane %v4365, 2
    %v4367 = vadd.f32 %v4365, %v4366
    %v4368 = vrot.slane %v4367, 1
    %v4369 = vadd.f32 %v4367, %v4368
    %v4370 = vsel %vm4278, %v4156, 0.0
    %v4371 = vrot.slane %v4370, 4
    %v4372 = vadd.f32 %v4370, %v4371
    %v4373 = vrot.slane %v4372, 2
    %v4374 = vadd.f32 %v4372, %v4373
    %v4375 = vrot.slane %v4374, 1
    %v4376 = vadd.f32 %v4374, %v4375
    %v4377 = vsel %vm4278, %v4029, 0.0
    %v4378 = vrot.slane %v4377, 4
    %v4379 = vadd.f32 %v4377, %v4378
    %v4380 = vrot.slane %v4379, 2
    %v4381 = vadd.f32 %v4379, %v4380
    %v4382 = vrot.slane %v4381, 1
    %v4383 = vadd.f32 %v4381, %v4382
    %v4384 = vsel %vm4278, %v4157, 0.0
    %v4385 = vrot.slane %v4384, 4
    %v4386 = vadd.f32 %v4384, %v4385
    %v4387 = vrot.slane %v4386, 2
    %v4388 = vadd.f32 %v4386, %v4387
    %v4389 = vrot.slane %v4388, 1
    %v4390 = vadd.f32 %v4388, %v4389
    %v4391 = vsel %vm4278, %v4030, 0.0
    %v4392 = vrot.slane %v4391, 4
    %v4393 = vadd.f32 %v4391, %v4392
    %v4394 = vrot.slane %v4393, 2
    %v4395 = vadd.f32 %v4393, %v4394
    %v4396 = vrot.slane %v4395, 1
    %v4397 = vadd.f32 %v4395, %v4396
    %v4398 = vsel %vm4278, %v4158, 0.0
    %v4399 = vrot.slane %v4398, 4
    %v4400 = vadd.f32 %v4398, %v4399
    %v4401 = vrot.slane %v4400, 2
    %v4402 = vadd.f32 %v4400, %v4401
    %v4403 = vrot.slane %v4402, 1
    %v4404 = vadd.f32 %v4402, %v4403
    %v4405 = vsel %vm4278, %v4031, 0.0
    %v4406 = vrot.slane %v4405, 4
    %v4407 = vadd.f32 %v4405, %v4406
    %v4408 = vrot.slane %v4407, 2
    %v4409 = vadd.f32 %v4407, %v4408
    %v4410 = vrot.slane %v4409, 1
    %v4411 = vadd.f32 %v4409, %v4410
    %v4412 = vsel %vm4278, %v4159, 0.0
    %v4413 = vrot.slane %v4412, 4
    %v4414 = vadd.f32 %v4412, %v4413
    %v4415 = vrot.slane %v4414, 2
    %v4416 = vadd.f32 %v4414, %v4415
    %v4417 = vrot.slane %v4416, 1
    %v4418 = vadd.f32 %v4416, %v4417
    %v4419 = vsel %vm4278, %v4032, 0.0
    %v4420 = vrot.slane %v4419, 4
    %v4421 = vadd.f32 %v4419, %v4420
    %v4422 = vrot.slane %v4421, 2
    %v4423 = vadd.f32 %v4421, %v4422
    %v4424 = vrot.slane %v4423, 1
    %v4425 = vadd.f32 %v4423, %v4424
    %v4426 = vsel %vm4278, %v4160, 0.0
    %v4427 = vrot.slane %v4426, 4
    %v4428 = vadd.f32 %v4426, %v4427
    %v4429 = vrot.slane %v4428, 2
    %v4430 = vadd.f32 %v4428, %v4429
    %v4431 = vrot.slane %v4430, 1
    %v4432 = vadd.f32 %v4430, %v4431
    %v4433 = vsel %vm4278, %v4033, 0.0
    %v4434 = vrot.slane %v4433, 4
    %v4435 = vadd.f32 %v4433, %v4434
    %v4436 = vrot.slane %v4435, 2
    %v4437 = vadd.f32 %v4435, %v4436
    %v4438 = vrot.slane %v4437, 1
    %v4439 = vadd.f32 %v4437, %v4438
    %v4440 = vsel %vm4278, %v4161, 0.0
    %v4441 = vrot.slane %v4440, 4
    %v4442 = vadd.f32 %v4440, %v4441
    %v4443 = vrot.slane %v4442, 2
    %v4444 = vadd.f32 %v4442, %v4443
    %v4445 = vrot.slane %v4444, 1
    %v4446 = vadd.f32 %v4444, %v4445
    %v4447 = vsel %vm4278, %v4034, 0.0
    %v4448 = vrot.slane %v4447, 4
    %v4449 = vadd.f32 %v4447, %v4448
    %v4450 = vrot.slane %v4449, 2
    %v4451 = vadd.f32 %v4449, %v4450
    %v4452 = vrot.slane %v4451, 1
    %v4453 = vadd.f32 %v4451, %v4452
    %v4454 = vsel %vm4278, %v4162, 0.0
    %v4455 = vrot.slane %v4454, 4
    %v4456 = vadd.f32 %v4454, %v4455
    %v4457 = vrot.slane %v4456, 2
    %v4458 = vadd.f32 %v4456, %v4457
    %v4459 = vrot.slane %v4458, 1
    %v4460 = vadd.f32 %v4458, %v4459
    %v4461 = vsel %vm4278, %v4035, 0.0
    %v4462 = vrot.slane %v4461, 4
    %v4463 = vadd.f32 %v4461, %v4462
    %v4464 = vrot.slane %v4463, 2
    %v4465 = vadd.f32 %v4463, %v4464
    %v4466 = vrot.slane %v4465, 1
    %v4467 = vadd.f32 %v4465, %v4466
    %v4468 = vsel %vm4278, %v4163, 0.0
    %v4469 = vrot.slane %v4468, 4
    %v4470 = vadd.f32 %v4468, %v4469
    %v4471 = vrot.slane %v4470, 2
    %v4472 = vadd.f32 %v4470, %v4471
    %v4473 = vrot.slane %v4472, 1
    %v4474 = vadd.f32 %v4472, %v4473
    %v4475 = vsel %vm4278, %v4036, 0.0
    %v4476 = vrot.slane %v4475, 4
    %v4477 = vadd.f32 %v4475, %v4476
    %v4478 = vrot.slane %v4477, 2
    %v4479 = vadd.f32 %v4477, %v4478
    %v4480 = vrot.slane %v4479, 1
    %v4481 = vadd.f32 %v4479, %v4480
    %v4482 = vsel %vm4278, %v4164, 0.0
    %v4483 = vrot.slane %v4482, 4
    %v4484 = vadd.f32 %v4482, %v4483
    %v4485 = vrot.slane %v4484, 2
    %v4486 = vadd.f32 %v4484, %v4485
    %v4487 = vrot.slane %v4486, 1
    %v4488 = vadd.f32 %v4486, %v4487
    %v4489 = vsel %vm4278, %v4037, 0.0
    %v4490 = vrot.slane %v4489, 4
    %v4491 = vadd.f32 %v4489, %v4490
    %v4492 = vrot.slane %v4491, 2
    %v4493 = vadd.f32 %v4491, %v4492
    %v4494 = vrot.slane %v4493, 1
    %v4495 = vadd.f32 %v4493, %v4494
    %v4496 = vsel %vm4278, %v4165, 0.0
    %v4497 = vrot.slane %v4496, 4
    %v4498 = vadd.f32 %v4496, %v4497
    %v4499 = vrot.slane %v4498, 2
    %v4500 = vadd.f32 %v4498, %v4499
    %v4501 = vrot.slane %v4500, 1
    %v4502 = vadd.f32 %v4500, %v4501
    %v4503 = vsel %vm4278, %v4038, 0.0
    %v4504 = vrot.slane %v4503, 4
    %v4505 = vadd.f32 %v4503, %v4504
    %v4506 = vrot.slane %v4505, 2
    %v4507 = vadd.f32 %v4505, %v4506
    %v4508 = vrot.slane %v4507, 1
    %v4509 = vadd.f32 %v4507, %v4508
    %v4510 = vsel %vm4278, %v4166, 0.0
    %v4511 = vrot.slane %v4510, 4
    %v4512 = vadd.f32 %v4510, %v4511
    %v4513 = vrot.slane %v4512, 2
    %v4514 = vadd.f32 %v4512, %v4513
    %v4515 = vrot.slane %v4514, 1
    %v4516 = vadd.f32 %v4514, %v4515
    %v4517 = vsel %vm4278, %v4039, 0.0
    %v4518 = vrot.slane %v4517, 4
    %v4519 = vadd.f32 %v4517, %v4518
    %v4520 = vrot.slane %v4519, 2
    %v4521 = vadd.f32 %v4519, %v4520
    %v4522 = vrot.slane %v4521, 1
    %v4523 = vadd.f32 %v4521, %v4522
    %v4524 = vsel %vm4278, %v4167, 0.0
    %v4525 = vrot.slane %v4524, 4
    %v4526 = vadd.f32 %v4524, %v4525
    %v4527 = vrot.slane %v4526, 2
    %v4528 = vadd.f32 %v4526, %v4527
    %v4529 = vrot.slane %v4528, 1
    %v4530 = vadd.f32 %v4528, %v4529
    %v4531 = vsel %vm4278, %v4040, 0.0
    %v4532 = vrot.slane %v4531, 4
    %v4533 = vadd.f32 %v4531, %v4532
    %v4534 = vrot.slane %v4533, 2
    %v4535 = vadd.f32 %v4533, %v4534
    %v4536 = vrot.slane %v4535, 1
    %v4537 = vadd.f32 %v4535, %v4536
    %v4538 = vsel %vm4278, %v4168, 0.0
    %v4539 = vrot.slane %v4538, 4
    %v4540 = vadd.f32 %v4538, %v4539
    %v4541 = vrot.slane %v4540, 2
    %v4542 = vadd.f32 %v4540, %v4541
    %v4543 = vrot.slane %v4542, 1
    %v4544 = vadd.f32 %v4542, %v4543
    %v4545 = vsel %vm4278, %v4041, 0.0
    %v4546 = vrot.slane %v4545, 4
    %v4547 = vadd.f32 %v4545, %v4546
    %v4548 = vrot.slane %v4547, 2
    %v4549 = vadd.f32 %v4547, %v4548
    %v4550 = vrot.slane %v4549, 1
    %v4551 = vadd.f32 %v4549, %v4550
    %v4552 = vsel %vm4278, %v4169, 0.0
    %v4553 = vrot.slane %v4552, 4
    %v4554 = vadd.f32 %v4552, %v4553
    %v4555 = vrot.slane %v4554, 2
    %v4556 = vadd.f32 %v4554, %v4555
    %v4557 = vrot.slane %v4556, 1
    %v4558 = vadd.f32 %v4556, %v4557
    %v4559 = vsel %vm4278, %v4042, 0.0
    %v4560 = vrot.slane %v4559, 4
    %v4561 = vadd.f32 %v4559, %v4560
    %v4562 = vrot.slane %v4561, 2
    %v4563 = vadd.f32 %v4561, %v4562
    %v4564 = vrot.slane %v4563, 1
    %v4565 = vadd.f32 %v4563, %v4564
    %v4566 = vsel %vm4278, %v4170, 0.0
    %v4567 = vrot.slane %v4566, 4
    %v4568 = vadd.f32 %v4566, %v4567
    %v4569 = vrot.slane %v4568, 2
    %v4570 = vadd.f32 %v4568, %v4569
    %v4571 = vrot.slane %v4570, 1
    %v4572 = vadd.f32 %v4570, %v4571
    %v4573 = vsel %vm4278, %v4043, 0.0
    %v4574 = vrot.slane %v4573, 4
    %v4575 = vadd.f32 %v4573, %v4574
    %v4576 = vrot.slane %v4575, 2
    %v4577 = vadd.f32 %v4575, %v4576
    %v4578 = vrot.slane %v4577, 1
    %v4579 = vadd.f32 %v4577, %v4578
    %v4580 = vsel %vm4278, %v4171, 0.0
    %v4581 = vrot.slane %v4580, 4
    %v4582 = vadd.f32 %v4580, %v4581
    %v4583 = vrot.slane %v4582, 2
    %v4584 = vadd.f32 %v4582, %v4583
    %v4585 = vrot.slane %v4584, 1
    %v4586 = vadd.f32 %v4584, %v4585
    %v4587 = vsel %vm4278, %v4044, 0.0
    %v4588 = vrot.slane %v4587, 4
    %v4589 = vadd.f32 %v4587, %v4588
    %v4590 = vrot.slane %v4589, 2
    %v4591 = vadd.f32 %v4589, %v4590
    %v4592 = vrot.slane %v4591, 1
    %v4593 = vadd.f32 %v4591, %v4592
    %v4594 = vsel %vm4278, %v4172, 0.0
    %v4595 = vrot.slane %v4594, 4
    %v4596 = vadd.f32 %v4594, %v4595
    %v4597 = vrot.slane %v4596, 2
    %v4598 = vadd.f32 %v4596, %v4597
    %v4599 = vrot.slane %v4598, 1
    %v4600 = vadd.f32 %v4598, %v4599
    %v4601 = vsel %vm4278, %v4045, 0.0
    %v4602 = vrot.slane %v4601, 4
    %v4603 = vadd.f32 %v4601, %v4602
    %v4604 = vrot.slane %v4603, 2
    %v4605 = vadd.f32 %v4603, %v4604
    %v4606 = vrot.slane %v4605, 1
    %v4607 = vadd.f32 %v4605, %v4606
    %v4608 = vsel %vm4278, %v4173, 0.0
    %v4609 = vrot.slane %v4608, 4
    %v4610 = vadd.f32 %v4608, %v4609
    %v4611 = vrot.slane %v4610, 2
    %v4612 = vadd.f32 %v4610, %v4611
    %v4613 = vrot.slane %v4612, 1
    %v4614 = vadd.f32 %v4612, %v4613
    %v4615 = vsel %vm4278, %v4046, 0.0
    %v4616 = vrot.slane %v4615, 4
    %v4617 = vadd.f32 %v4615, %v4616
    %v4618 = vrot.slane %v4617, 2
    %v4619 = vadd.f32 %v4617, %v4618
    %v4620 = vrot.slane %v4619, 1
    %v4621 = vadd.f32 %v4619, %v4620
    %v4622 = vsel %vm4278, %v4174, 0.0
    %v4623 = vrot.slane %v4622, 4
    %v4624 = vadd.f32 %v4622, %v4623
    %v4625 = vrot.slane %v4624, 2
    %v4626 = vadd.f32 %v4624, %v4625
    %v4627 = vrot.slane %v4626, 1
    %v4628 = vadd.f32 %v4626, %v4627
    %v4629 = vsel %vm4278, %v4047, 0.0
    %v4630 = vrot.slane %v4629, 4
    %v4631 = vadd.f32 %v4629, %v4630
    %v4632 = vrot.slane %v4631, 2
    %v4633 = vadd.f32 %v4631, %v4632
    %v4634 = vrot.slane %v4633, 1
    %v4635 = vadd.f32 %v4633, %v4634
    %v4636 = vsel %vm4278, %v4175, 0.0
    %v4637 = vrot.slane %v4636, 4
    %v4638 = vadd.f32 %v4636, %v4637
    %v4639 = vrot.slane %v4638, 2
    %v4640 = vadd.f32 %v4638, %v4639
    %v4641 = vrot.slane %v4640, 1
    %v4642 = vadd.f32 %v4640, %v4641
    %v4643 = vsel %vm4278, %v4048, 0.0
    %v4644 = vrot.slane %v4643, 4
    %v4645 = vadd.f32 %v4643, %v4644
    %v4646 = vrot.slane %v4645, 2
    %v4647 = vadd.f32 %v4645, %v4646
    %v4648 = vrot.slane %v4647, 1
    %v4649 = vadd.f32 %v4647, %v4648
    %v4650 = vsel %vm4278, %v4176, 0.0
    %v4651 = vrot.slane %v4650, 4
    %v4652 = vadd.f32 %v4650, %v4651
    %v4653 = vrot.slane %v4652, 2
    %v4654 = vadd.f32 %v4652, %v4653
    %v4655 = vrot.slane %v4654, 1
    %v4656 = vadd.f32 %v4654, %v4655
    %v4657 = vsel %vm4278, %v4049, 0.0
    %v4658 = vrot.slane %v4657, 4
    %v4659 = vadd.f32 %v4657, %v4658
    %v4660 = vrot.slane %v4659, 2
    %v4661 = vadd.f32 %v4659, %v4660
    %v4662 = vrot.slane %v4661, 1
    %v4663 = vadd.f32 %v4661, %v4662
    %v4664 = vsel %vm4278, %v4177, 0.0
    %v4665 = vrot.slane %v4664, 4
    %v4666 = vadd.f32 %v4664, %v4665
    %v4667 = vrot.slane %v4666, 2
    %v4668 = vadd.f32 %v4666, %v4667
    %v4669 = vrot.slane %v4668, 1
    %v4670 = vadd.f32 %v4668, %v4669
    %v4671 = vsel %vm4278, %v4050, 0.0
    %v4672 = vrot.slane %v4671, 4
    %v4673 = vadd.f32 %v4671, %v4672
    %v4674 = vrot.slane %v4673, 2
    %v4675 = vadd.f32 %v4673, %v4674
    %v4676 = vrot.slane %v4675, 1
    %v4677 = vadd.f32 %v4675, %v4676
    %v4678 = vsel %vm4278, %v4178, 0.0
    %v4679 = vrot.slane %v4678, 4
    %v4680 = vadd.f32 %v4678, %v4679
    %v4681 = vrot.slane %v4680, 2
    %v4682 = vadd.f32 %v4680, %v4681
    %v4683 = vrot.slane %v4682, 1
    %v4684 = vadd.f32 %v4682, %v4683
    %v4685 = vsel %vm4278, %v4051, 0.0
    %v4686 = vrot.slane %v4685, 4
    %v4687 = vadd.f32 %v4685, %v4686
    %v4688 = vrot.slane %v4687, 2
    %v4689 = vadd.f32 %v4687, %v4688
    %v4690 = vrot.slane %v4689, 1
    %v4691 = vadd.f32 %v4689, %v4690
    %v4692 = vsel %vm4278, %v4179, 0.0
    %v4693 = vrot.slane %v4692, 4
    %v4694 = vadd.f32 %v4692, %v4693
    %v4695 = vrot.slane %v4694, 2
    %v4696 = vadd.f32 %v4694, %v4695
    %v4697 = vrot.slane %v4696, 1
    %v4698 = vadd.f32 %v4696, %v4697
    %v4699 = vsel %vm4278, %v4052, 0.0
    %v4700 = vrot.slane %v4699, 4
    %v4701 = vadd.f32 %v4699, %v4700
    %v4702 = vrot.slane %v4701, 2
    %v4703 = vadd.f32 %v4701, %v4702
    %v4704 = vrot.slane %v4703, 1
    %v4705 = vadd.f32 %v4703, %v4704
    %v4706 = vsel %vm4278, %v4180, 0.0
    %v4707 = vrot.slane %v4706, 4
    %v4708 = vadd.f32 %v4706, %v4707
    %v4709 = vrot.slane %v4708, 2
    %v4710 = vadd.f32 %v4708, %v4709
    %v4711 = vrot.slane %v4710, 1
    %v4712 = vadd.f32 %v4710, %v4711
    %v4713 = vsel %vm4278, %v4053, 0.0
    %v4714 = vrot.slane %v4713, 4
    %v4715 = vadd.f32 %v4713, %v4714
    %v4716 = vrot.slane %v4715, 2
    %v4717 = vadd.f32 %v4715, %v4716
    %v4718 = vrot.slane %v4717, 1
    %v4719 = vadd.f32 %v4717, %v4718
    %v4720 = vsel %vm4278, %v4181, 0.0
    %v4721 = vrot.slane %v4720, 4
    %v4722 = vadd.f32 %v4720, %v4721
    %v4723 = vrot.slane %v4722, 2
    %v4724 = vadd.f32 %v4722, %v4723
    %v4725 = vrot.slane %v4724, 1
    %v4726 = vadd.f32 %v4724, %v4725
    %v4727 = vsel %vm4278, %v4054, 0.0
    %v4728 = vrot.slane %v4727, 4
    %v4729 = vadd.f32 %v4727, %v4728
    %v4730 = vrot.slane %v4729, 2
    %v4731 = vadd.f32 %v4729, %v4730
    %v4732 = vrot.slane %v4731, 1
    %v4733 = vadd.f32 %v4731, %v4732
    %v4734 = vsel %vm4278, %v4182, 0.0
    %v4735 = vrot.slane %v4734, 4
    %v4736 = vadd.f32 %v4734, %v4735
    %v4737 = vrot.slane %v4736, 2
    %v4738 = vadd.f32 %v4736, %v4737
    %v4739 = vrot.slane %v4738, 1
    %v4740 = vadd.f32 %v4738, %v4739
    %v4741 = vsel %vm4278, %v4055, 0.0
    %v4742 = vrot.slane %v4741, 4
    %v4743 = vadd.f32 %v4741, %v4742
    %v4744 = vrot.slane %v4743, 2
    %v4745 = vadd.f32 %v4743, %v4744
    %v4746 = vrot.slane %v4745, 1
    %v4747 = vadd.f32 %v4745, %v4746
    %v4748 = vsel %vm4278, %v4183, 0.0
    %v4749 = vrot.slane %v4748, 4
    %v4750 = vadd.f32 %v4748, %v4749
    %v4751 = vrot.slane %v4750, 2
    %v4752 = vadd.f32 %v4750, %v4751
    %v4753 = vrot.slane %v4752, 1
    %v4754 = vadd.f32 %v4752, %v4753
    %v4755 = vsel %vm4278, %v4056, 0.0
    %v4756 = vrot.slane %v4755, 4
    %v4757 = vadd.f32 %v4755, %v4756
    %v4758 = vrot.slane %v4757, 2
    %v4759 = vadd.f32 %v4757, %v4758
    %v4760 = vrot.slane %v4759, 1
    %v4761 = vadd.f32 %v4759, %v4760
    %v4762 = vsel %vm4278, %v4184, 0.0
    %v4763 = vrot.slane %v4762, 4
    %v4764 = vadd.f32 %v4762, %v4763
    %v4765 = vrot.slane %v4764, 2
    %v4766 = vadd.f32 %v4764, %v4765
    %v4767 = vrot.slane %v4766, 1
    %v4768 = vadd.f32 %v4766, %v4767
    %v4769 = vsel %vm4278, %v4057, 0.0
    %v4770 = vrot.slane %v4769, 4
    %v4771 = vadd.f32 %v4769, %v4770
    %v4772 = vrot.slane %v4771, 2
    %v4773 = vadd.f32 %v4771, %v4772
    %v4774 = vrot.slane %v4773, 1
    %v4775 = vadd.f32 %v4773, %v4774
    %v4776 = vsel %vm4278, %v4185, 0.0
    %v4777 = vrot.slane %v4776, 4
    %v4778 = vadd.f32 %v4776, %v4777
    %v4779 = vrot.slane %v4778, 2
    %v4780 = vadd.f32 %v4778, %v4779
    %v4781 = vrot.slane %v4780, 1
    %v4782 = vadd.f32 %v4780, %v4781
    %v4783 = vsel %vm4278, %v4058, 0.0
    %v4784 = vrot.slane %v4783, 4
    %v4785 = vadd.f32 %v4783, %v4784
    %v4786 = vrot.slane %v4785, 2
    %v4787 = vadd.f32 %v4785, %v4786
    %v4788 = vrot.slane %v4787, 1
    %v4789 = vadd.f32 %v4787, %v4788
    %v4790 = vsel %vm4278, %v4186, 0.0
    %v4791 = vrot.slane %v4790, 4
    %v4792 = vadd.f32 %v4790, %v4791
    %v4793 = vrot.slane %v4792, 2
    %v4794 = vadd.f32 %v4792, %v4793
    %v4795 = vrot.slane %v4794, 1
    %v4796 = vadd.f32 %v4794, %v4795
    %v4797 = vsel %vm4278, %v4059, 0.0
    %v4798 = vrot.slane %v4797, 4
    %v4799 = vadd.f32 %v4797, %v4798
    %v4800 = vrot.slane %v4799, 2
    %v4801 = vadd.f32 %v4799, %v4800
    %v4802 = vrot.slane %v4801, 1
    %v4803 = vadd.f32 %v4801, %v4802
    %v4804 = vsel %vm4278, %v4187, 0.0
    %v4805 = vrot.slane %v4804, 4
    %v4806 = vadd.f32 %v4804, %v4805
    %v4807 = vrot.slane %v4806, 2
    %v4808 = vadd.f32 %v4806, %v4807
    %v4809 = vrot.slane %v4808, 1
    %v4810 = vadd.f32 %v4808, %v4809
    %v4811 = vsel %vm4278, %v4060, 0.0
    %v4812 = vrot.slane %v4811, 4
    %v4813 = vadd.f32 %v4811, %v4812
    %v4814 = vrot.slane %v4813, 2
    %v4815 = vadd.f32 %v4813, %v4814
    %v4816 = vrot.slane %v4815, 1
    %v4817 = vadd.f32 %v4815, %v4816
    %v4818 = vsel %vm4278, %v4188, 0.0
    %v4819 = vrot.slane %v4818, 4
    %v4820 = vadd.f32 %v4818, %v4819
    %v4821 = vrot.slane %v4820, 2
    %v4822 = vadd.f32 %v4820, %v4821
    %v4823 = vrot.slane %v4822, 1
    %v4824 = vadd.f32 %v4822, %v4823
    %v4825 = vsel %vm4278, %v4061, 0.0
    %v4826 = vrot.slane %v4825, 4
    %v4827 = vadd.f32 %v4825, %v4826
    %v4828 = vrot.slane %v4827, 2
    %v4829 = vadd.f32 %v4827, %v4828
    %v4830 = vrot.slane %v4829, 1
    %v4831 = vadd.f32 %v4829, %v4830
    %v4832 = vsel %vm4278, %v4189, 0.0
    %v4833 = vrot.slane %v4832, 4
    %v4834 = vadd.f32 %v4832, %v4833
    %v4835 = vrot.slane %v4834, 2
    %v4836 = vadd.f32 %v4834, %v4835
    %v4837 = vrot.slane %v4836, 1
    %v4838 = vadd.f32 %v4836, %v4837
    %v4839 = vsel %vm4278, %v4062, 0.0
    %v4840 = vrot.slane %v4839, 4
    %v4841 = vadd.f32 %v4839, %v4840
    %v4842 = vrot.slane %v4841, 2
    %v4843 = vadd.f32 %v4841, %v4842
    %v4844 = vrot.slane %v4843, 1
    %v4845 = vadd.f32 %v4843, %v4844
    %v4846 = vsel %vm4278, %v4190, 0.0
    %v4847 = vrot.slane %v4846, 4
    %v4848 = vadd.f32 %v4846, %v4847
    %v4849 = vrot.slane %v4848, 2
    %v4850 = vadd.f32 %v4848, %v4849
    %v4851 = vrot.slane %v4850, 1
    %v4852 = vadd.f32 %v4850, %v4851
    %v4853 = vsel %vm4278, %v4063, 0.0
    %v4854 = vrot.slane %v4853, 4
    %v4855 = vadd.f32 %v4853, %v4854
    %v4856 = vrot.slane %v4855, 2
    %v4857 = vadd.f32 %v4855, %v4856
    %v4858 = vrot.slane %v4857, 1
    %v4859 = vadd.f32 %v4857, %v4858
    %v4860 = vsel %vm4278, %v4191, 0.0
    %v4861 = vrot.slane %v4860, 4
    %v4862 = vadd.f32 %v4860, %v4861
    %v4863 = vrot.slane %v4862, 2
    %v4864 = vadd.f32 %v4862, %v4863
    %v4865 = vrot.slane %v4864, 1
    %v4866 = vadd.f32 %v4864, %v4865
    %v4867 = vsel %vm4278, %v4064, 0.0
    %v4868 = vrot.slane %v4867, 4
    %v4869 = vadd.f32 %v4867, %v4868
    %v4870 = vrot.slane %v4869, 2
    %v4871 = vadd.f32 %v4869, %v4870
    %v4872 = vrot.slane %v4871, 1
    %v4873 = vadd.f32 %v4871, %v4872
    %v4874 = vsel %vm4278, %v4192, 0.0
    %v4875 = vrot.slane %v4874, 4
    %v4876 = vadd.f32 %v4874, %v4875
    %v4877 = vrot.slane %v4876, 2
    %v4878 = vadd.f32 %v4876, %v4877
    %v4879 = vrot.slane %v4878, 1
    %v4880 = vadd.f32 %v4878, %v4879
    %v4881 = vsel %vm4278, %v4065, 0.0
    %v4882 = vrot.slane %v4881, 4
    %v4883 = vadd.f32 %v4881, %v4882
    %v4884 = vrot.slane %v4883, 2
    %v4885 = vadd.f32 %v4883, %v4884
    %v4886 = vrot.slane %v4885, 1
    %v4887 = vadd.f32 %v4885, %v4886
    %v4888 = vsel %vm4278, %v4193, 0.0
    %v4889 = vrot.slane %v4888, 4
    %v4890 = vadd.f32 %v4888, %v4889
    %v4891 = vrot.slane %v4890, 2
    %v4892 = vadd.f32 %v4890, %v4891
    %v4893 = vrot.slane %v4892, 1
    %v4894 = vadd.f32 %v4892, %v4893
    %v4895 = vsel %vm4278, %v4066, 0.0
    %v4896 = vrot.slane %v4895, 4
    %v4897 = vadd.f32 %v4895, %v4896
    %v4898 = vrot.slane %v4897, 2
    %v4899 = vadd.f32 %v4897, %v4898
    %v4900 = vrot.slane %v4899, 1
    %v4901 = vadd.f32 %v4899, %v4900
    %v4902 = vsel %vm4278, %v4194, 0.0
    %v4903 = vrot.slane %v4902, 4
    %v4904 = vadd.f32 %v4902, %v4903
    %v4905 = vrot.slane %v4904, 2
    %v4906 = vadd.f32 %v4904, %v4905
    %v4907 = vrot.slane %v4906, 1
    %v4908 = vadd.f32 %v4906, %v4907
    %v4909 = vsel %vm4278, %v4067, 0.0
    %v4910 = vrot.slane %v4909, 4
    %v4911 = vadd.f32 %v4909, %v4910
    %v4912 = vrot.slane %v4911, 2
    %v4913 = vadd.f32 %v4911, %v4912
    %v4914 = vrot.slane %v4913, 1
    %v4915 = vadd.f32 %v4913, %v4914
    %v4916 = vsel %vm4278, %v4195, 0.0
    %v4917 = vrot.slane %v4916, 4
    %v4918 = vadd.f32 %v4916, %v4917
    %v4919 = vrot.slane %v4918, 2
    %v4920 = vadd.f32 %v4918, %v4919
    %v4921 = vrot.slane %v4920, 1
    %v4922 = vadd.f32 %v4920, %v4921
    %v4923 = vsel %vm4278, %v4068, 0.0
    %v4924 = vrot.slane %v4923, 4
    %v4925 = vadd.f32 %v4923, %v4924
    %v4926 = vrot.slane %v4925, 2
    %v4927 = vadd.f32 %v4925, %v4926
    %v4928 = vrot.slane %v4927, 1
    %v4929 = vadd.f32 %v4927, %v4928
    %v4930 = vsel %vm4278, %v4196, 0.0
    %v4931 = vrot.slane %v4930, 4
    %v4932 = vadd.f32 %v4930, %v4931
    %v4933 = vrot.slane %v4932, 2
    %v4934 = vadd.f32 %v4932, %v4933
    %v4935 = vrot.slane %v4934, 1
    %v4936 = vadd.f32 %v4934, %v4935
    %v4937 = vsel %vm4278, %v4069, 0.0
    %v4938 = vrot.slane %v4937, 4
    %v4939 = vadd.f32 %v4937, %v4938
    %v4940 = vrot.slane %v4939, 2
    %v4941 = vadd.f32 %v4939, %v4940
    %v4942 = vrot.slane %v4941, 1
    %v4943 = vadd.f32 %v4941, %v4942
    %v4944 = vsel %vm4278, %v4197, 0.0
    %v4945 = vrot.slane %v4944, 4
    %v4946 = vadd.f32 %v4944, %v4945
    %v4947 = vrot.slane %v4946, 2
    %v4948 = vadd.f32 %v4946, %v4947
    %v4949 = vrot.slane %v4948, 1
    %v4950 = vadd.f32 %v4948, %v4949
    %v4951 = vsel %vm4278, %v4070, 0.0
    %v4952 = vrot.slane %v4951, 4
    %v4953 = vadd.f32 %v4951, %v4952
    %v4954 = vrot.slane %v4953, 2
    %v4955 = vadd.f32 %v4953, %v4954
    %v4956 = vrot.slane %v4955, 1
    %v4957 = vadd.f32 %v4955, %v4956
    %v4958 = vsel %vm4278, %v4198, 0.0
    %v4959 = vrot.slane %v4958, 4
    %v4960 = vadd.f32 %v4958, %v4959
    %v4961 = vrot.slane %v4960, 2
    %v4962 = vadd.f32 %v4960, %v4961
    %v4963 = vrot.slane %v4962, 1
    %v4964 = vadd.f32 %v4962, %v4963
    %v4965 = vsel %vm4278, %v4071, 0.0
    %v4966 = vrot.slane %v4965, 4
    %v4967 = vadd.f32 %v4965, %v4966
    %v4968 = vrot.slane %v4967, 2
    %v4969 = vadd.f32 %v4967, %v4968
    %v4970 = vrot.slane %v4969, 1
    %v4971 = vadd.f32 %v4969, %v4970
    %v4972 = vsel %vm4278, %v4199, 0.0
    %v4973 = vrot.slane %v4972, 4
    %v4974 = vadd.f32 %v4972, %v4973
    %v4975 = vrot.slane %v4974, 2
    %v4976 = vadd.f32 %v4974, %v4975
    %v4977 = vrot.slane %v4976, 1
    %v4978 = vadd.f32 %v4976, %v4977
    %v4979 = vsel %vm4278, %v4072, 0.0
    %v4980 = vrot.slane %v4979, 4
    %v4981 = vadd.f32 %v4979, %v4980
    %v4982 = vrot.slane %v4981, 2
    %v4983 = vadd.f32 %v4981, %v4982
    %v4984 = vrot.slane %v4983, 1
    %v4985 = vadd.f32 %v4983, %v4984
    %v4986 = vsel %vm4278, %v4200, 0.0
    %v4987 = vrot.slane %v4986, 4
    %v4988 = vadd.f32 %v4986, %v4987
    %v4989 = vrot.slane %v4988, 2
    %v4990 = vadd.f32 %v4988, %v4989
    %v4991 = vrot.slane %v4990, 1
    %v4992 = vadd.f32 %v4990, %v4991
    %v4993 = vsel %vm4278, %v4073, 0.0
    %v4994 = vrot.slane %v4993, 4
    %v4995 = vadd.f32 %v4993, %v4994
    %v4996 = vrot.slane %v4995, 2
    %v4997 = vadd.f32 %v4995, %v4996
    %v4998 = vrot.slane %v4997, 1
    %v4999 = vadd.f32 %v4997, %v4998
    %v5000 = vsel %vm4278, %v4201, 0.0
    %v5001 = vrot.slane %v5000, 4
    %v5002 = vadd.f32 %v5000, %v5001
    %v5003 = vrot.slane %v5002, 2
    %v5004 = vadd.f32 %v5002, %v5003
    %v5005 = vrot.slane %v5004, 1
    %v5006 = vadd.f32 %v5004, %v5005
    %v5007 = vsel %vm4278, %v4074, 0.0
    %v5008 = vrot.slane %v5007, 4
    %v5009 = vadd.f32 %v5007, %v5008
    %v5010 = vrot.slane %v5009, 2
    %v5011 = vadd.f32 %v5009, %v5010
    %v5012 = vrot.slane %v5011, 1
    %v5013 = vadd.f32 %v5011, %v5012
    %v5014 = vsel %vm4278, %v4202, 0.0
    %v5015 = vrot.slane %v5014, 4
    %v5016 = vadd.f32 %v5014, %v5015
    %v5017 = vrot.slane %v5016, 2
    %v5018 = vadd.f32 %v5016, %v5017
    %v5019 = vrot.slane %v5018, 1
    %v5020 = vadd.f32 %v5018, %v5019
    %v5021 = vsel %vm4278, %v4075, 0.0
    %v5022 = vrot.slane %v5021, 4
    %v5023 = vadd.f32 %v5021, %v5022
    %v5024 = vrot.slane %v5023, 2
    %v5025 = vadd.f32 %v5023, %v5024
    %v5026 = vrot.slane %v5025, 1
    %v5027 = vadd.f32 %v5025, %v5026
    %v5028 = vsel %vm4278, %v4203, 0.0
    %v5029 = vrot.slane %v5028, 4
    %v5030 = vadd.f32 %v5028, %v5029
    %v5031 = vrot.slane %v5030, 2
    %v5032 = vadd.f32 %v5030, %v5031
    %v5033 = vrot.slane %v5032, 1
    %v5034 = vadd.f32 %v5032, %v5033
    %v5035 = vsel %vm4278, %v4076, 0.0
    %v5036 = vrot.slane %v5035, 4
    %v5037 = vadd.f32 %v5035, %v5036
    %v5038 = vrot.slane %v5037, 2
    %v5039 = vadd.f32 %v5037, %v5038
    %v5040 = vrot.slane %v5039, 1
    %v5041 = vadd.f32 %v5039, %v5040
    %v5042 = vsel %vm4278, %v4204, 0.0
    %v5043 = vrot.slane %v5042, 4
    %v5044 = vadd.f32 %v5042, %v5043
    %v5045 = vrot.slane %v5044, 2
    %v5046 = vadd.f32 %v5044, %v5045
    %v5047 = vrot.slane %v5046, 1
    %v5048 = vadd.f32 %v5046, %v5047
    %v5049 = vsel %vm4278, %v4077, 0.0
    %v5050 = vrot.slane %v5049, 4
    %v5051 = vadd.f32 %v5049, %v5050
    %v5052 = vrot.slane %v5051, 2
    %v5053 = vadd.f32 %v5051, %v5052
    %v5054 = vrot.slane %v5053, 1
    %v5055 = vadd.f32 %v5053, %v5054
    %v5056 = vsel %vm4278, %v4205, 0.0
    %v5057 = vrot.slane %v5056, 4
    %v5058 = vadd.f32 %v5056, %v5057
    %v5059 = vrot.slane %v5058, 2
    %v5060 = vadd.f32 %v5058, %v5059
    %v5061 = vrot.slane %v5060, 1
    %v5062 = vadd.f32 %v5060, %v5061
    %v5063 = vsel %vm4278, %v4078, 0.0
    %v5064 = vrot.slane %v5063, 4
    %v5065 = vadd.f32 %v5063, %v5064
    %v5066 = vrot.slane %v5065, 2
    %v5067 = vadd.f32 %v5065, %v5066
    %v5068 = vrot.slane %v5067, 1
    %v5069 = vadd.f32 %v5067, %v5068
    %v5070 = vsel %vm4278, %v4206, 0.0
    %v5071 = vrot.slane %v5070, 4
    %v5072 = vadd.f32 %v5070, %v5071
    %v5073 = vrot.slane %v5072, 2
    %v5074 = vadd.f32 %v5072, %v5073
    %v5075 = vrot.slane %v5074, 1
    %v5076 = vadd.f32 %v5074, %v5075
    %v5077 = vsel %vm4278, %v4079, 0.0
    %v5078 = vrot.slane %v5077, 4
    %v5079 = vadd.f32 %v5077, %v5078
    %v5080 = vrot.slane %v5079, 2
    %v5081 = vadd.f32 %v5079, %v5080
    %v5082 = vrot.slane %v5081, 1
    %v5083 = vadd.f32 %v5081, %v5082
    %v5084 = vsel %vm4278, %v4207, 0.0
    %v5085 = vrot.slane %v5084, 4
    %v5086 = vadd.f32 %v5084, %v5085
    %v5087 = vrot.slane %v5086, 2
    %v5088 = vadd.f32 %v5086, %v5087
    %v5089 = vrot.slane %v5088, 1
    %v5090 = vadd.f32 %v5088, %v5089
    %v5091 = vsel %vm4278, %v4080, 0.0
    %v5092 = vrot.slane %v5091, 4
    %v5093 = vadd.f32 %v5091, %v5092
    %v5094 = vrot.slane %v5093, 2
    %v5095 = vadd.f32 %v5093, %v5094
    %v5096 = vrot.slane %v5095, 1
    %v5097 = vadd.f32 %v5095, %v5096
    %v5098 = vsel %vm4278, %v4208, 0.0
    %v5099 = vrot.slane %v5098, 4
    %v5100 = vadd.f32 %v5098, %v5099
    %v5101 = vrot.slane %v5100, 2
    %v5102 = vadd.f32 %v5100, %v5101
    %v5103 = vrot.slane %v5102, 1
    %v5104 = vadd.f32 %v5102, %v5103
    %v5105 = vsel %vm4278, %v4081, 0.0
    %v5106 = vrot.slane %v5105, 4
    %v5107 = vadd.f32 %v5105, %v5106
    %v5108 = vrot.slane %v5107, 2
    %v5109 = vadd.f32 %v5107, %v5108
    %v5110 = vrot.slane %v5109, 1
    %v5111 = vadd.f32 %v5109, %v5110
    %v5112 = vsel %vm4278, %v4209, 0.0
    %v5113 = vrot.slane %v5112, 4
    %v5114 = vadd.f32 %v5112, %v5113
    %v5115 = vrot.slane %v5114, 2
    %v5116 = vadd.f32 %v5114, %v5115
    %v5117 = vrot.slane %v5116, 1
    %v5118 = vadd.f32 %v5116, %v5117
    %v5119 = vsel %vm4278, %v4082, 0.0
    %v5120 = vrot.slane %v5119, 4
    %v5121 = vadd.f32 %v5119, %v5120
    %v5122 = vrot.slane %v5121, 2
    %v5123 = vadd.f32 %v5121, %v5122
    %v5124 = vrot.slane %v5123, 1
    %v5125 = vadd.f32 %v5123, %v5124
    %v5126 = vsel %vm4278, %v4210, 0.0
    %v5127 = vrot.slane %v5126, 4
    %v5128 = vadd.f32 %v5126, %v5127
    %v5129 = vrot.slane %v5128, 2
    %v5130 = vadd.f32 %v5128, %v5129
    %v5131 = vrot.slane %v5130, 1
    %v5132 = vadd.f32 %v5130, %v5131
    %v5133 = vsel %vm4278, %v4083, 0.0
    %v5134 = vrot.slane %v5133, 4
    %v5135 = vadd.f32 %v5133, %v5134
    %v5136 = vrot.slane %v5135, 2
    %v5137 = vadd.f32 %v5135, %v5136
    %v5138 = vrot.slane %v5137, 1
    %v5139 = vadd.f32 %v5137, %v5138
    %v5140 = vsel %vm4278, %v4211, 0.0
    %v5141 = vrot.slane %v5140, 4
    %v5142 = vadd.f32 %v5140, %v5141
    %v5143 = vrot.slane %v5142, 2
    %v5144 = vadd.f32 %v5142, %v5143
    %v5145 = vrot.slane %v5144, 1
    %v5146 = vadd.f32 %v5144, %v5145
    %v5147 = vsel %vm4278, %v4084, 0.0
    %v5148 = vrot.slane %v5147, 4
    %v5149 = vadd.f32 %v5147, %v5148
    %v5150 = vrot.slane %v5149, 2
    %v5151 = vadd.f32 %v5149, %v5150
    %v5152 = vrot.slane %v5151, 1
    %v5153 = vadd.f32 %v5151, %v5152
    %v5154 = vsel %vm4278, %v4212, 0.0
    %v5155 = vrot.slane %v5154, 4
    %v5156 = vadd.f32 %v5154, %v5155
    %v5157 = vrot.slane %v5156, 2
    %v5158 = vadd.f32 %v5156, %v5157
    %v5159 = vrot.slane %v5158, 1
    %v5160 = vadd.f32 %v5158, %v5159
    %v5161 = vsel %vm4278, %v4085, 0.0
    %v5162 = vrot.slane %v5161, 4
    %v5163 = vadd.f32 %v5161, %v5162
    %v5164 = vrot.slane %v5163, 2
    %v5165 = vadd.f32 %v5163, %v5164
    %v5166 = vrot.slane %v5165, 1
    %v5167 = vadd.f32 %v5165, %v5166
    %v5168 = vsel %vm4278, %v4213, 0.0
    %v5169 = vrot.slane %v5168, 4
    %v5170 = vadd.f32 %v5168, %v5169
    %v5171 = vrot.slane %v5170, 2
    %v5172 = vadd.f32 %v5170, %v5171
    %v5173 = vrot.slane %v5172, 1
    %v5174 = vadd.f32 %v5172, %v5173
    %v5175 = vrcp.pop 4.0
    %v5176 = vmul.f32 %v4285, %v5175
    %v5177 = vmul.f32 %v4292, %v5175
    %v5178 = vmul.f32 %v4299, %v5175
    %v5179 = vmul.f32 %v4306, %v5175
    %v5180 = vmul.f32 %v4313, %v5175
    %v5181 = vmul.f32 %v4320, %v5175
    %v5182 = vmul.f32 %v4327, %v5175
    %v5183 = vmul.f32 %v4334, %v5175
    %v5184 = vmul.f32 %v4341, %v5175
    %v5185 = vmul.f32 %v4348, %v5175
    %v5186 = vmul.f32 %v4355, %v5175
    %v5187 = vmul.f32 %v4362, %v5175
    %v5188 = vmul.f32 %v4369, %v5175
    %v5189 = vmul.f32 %v4376, %v5175
    %v5190 = vmul.f32 %v4383, %v5175
    %v5191 = vmul.f32 %v4390, %v5175
    %v5192 = vmul.f32 %v4397, %v5175
    %v5193 = vmul.f32 %v4404, %v5175
    %v5194 = vmul.f32 %v4411, %v5175
    %v5195 = vmul.f32 %v4418, %v5175
    %v5196 = vmul.f32 %v4425, %v5175
    %v5197 = vmul.f32 %v4432, %v5175
    %v5198 = vmul.f32 %v4439, %v5175
    %v5199 = vmul.f32 %v4446, %v5175
    %v5200 = vmul.f32 %v4453, %v5175
    %v5201 = vmul.f32 %v4460, %v5175
    %v5202 = vmul.f32 %v4467, %v5175
    %v5203 = vmul.f32 %v4474, %v5175
    %v5204 = vmul.f32 %v4481, %v5175
    %v5205 = vmul.f32 %v4488, %v5175
    %v5206 = vmul.f32 %v4495, %v5175
    %v5207 = vmul.f32 %v4502, %v5175
    %v5208 = vmul.f32 %v4509, %v5175
    %v5209 = vmul.f32 %v4516, %v5175
    %v5210 = vmul.f32 %v4523, %v5175
    %v5211 = vmul.f32 %v4530, %v5175
    %v5212 = vmul.f32 %v4537, %v5175
    %v5213 = vmul.f32 %v4544, %v5175
    %v5214 = vmul.f32 %v4551, %v5175
    %v5215 = vmul.f32 %v4558, %v5175
    %v5216 = vmul.f32 %v4565, %v5175
    %v5217 = vmul.f32 %v4572, %v5175
    %v5218 = vmul.f32 %v4579, %v5175
    %v5219 = vmul.f32 %v4586, %v5175
    %v5220 = vmul.f32 %v4593, %v5175
    %v5221 = vmul.f32 %v4600, %v5175
    %v5222 = vmul.f32 %v4607, %v5175
    %v5223 = vmul.f32 %v4614, %v5175
    %v5224 = vmul.f32 %v4621, %v5175
    %v5225 = vmul.f32 %v4628, %v5175
    %v5226 = vmul.f32 %v4635, %v5175
    %v5227 = vmul.f32 %v4642, %v5175
    %v5228 = vmul.f32 %v4649, %v5175
    %v5229 = vmul.f32 %v4656, %v5175
    %v5230 = vmul.f32 %v4663, %v5175
    %v5231 = vmul.f32 %v4670, %v5175
    %v5232 = vmul.f32 %v4677, %v5175
    %v5233 = vmul.f32 %v4684, %v5175
    %v5234 = vmul.f32 %v4691, %v5175
    %v5235 = vmul.f32 %v4698, %v5175
    %v5236 = vmul.f32 %v4705, %v5175
    %v5237 = vmul.f32 %v4712, %v5175
    %v5238 = vmul.f32 %v4719, %v5175
    %v5239 = vmul.f32 %v4726, %v5175
    %v5240 = vmul.f32 %v4733, %v5175
    %v5241 = vmul.f32 %v4740, %v5175
    %v5242 = vmul.f32 %v4747, %v5175
    %v5243 = vmul.f32 %v4754, %v5175
    %v5244 = vmul.f32 %v4761, %v5175
    %v5245 = vmul.f32 %v4768, %v5175
    %v5246 = vmul.f32 %v4775, %v5175
    %v5247 = vmul.f32 %v4782, %v5175
    %v5248 = vmul.f32 %v4789, %v5175
    %v5249 = vmul.f32 %v4796, %v5175
    %v5250 = vmul.f32 %v4803, %v5175
    %v5251 = vmul.f32 %v4810, %v5175
    %v5252 = vmul.f32 %v4817, %v5175
    %v5253 = vmul.f32 %v4824, %v5175
    %v5254 = vmul.f32 %v4831, %v5175
    %v5255 = vmul.f32 %v4838, %v5175
    %v5256 = vmul.f32 %v4845, %v5175
    %v5257 = vmul.f32 %v4852, %v5175
    %v5258 = vmul.f32 %v4859, %v5175
    %v5259 = vmul.f32 %v4866, %v5175
    %v5260 = vmul.f32 %v4873, %v5175
    %v5261 = vmul.f32 %v4880, %v5175
    %v5262 = vmul.f32 %v4887, %v5175
    %v5263 = vmul.f32 %v4894, %v5175
    %v5264 = vmul.f32 %v4901, %v5175
    %v5265 = vmul.f32 %v4908, %v5175
    %v5266 = vmul.f32 %v4915, %v5175
    %v5267 = vmul.f32 %v4922, %v5175
    %v5268 = vmul.f32 %v4929, %v5175
    %v5269 = vmul.f32 %v4936, %v5175
    %v5270 = vmul.f32 %v4943, %v5175
    %v5271 = vmul.f32 %v4950, %v5175
    %v5272 = vmul.f32 %v4957, %v5175
    %v5273 = vmul.f32 %v4964, %v5175
    %v5274 = vmul.f32 %v4971, %v5175
    %v5275 = vmul.f32 %v4978, %v5175
    %v5276 = vmul.f32 %v4985, %v5175
    %v5277 = vmul.f32 %v4992, %v5175
    %v5278 = vmul.f32 %v4999, %v5175
    %v5279 = vmul.f32 %v5006, %v5175
    %v5280 = vmul.f32 %v5013, %v5175
    %v5281 = vmul.f32 %v5020, %v5175
    %v5282 = vmul.f32 %v5027, %v5175
    %v5283 = vmul.f32 %v5034, %v5175
    %v5284 = vmul.f32 %v5041, %v5175
    %v5285 = vmul.f32 %v5048, %v5175
    %v5286 = vmul.f32 %v5055, %v5175
    %v5287 = vmul.f32 %v5062, %v5175
    %v5288 = vmul.f32 %v5069, %v5175
    %v5289 = vmul.f32 %v5076, %v5175
    %v5290 = vmul.f32 %v5083, %v5175
    %v5291 = vmul.f32 %v5090, %v5175
    %v5292 = vmul.f32 %v5097, %v5175
    %v5293 = vmul.f32 %v5104, %v5175
    %v5294 = vmul.f32 %v5111, %v5175
    %v5295 = vmul.f32 %v5118, %v5175
    %v5296 = vmul.f32 %v5125, %v5175
    %v5297 = vmul.f32 %v5132, %v5175
    %v5298 = vmul.f32 %v5139, %v5175
    %v5299 = vmul.f32 %v5146, %v5175
    %v5300 = vmul.f32 %v5153, %v5175
    %v5301 = vmul.f32 %v5160, %v5175
    %v5302 = vmul.f32 %v5167, %v5175
    %v5303 = vmul.f32 %v5174, %v5175
    %vm5432 = vcmask 1041409
    %v5433 = vsel %vm5432, %v5177, %v5176
    %vm5434 = vcmask 1042434
    %v5435 = vsel %vm5434, %v5178, %v5433
    %vm5436 = vcmask 1043459
    %v5437 = vsel %vm5436, %v5179, %v5435
    %vm5438 = vcmask 1044484
    %v5439 = vsel %vm5438, %v5180, %v5437
    %vm5440 = vcmask 1045509
    %v5441 = vsel %vm5440, %v5181, %v5439
    %vm5442 = vcmask 1046534
    %v5443 = vsel %vm5442, %v5182, %v5441
    %vm5444 = vcmask 1047559
    %v5445 = vsel %vm5444, %v5183, %v5443
    %v5446 = vsel %vm5432, %v5185, %v5184
    %v5447 = vsel %vm5434, %v5186, %v5446
    %v5448 = vsel %vm5436, %v5187, %v5447
    %v5449 = vsel %vm5438, %v5188, %v5448
    %v5450 = vsel %vm5440, %v5189, %v5449
    %v5451 = vsel %vm5442, %v5190, %v5450
    %v5452 = vsel %vm5444, %v5191, %v5451
    %v5453 = vsel %vm5432, %v5193, %v5192
    %v5454 = vsel %vm5434, %v5194, %v5453
    %v5455 = vsel %vm5436, %v5195, %v5454
    %v5456 = vsel %vm5438, %v5196, %v5455
    %v5457 = vsel %vm5440, %v5197, %v5456
    %v5458 = vsel %vm5442, %v5198, %v5457
    %v5459 = vsel %vm5444, %v5199, %v5458
    %v5460 = vsel %vm5432, %v5201, %v5200
    %v5461 = vsel %vm5434, %v5202, %v5460
    %v5462 = vsel %vm5436, %v5203, %v5461
    %v5463 = vsel %vm5438, %v5204, %v5462
    %v5464 = vsel %vm5440, %v5205, %v5463
    %v5465 = vsel %vm5442, %v5206, %v5464
    %v5466 = vsel %vm5444, %v5207, %v5465
    %v5467 = vsel %vm5432, %v5209, %v5208
    %v5468 = vsel %vm5434, %v5210, %v5467
    %v5469 = vsel %vm5436, %v5211, %v5468
    %v5470 = vsel %vm5438, %v5212, %v5469
    %v5471 = vsel %vm5440, %v5213, %v5470
    %v5472 = vsel %vm5442, %v5214, %v5471
    %v5473 = vsel %vm5444, %v5215, %v5472
    %v5474 = vsel %vm5432, %v5217, %v5216
    %v5475 = vsel %vm5434, %v5218, %v5474
    %v5476 = vsel %vm5436, %v5219, %v5475
    %v5477 = vsel %vm5438, %v5220, %v5476
    %v5478 = vsel %vm5440, %v5221, %v5477
    %v5479 = vsel %vm5442, %v5222, %v5478
    %v5480 = vsel %vm5444, %v5223, %v5479
    %v5481 = vsel %vm5432, %v5225, %v5224
    %v5482 = vsel %vm5434, %v5226, %v5481
    %v5483 = vsel %vm5436, %v5227, %v5482
    %v5484 = vsel %vm5438, %v5228, %v5483
    %v5485 = vsel %vm5440, %v5229, %v5484
    %v5486 = vsel %vm5442, %v5230, %v5485
    %v5487 = vsel %vm5444, %v5231, %v5486
    %v5488 = vsel %vm5432, %v5233, %v5232
    %v5489 = vsel %vm5434, %v5234, %v5488
    %v5490 = vsel %vm5436, %v5235, %v5489
    %v5491 = vsel %vm5438, %v5236, %v5490
    %v5492 = vsel %vm5440, %v5237, %v5491
    %v5493 = vsel %vm5442, %v5238, %v5492
    %v5494 = vsel %vm5444, %v5239, %v5493
    %v5495 = vsel %vm5432, %v5241, %v5240
    %v5496 = vsel %vm5434, %v5242, %v5495
    %v5497 = vsel %vm5436, %v5243, %v5496
    %v5498 = vsel %vm5438, %v5244, %v5497
    %v5499 = vsel %vm5440, %v5245, %v5498
    %v5500 = vsel %vm5442, %v5246, %v5499
    %v5501 = vsel %vm5444, %v5247, %v5500
    %v5502 = vsel %vm5432, %v5249, %v5248
    %v5503 = vsel %vm5434, %v5250, %v5502
    %v5504 = vsel %vm5436, %v5251, %v5503
    %v5505 = vsel %vm5438, %v5252, %v5504
    %v5506 = vsel %vm5440, %v5253, %v5505
    %v5507 = vsel %vm5442, %v5254, %v5506
    %v5508 = vsel %vm5444, %v5255, %v5507
    %v5509 = vsel %vm5432, %v5257, %v5256
    %v5510 = vsel %vm5434, %v5258, %v5509
    %v5511 = vsel %vm5436, %v5259, %v5510
    %v5512 = vsel %vm5438, %v5260, %v5511
    %v5513 = vsel %vm5440, %v5261, %v5512
    %v5514 = vsel %vm5442, %v5262, %v5513
    %v5515 = vsel %vm5444, %v5263, %v5514
    %v5516 = vsel %vm5432, %v5265, %v5264
    %v5517 = vsel %vm5434, %v5266, %v5516
    %v5518 = vsel %vm5436, %v5267, %v5517
    %v5519 = vsel %vm5438, %v5268, %v5518
    %v5520 = vsel %vm5440, %v5269, %v5519
    %v5521 = vsel %vm5442, %v5270, %v5520
    %v5522 = vsel %vm5444, %v5271, %v5521
    %v5523 = vsel %vm5432, %v5273, %v5272
    %v5524 = vsel %vm5434, %v5274, %v5523
    %v5525 = vsel %vm5436, %v5275, %v5524
    %v5526 = vsel %vm5438, %v5276, %v5525
    %v5527 = vsel %vm5440, %v5277, %v5526
    %v5528 = vsel %vm5442, %v5278, %v5527
    %v5529 = vsel %vm5444, %v5279, %v5528
    %v5530 = vsel %vm5432, %v5281, %v5280
    %v5531 = vsel %vm5434, %v5282, %v5530
    %v5532 = vsel %vm5436, %v5283, %v5531
    %v5533 = vsel %vm5438, %v5284, %v5532
    %v5534 = vsel %vm5440, %v5285, %v5533
    %v5535 = vsel %vm5442, %v5286, %v5534
    %v5536 = vsel %vm5444, %v5287, %v5535
    %v5537 = vsel %vm5432, %v5289, %v5288
    %v5538 = vsel %vm5434, %v5290, %v5537
    %v5539 = vsel %vm5436, %v5291, %v5538
    %v5540 = vsel %vm5438, %v5292, %v5539
    %v5541 = vsel %vm5440, %v5293, %v5540
    %v5542 = vsel %vm5442, %v5294, %v5541
    %v5543 = vsel %vm5444, %v5295, %v5542
    %v5544 = vsel %vm5432, %v5297, %v5296
    %v5545 = vsel %vm5434, %v5298, %v5544
    %v5546 = vsel %vm5436, %v5299, %v5545
    %v5547 = vsel %vm5438, %v5300, %v5546
    %v5548 = vsel %vm5440, %v5301, %v5547
    %v5549 = vsel %vm5442, %v5302, %v5548
    %v5550 = vsel %vm5444, %v5303, %v5549
    %5567 = vst [vmem:[#allocation3] sm:$0xff] %v5445
    %5568 = vst [vmem:[#allocation3 + $0x8] sm:$0xff] %v5452
    %5569 = vst [vmem:[#allocation3 + $0x10] sm:$0xff] %v5459
    %5570 = vst [vmem:[#allocation3 + $0x18] sm:$0xff] %v5466
    %5571 = vst [vmem:[#allocation3 + $0x20] sm:$0xff] %v5473
    %5572 = vst [vmem:[#allocation3 + $0x28] sm:$0xff] %v5480
    %5573 = vst [vmem:[#allocation3 + $0x30] sm:$0xff] %v5487
    %5574 = vst [vmem:[#allocation3 + $0x38] sm:$0xff] %v5494
    %5575 = vst [vmem:[#allocation3 + $0x40] sm:$0xff] %v5501
    %5576 = vst [vmem:[#allocation3 + $0x48] sm:$0xff] %v5508
    %5577 = vst [vmem:[#allocation3 + $0x50] sm:$0xff] %v5515
    %5578 = vst [vmem:[#allocation3 + $0x58] sm:$0xff] %v5522
    %5579 = vst [vmem:[#allocation3 + $0x60] sm:$0xff] %v5529
    %5580 = vst [vmem:[#allocation3 + $0x68] sm:$0xff] %v5536
    %5581 = vst [vmem:[#allocation3 + $0x70] sm:$0xff] %v5543
    %5582 = vst [vmem:[#allocation3 + $0x78] sm:$0xff] %v5550
    // Predicated region
    $region18: #{tpu_custom_call.1} parent=1 // pred_check
      _
    $region19: #{tpu_custom_call.1} parent=1 // pred_check_branch
      %5584 = sbr.rel (0) target = $region21
    $region20: #{tpu_custom_call.1} parent=1 // pred_region
      %s5586 = ssub.s32 2048, 2048
      %5587 = vsyncadd [#allocation4], %s5586
      %s5588 = sshll.u32 [#allocation3], 4
      %s5589 = int_to_ptr.vmem [resolvable:$true] %s5588
      %5594 = dma.vmem_to_hbm [thread:$0]  %s5589, 2048, %s4, [#allocation4], 128, 128, 8
    $region21: #{tpu_custom_call.1} parent=1 // pred_fallthru
      _
    // Predicated region
    $region22: #{tpu_custom_call.1} parent=1 // pred_check
      _
    $region23: #{tpu_custom_call.1} parent=1 // pred_check_branch
      %5596 = sbr.rel (0) target = $region25
    $region24: #{tpu_custom_call.1} parent=1 // pred_region
      %5597 = dma.done [#allocation4], 2048
    $region25: #{tpu_custom_call.1} parent=1 // pred_fallthru
      _
    %5598 = vsyncpa [#allocation4], 1

</llo_original>
